<compile_context>
chip_gen: v5e
topology: v5e:2x2
jax: 0.10.0
libtpu: 0.0.40
codegen_flags: <defaults>
</compile_context>

<pallas_src>
import functools

import jax
import jax.numpy as jnp
from jax.experimental import pallas as pl
from jax.experimental.pallas import tpu as pltpu

LMAX = 3
NUM_L = LMAX + 1                 # 4 instructions / l-channels
NUM_LM = (LMAX + 1) ** 2         # 16 spherical components


def _round_up(v, m):
    return (v + m - 1) // m * m


def _elemental_linear_kernel(x_ref, y_ref, w_ref, o_ref):
    # x_ref : (NUM_LM, bn, Cin)            lm-major, channel-last
    # y_ref : (bn, E)                      one-hot element encoding (f32)
    # w_ref : (NUM_L, Cin, E*Cout)         N-stacked weights, resident
    # o_ref : (NUM_LM, bn, Cout)
    _, bn, c_in = x_ref.shape
    n_elem = y_ref.shape[1]
    c_out = o_ref.shape[2]

    # Hoist the one-hot masks out of the l loop: build each (1, bn, 1)
    # broadcast exactly once per node tile.
    ys = y_ref[...].astype(jnp.float32)                                 # (bn, E)
    y_b = [ys[:, e:e + 1].reshape(1, bn, 1) for e in range(n_elem)]

    for l in range(NUM_L):                      # static unroll (4)
        s = l * l
        nm = 2 * l + 1
        # Free leading-dim merge: (nm, bn, Cin) -> (nm*bn, Cin), bn % 8 == 0.
        x_l = x_ref[s:s + nm].reshape(nm * bn, c_in)

        # Single MXU matmul per l: all element outputs at once, f32 accum.
        res = jnp.dot(x_l, w_ref[l], preferred_element_type=jnp.float32)
        res = res.reshape(nm, bn, n_elem * c_out)        # free leading split

        # One-hot selection = masked reduction over the E output column
        # blocks.  Value-level (init from e=0, no zero-init, no VMEM acc RMW);
        # TODO(synk): for large E switch to lax.fori_loop to bound code size.
        out = y_b[0] * res[:, :, :c_out]
        for e in range(1, n_elem):
            out = out + y_b[e] * res[:, :, e * c_out:(e + 1) * c_out]

        o_ref[s:s + nm] = out.astype(o_ref.dtype)        # one store per l


@functools.partial(
    jax.jit,
    static_argnames=("block_nodes", "compute_dtype", "out_dtype", "lm_major"))
def elemental_linear(x, y, weights, *, block_nodes=512,
                     compute_dtype=jnp.bfloat16, out_dtype=None,
                     lm_major=False):
    """ElementalLinear forward.

    x       : (N, 16, C_in)  — or (16, N, C_in) if lm_major=True
    y       : (N, E) one-hot
    weights : (E, 4, C_in, C_out)
    returns : (N, 16, C_out) (or (16, N, C_out) if lm_major=True)

    compute_dtype: operand dtype fed to the MXU (bf16 production default,
      accumulation is always f32).  Pass jnp.float32 for exact f32 math.
    block_nodes: node tile; sweep 256-1024 on v5e/v6e, keep <=512 on v7x
      (64 MiB/TC VMEM).  The wrapper clamps it so there are >=2 grid steps
      whenever possible (v7x megacore sharding).
    """
    if lm_major:
        n_lm, n_nodes, c_in = x.shape
    else:
        n_nodes, n_lm, c_in = x.shape
    n_elem, n_l, c_in_w, c_out = weights.shape
    assert n_lm == NUM_LM and n_l == NUM_L and c_in_w == c_in
    assert y.shape == (n_nodes, n_elem)

    cdt = x.dtype if compute_dtype is None else compute_dtype
    out_dt = x.dtype if out_dtype is None else out_dtype

    # Node tile: multiple of 8 sublanes; ensure >=2 grid steps when there are
    # enough nodes so the "parallel" axis shards across v7x's two TensorCores.
    bn = max(8, min(block_nodes, _round_up(n_nodes, 8)))
    if n_nodes >= 16:
        bn = min(bn, _round_up(pl.cdiv(n_nodes, 2), 8))
    bn = _round_up(bn, 8)
    n_pad = _round_up(n_nodes, bn)

    # ---- wrapper-side layout plumbing (fused into one pass under jit) ----
    # Channels stay UNPADDED (full-dim blocks are legal); only nodes padded.
    # Padded rows have y == 0 -> zero output -> sliced off.
    x_lm = x if lm_major else jnp.transpose(x, (1, 0, 2))        # (16, N, Cin)
    x_p = jnp.pad(x_lm.astype(cdt), ((0, 0), (0, n_pad - n_nodes), (0, 0)))
    y_p = jnp.pad(y.astype(jnp.float32), ((0, n_pad - n_nodes), (0, 0)))
    # (E, 4, Cin, Cout) -> (4, Cin, E*Cout): one matmul per l produces the
    # outputs for all elements; the kernel's one-hot mask reduces over E.
    w_cat = jnp.transpose(weights.astype(cdt), (1, 2, 0, 3)) \
               .reshape(NUM_L, c_in, n_elem * c_out)

    grid = (n_pad // bn,)

    # VMEM budget from the actual block sizes (double-buffered x/y/out,
    # resident weights, f32 temporaries for the largest l).
    comp_sz = jnp.dtype(cdt).itemsize
    out_sz = jnp.dtype(out_dt).itemsize
    x_blk = NUM_LM * bn * c_in * comp_sz
    y_blk = bn * n_elem * 4
    w_blk = NUM_L * c_in * n_elem * c_out * comp_sz
    o_blk = NUM_LM * bn * c_out * out_sz
    nm_max = 2 * LMAX + 1
    tmp = nm_max * bn * (n_elem * c_out + c_out) * 4 + nm_max * bn * c_in * comp_sz
    vmem_est = 2 * (x_blk + y_blk + o_blk) + 2 * w_blk + tmp
    vmem_limit = int(min(96 * 1024 * 1024,
                         max(32 * 1024 * 1024, vmem_est * 3 // 2 + (4 << 20))))

    cost = pl.CostEstimate(
        flops=2 * n_pad * NUM_LM * c_in * n_elem * c_out,
        transcendentals=0,
        bytes_accessed=(x_p.size * comp_sz + y_p.size * 4
                        + w_cat.size * comp_sz + NUM_LM * n_pad * c_out * out_sz),
    )

    out = pl.pallas_call(
        _elemental_linear_kernel,
        out_shape=jax.ShapeDtypeStruct((NUM_LM, n_pad, c_out), out_dt),
        grid_spec=pltpu.PrefetchScalarGridSpec(
            num_scalar_prefetch=0,
            grid=grid,
            in_specs=[
                pl.BlockSpec((NUM_LM, bn, c_in), lambda i: (0, i, 0)),
                pl.BlockSpec((bn, n_elem), lambda i: (i, 0)),
                # Constant index_map: weights stay resident across grid steps.
                pl.BlockSpec((NUM_L, c_in, n_elem * c_out),
                             lambda i: (0, 0, 0)),
            ],
            out_specs=pl.BlockSpec((NUM_LM, bn, c_out), lambda i: (0, i, 0)),
        ),
        compiler_params=pltpu.CompilerParams(
            dimension_semantics=("parallel",),
            vmem_limit_bytes=vmem_limit,
        ),
        cost_estimate=cost,
    )(x_p, y_p, w_cat)

    out = out[:, :n_nodes, :]
    return out if lm_major else jnp.transpose(out, (1, 0, 2))


def elemental_linear_ref(x, y, weights):
    """Pure-JAX reference of the same forward semantics."""
    l_of_lm = jnp.array([l for l in range(NUM_L) for _ in range(2 * l + 1)],
                        dtype=jnp.int32)
    w_lm = weights[:, l_of_lm]                                    # (E, 16, Cin, Cout)
    return jnp.einsum('ne,nmi,emio->nmo', y, x, w_lm)


if __name__ == "__main__":
    key = jax.random.PRNGKey(0)
    k_x, k_w, k_e = jax.random.split(key, 3)

    # Small but representative shapes: 50 nodes (exercises node-tile padding
    # and >=2 grid steps), typical MACE channel width 128, 4 elements.
    n_nodes = 50
    c_in = 128
    c_out = 128
    num_elements = 4

    x = jax.random.normal(k_x, (n_nodes, NUM_LM, c_in), dtype=jnp.float32)
    elem_ids = jax.random.randint(k_e, (n_nodes,), 0, num_elements)
    y = jax.nn.one_hot(elem_ids, num_elements, dtype=jnp.float32)
    weights = 0.1 * jax.random.normal(
        k_w, (num_elements, NUM_L, c_in, c_out), dtype=jnp.float32)

    ref = elemental_linear_ref(x, y, weights)

    # Exact f32 compute path (tight tolerance).
    out_f32 = jax.block_until_ready(
        elemental_linear(x, y, weights, compute_dtype=jnp.float32))
    assert out_f32.shape == (n_nodes, NUM_LM, c_out)
    assert jnp.allclose(out_f32, ref, atol=1e-4, rtol=1e-4), "f32 mismatch"

    # Production default: bf16 operands, f32 accumulation.
    out_bf = jax.block_until_ready(elemental_linear(x, y, weights))
    ref_bf = elemental_linear_ref(x.astype(jnp.bfloat16).astype(jnp.float32), y,
                                  weights.astype(jnp.bfloat16).astype(jnp.float32))
    assert out_bf.shape == (n_nodes, NUM_LM, c_out)
    assert jnp.allclose(out_bf.astype(jnp.float32), ref_bf,
                        atol=5e-2, rtol=5e-2), "bf16 mismatch"

    # lm-major fast path (skips the wrapper transposes entirely).
    x_lm = jnp.transpose(x, (1, 0, 2))
    out_lm = jax.block_until_ready(
        elemental_linear(x_lm, y, weights, compute_dtype=jnp.float32,
                         lm_major=True))
    assert jnp.allclose(jnp.transpose(out_lm, (1, 0, 2)), ref,
                        atol=1e-4, rtol=1e-4), "lm-major mismatch"

    print("KERNEL_OK")
</pallas_src>

<mosaic_0001>
module attributes {stable_mosaic.version = 11 : i64} {
  func.func @_elemental_linear_kernel(%arg0: i32, %arg1: memref<16x32x128xf32, #tpu.memory_space<vmem>>, %arg2: memref<32x4xf32, #tpu.memory_space<vmem>>, %arg3: memref<4x128x512xf32, #tpu.memory_space<vmem>>, %arg4: memref<16x32x128xf32, #tpu.memory_space<vmem>>) attributes {dimension_semantics = [#tpu.dimension_semantics<parallel>], iteration_bounds = array<i64: 2>, scalar_prefetch = 0 : i64, scratch_operands = 0 : i64, tpu.core_type = #tpu.core_type<tc>, window_params = [{transform_indices = @transform_0, window_bounds = array<i64: 16, 32, 128>}, {transform_indices = @transform_1, window_bounds = array<i64: 32, 4>}, {pipeline_mode = #tpu.pipeline_mode<synchronous>, transform_indices = @transform_2, window_bounds = array<i64: 4, 128, 512>}, {transform_indices = @transform_3, window_bounds = array<i64: 16, 32, 128>}]} {
    %c0 = arith.constant 0 : index
    %c0_0 = arith.constant 0 : index
    %0 = vector.load %arg2[%c0, %c0_0] : memref<32x4xf32, #tpu.memory_space<vmem>>, vector<32x4xf32>
    %1 = vector.extract_strided_slice %0 {offsets = [0, 0], sizes = [32, 1], strides = [1, 1]} : vector<32x4xf32> to vector<32x1xf32>
    %2 = vector.shape_cast %1 : vector<32x1xf32> to vector<1x32x1xf32>
    %3 = vector.extract_strided_slice %0 {offsets = [0, 1], sizes = [32, 1], strides = [1, 1]} : vector<32x4xf32> to vector<32x1xf32>
    %4 = vector.shape_cast %3 : vector<32x1xf32> to vector<1x32x1xf32>
    %5 = vector.extract_strided_slice %0 {offsets = [0, 2], sizes = [32, 1], strides = [1, 1]} : vector<32x4xf32> to vector<32x1xf32>
    %6 = vector.shape_cast %5 : vector<32x1xf32> to vector<1x32x1xf32>
    %7 = vector.extract_strided_slice %0 {offsets = [0, 3], sizes = [32, 1], strides = [1, 1]} : vector<32x4xf32> to vector<32x1xf32>
    %8 = vector.shape_cast %7 : vector<32x1xf32> to vector<1x32x1xf32>
    %c0_1 = arith.constant 0 : index
    %c0_2 = arith.constant 0 : index
    %c0_3 = arith.constant 0 : index
    %9 = vector.load %arg1[%c0_1, %c0_2, %c0_3] : memref<16x32x128xf32, #tpu.memory_space<vmem>>, vector<1x32x128xf32>
    %10 = vector.shape_cast %9 : vector<1x32x128xf32> to vector<32x128xf32>
    %c0_4 = arith.constant 0 : index
    %c0_5 = arith.constant 0 : index
    %c0_6 = arith.constant 0 : index
    %11 = vector.load %arg3[%c0_4, %c0_5, %c0_6] : memref<4x128x512xf32, #tpu.memory_space<vmem>>, vector<1x128x512xf32>
    %12 = vector.shape_cast %11 : vector<1x128x512xf32> to vector<128x512xf32>
    %cst = arith.constant dense<0.000000e+00> : vector<32x512xf32>
    %13 = tpu.matmul %10, %12, %cst {dimension_numbers = #tpu.dot_dimension_numbers<[1], [0], [0], [1], [0, 0, 1, 1], [], []>} : vector<32x128xf32>, vector<128x512xf32>, vector<32x512xf32> -> vector<32x512xf32>
    %14 = vector.shape_cast %13 : vector<32x512xf32> to vector<1x32x512xf32>
    %15 = vector.extract_strided_slice %14 {offsets = [0, 0, 0], sizes = [1, 32, 128], strides = [1, 1, 1]} : vector<1x32x512xf32> to vector<1x32x128xf32>
    %16 = vector.broadcast %2 : vector<1x32x1xf32> to vector<1x32x128xf32>
    %17 = arith.mulf %16, %15 : vector<1x32x128xf32>
    %18 = vector.extract_strided_slice %14 {offsets = [0, 0, 128], sizes = [1, 32, 128], strides = [1, 1, 1]} : vector<1x32x512xf32> to vector<1x32x128xf32>
    %19 = vector.broadcast %4 : vector<1x32x1xf32> to vector<1x32x128xf32>
    %20 = arith.mulf %19, %18 : vector<1x32x128xf32>
    %21 = arith.addf %17, %20 : vector<1x32x128xf32>
    %22 = vector.extract_strided_slice %14 {offsets = [0, 0, 256], sizes = [1, 32, 128], strides = [1, 1, 1]} : vector<1x32x512xf32> to vector<1x32x128xf32>
    %23 = vector.broadcast %6 : vector<1x32x1xf32> to vector<1x32x128xf32>
    %24 = arith.mulf %23, %22 : vector<1x32x128xf32>
    %25 = arith.addf %21, %24 : vector<1x32x128xf32>
    %26 = vector.extract_strided_slice %14 {offsets = [0, 0, 384], sizes = [1, 32, 128], strides = [1, 1, 1]} : vector<1x32x512xf32> to vector<1x32x128xf32>
    %27 = vector.broadcast %8 : vector<1x32x1xf32> to vector<1x32x128xf32>
    %28 = arith.mulf %27, %26 : vector<1x32x128xf32>
    %29 = arith.addf %25, %28 : vector<1x32x128xf32>
    %c0_7 = arith.constant 0 : index
    %c0_8 = arith.constant 0 : index
    %c0_9 = arith.constant 0 : index
    %30 = vector.load %arg4[%c0_7, %c0_8, %c0_9] : memref<16x32x128xf32, #tpu.memory_space<vmem>>, vector<1x32x128xf32>
    tpu.vector_store %arg4[%c0_7, %c0_8, %c0_9], %29 {strides = array<i32>} : memref<16x32x128xf32, #tpu.memory_space<vmem>>, vector<1x32x128xf32>,
    %c1 = arith.constant 1 : index
    %c0_10 = arith.constant 0 : index
    %c0_11 = arith.constant 0 : index
    %31 = vector.load %arg1[%c1, %c0_10, %c0_11] : memref<16x32x128xf32, #tpu.memory_space<vmem>>, vector<3x32x128xf32>
    %32 = vector.shape_cast %31 : vector<3x32x128xf32> to vector<96x128xf32>
    %c1_12 = arith.constant 1 : index
    %c0_13 = arith.constant 0 : index
    %c0_14 = arith.constant 0 : index
    %33 = vector.load %arg3[%c1_12, %c0_13, %c0_14] : memref<4x128x512xf32, #tpu.memory_space<vmem>>, vector<1x128x512xf32>
    %34 = vector.shape_cast %33 : vector<1x128x512xf32> to vector<128x512xf32>
    %cst_15 = arith.constant dense<0.000000e+00> : vector<96x512xf32>
    %35 = tpu.matmul %32, %34, %cst_15 {dimension_numbers = #tpu.dot_dimension_numbers<[1], [0], [0], [1], [0, 0, 1, 1], [], []>} : vector<96x128xf32>, vector<128x512xf32>, vector<96x512xf32> -> vector<96x512xf32>
    %36 = vector.shape_cast %35 : vector<96x512xf32> to vector<3x32x512xf32>
    %37 = vector.extract_strided_slice %36 {offsets = [0, 0, 0], sizes = [3, 32, 128], strides = [1, 1, 1]} : vector<3x32x512xf32> to vector<3x32x128xf32>
    %38 = vector.broadcast %2 : vector<1x32x1xf32> to vector<3x32x128xf32>
    %39 = arith.mulf %38, %37 : vector<3x32x128xf32>
    %40 = vector.extract_strided_slice %36 {offsets = [0, 0, 128], sizes = [3, 32, 128], strides = [1, 1, 1]} : vector<3x32x512xf32> to vector<3x32x128xf32>
    %41 = vector.broadcast %4 : vector<1x32x1xf32> to vector<3x32x128xf32>
    %42 = arith.mulf %41, %40 : vector<3x32x128xf32>
    %43 = arith.addf %39, %42 : vector<3x32x128xf32>
    %44 = vector.extract_strided_slice %36 {offsets = [0, 0, 256], sizes = [3, 32, 128], strides = [1, 1, 1]} : vector<3x32x512xf32> to vector<3x32x128xf32>
    %45 = vector.broadcast %6 : vector<1x32x1xf32> to vector<3x32x128xf32>
    %46 = arith.mulf %45, %44 : vector<3x32x128xf32>
    %47 = arith.addf %43, %46 : vector<3x32x128xf32>
    %48 = vector.extract_strided_slice %36 {offsets = [0, 0, 384], sizes = [3, 32, 128], strides = [1, 1, 1]} : vector<3x32x512xf32> to vector<3x32x128xf32>
    %49 = vector.broadcast %8 : vector<1x32x1xf32> to vector<3x32x128xf32>
    %50 = arith.mulf %49, %48 : vector<3x32x128xf32>
    %51 = arith.addf %47, %50 : vector<3x32x128xf32>
    %c1_16 = arith.constant 1 : index
    %c0_17 = arith.constant 0 : index
    %c0_18 = arith.constant 0 : index
    %52 = vector.load %arg4[%c1_16, %c0_17, %c0_18] : memref<16x32x128xf32, #tpu.memory_space<vmem>>, vector<3x32x128xf32>
    tpu.vector_store %arg4[%c1_16, %c0_17, %c0_18], %51 {strides = array<i32>} : memref<16x32x128xf32, #tpu.memory_space<vmem>>, vector<3x32x128xf32>,
    %c4 = arith.constant 4 : index
    %c0_19 = arith.constant 0 : index
    %c0_20 = arith.constant 0 : index
    %53 = vector.load %arg1[%c4, %c0_19, %c0_20] : memref<16x32x128xf32, #tpu.memory_space<vmem>>, vector<5x32x128xf32>
    %54 = vector.shape_cast %53 : vector<5x32x128xf32> to vector<160x128xf32>
    %c2 = arith.constant 2 : index
    %c0_21 = arith.constant 0 : index
    %c0_22 = arith.constant 0 : index
    %55 = vector.load %arg3[%c2, %c0_21, %c0_22] : memref<4x128x512xf32, #tpu.memory_space<vmem>>, vector<1x128x512xf32>
    %56 = vector.shape_cast %55 : vector<1x128x512xf32> to vector<128x512xf32>
    %cst_23 = arith.constant dense<0.000000e+00> : vector<160x512xf32>
    %57 = tpu.matmul %54, %56, %cst_23 {dimension_numbers = #tpu.dot_dimension_numbers<[1], [0], [0], [1], [0, 0, 1, 1], [], []>} : vector<160x128xf32>, vector<128x512xf32>, vector<160x512xf32> -> vector<160x512xf32>
    %58 = vector.shape_cast %57 : vector<160x512xf32> to vector<5x32x512xf32>
    %59 = vector.extract_strided_slice %58 {offsets = [0, 0, 0], sizes = [5, 32, 128], strides = [1, 1, 1]} : vector<5x32x512xf32> to vector<5x32x128xf32>
    %60 = vector.broadcast %2 : vector<1x32x1xf32> to vector<5x32x128xf32>
    %61 = arith.mulf %60, %59 : vector<5x32x128xf32>
    %62 = vector.extract_strided_slice %58 {offsets = [0, 0, 128], sizes = [5, 32, 128], strides = [1, 1, 1]} : vector<5x32x512xf32> to vector<5x32x128xf32>
    %63 = vector.broadcast %4 : vector<1x32x1xf32> to vector<5x32x128xf32>
    %64 = arith.mulf %63, %62 : vector<5x32x128xf32>
    %65 = arith.addf %61, %64 : vector<5x32x128xf32>
    %66 = vector.extract_strided_slice %58 {offsets = [0, 0, 256], sizes = [5, 32, 128], strides = [1, 1, 1]} : vector<5x32x512xf32> to vector<5x32x128xf32>
    %67 = vector.broadcast %6 : vector<1x32x1xf32> to vector<5x32x128xf32>
    %68 = arith.mulf %67, %66 : vector<5x32x128xf32>
    %69 = arith.addf %65, %68 : vector<5x32x128xf32>
    %70 = vector.extract_strided_slice %58 {offsets = [0, 0, 384], sizes = [5, 32, 128], strides = [1, 1, 1]} : vector<5x32x512xf32> to vector<5x32x128xf32>
    %71 = vector.broadcast %8 : vector<1x32x1xf32> to vector<5x32x128xf32>
    %72 = arith.mulf %71, %70 : vector<5x32x128xf32>
    %73 = arith.addf %69, %72 : vector<5x32x128xf32>
    %c4_24 = arith.constant 4 : index
    %c0_25 = arith.constant 0 : index
    %c0_26 = arith.constant 0 : index
    %74 = vector.load %arg4[%c4_24, %c0_25, %c0_26] : memref<16x32x128xf32, #tpu.memory_space<vmem>>, vector<5x32x128xf32>
    tpu.vector_store %arg4[%c4_24, %c0_25, %c0_26], %73 {strides = array<i32>} : memref<16x32x128xf32, #tpu.memory_space<vmem>>, vector<5x32x128xf32>,
    %c9 = arith.constant 9 : index
    %c0_27 = arith.constant 0 : index
    %c0_28 = arith.constant 0 : index
    %75 = vector.load %arg1[%c9, %c0_27, %c0_28] : memref<16x32x128xf32, #tpu.memory_space<vmem>>, vector<7x32x128xf32>
    %76 = vector.shape_cast %75 : vector<7x32x128xf32> to vector<224x128xf32>
    %c3 = arith.constant 3 : index
    %c0_29 = arith.constant 0 : index
    %c0_30 = arith.constant 0 : index
    %77 = vector.load %arg3[%c3, %c0_29, %c0_30] : memref<4x128x512xf32, #tpu.memory_space<vmem>>, vector<1x128x512xf32>
    %78 = vector.shape_cast %77 : vector<1x128x512xf32> to vector<128x512xf32>
    %cst_31 = arith.constant dense<0.000000e+00> : vector<224x512xf32>
    %79 = tpu.matmul %76, %78, %cst_31 {dimension_numbers = #tpu.dot_dimension_numbers<[1], [0], [0], [1], [0, 0, 1, 1], [], []>} : vector<224x128xf32>, vector<128x512xf32>, vector<224x512xf32> -> vector<224x512xf32>
    %80 = vector.shape_cast %79 : vector<224x512xf32> to vector<7x32x512xf32>
    %81 = vector.extract_strided_slice %80 {offsets = [0, 0, 0], sizes = [7, 32, 128], strides = [1, 1, 1]} : vector<7x32x512xf32> to vector<7x32x128xf32>
    %82 = vector.broadcast %2 : vector<1x32x1xf32> to vector<7x32x128xf32>
    %83 = arith.mulf %82, %81 : vector<7x32x128xf32>
    %84 = vector.extract_strided_slice %80 {offsets = [0, 0, 128], sizes = [7, 32, 128], strides = [1, 1, 1]} : vector<7x32x512xf32> to vector<7x32x128xf32>
    %85 = vector.broadcast %4 : vector<1x32x1xf32> to vector<7x32x128xf32>
    %86 = arith.mulf %85, %84 : vector<7x32x128xf32>
    %87 = arith.addf %83, %86 : vector<7x32x128xf32>
    %88 = vector.extract_strided_slice %80 {offsets = [0, 0, 256], sizes = [7, 32, 128], strides = [1, 1, 1]} : vector<7x32x512xf32> to vector<7x32x128xf32>
    %89 = vector.broadcast %6 : vector<1x32x1xf32> to vector<7x32x128xf32>
    %90 = arith.mulf %89, %88 : vector<7x32x128xf32>
    %91 = arith.addf %87, %90 : vector<7x32x128xf32>
    %92 = vector.extract_strided_slice %80 {offsets = [0, 0, 384], sizes = [7, 32, 128], strides = [1, 1, 1]} : vector<7x32x512xf32> to vector<7x32x128xf32>
    %93 = vector.broadcast %8 : vector<1x32x1xf32> to vector<7x32x128xf32>
    %94 = arith.mulf %93, %92 : vector<7x32x128xf32>
    %95 = arith.addf %91, %94 : vector<7x32x128xf32>
    %c9_32 = arith.constant 9 : index
    %c0_33 = arith.constant 0 : index
    %c0_34 = arith.constant 0 : index
    %96 = vector.load %arg4[%c9_32, %c0_33, %c0_34] : memref<16x32x128xf32, #tpu.memory_space<vmem>>, vector<7x32x128xf32>
    tpu.vector_store %arg4[%c9_32, %c0_33, %c0_34], %95 {strides = array<i32>} : memref<16x32x128xf32, #tpu.memory_space<vmem>>, vector<7x32x128xf32>,
    return
  }
  func.func @transform_0(%arg0: i32) -> (i32, i32, i32) {
    %c0_i32 = arith.constant 0 : i32
    %c0_i32_0 = arith.constant 0 : i32
    %c0_i32_1 = arith.constant 0 : i32
    return %c0_i32, %arg0, %c0_i32_0 : i32, i32, i32
  }
  func.func @transform_1(%arg0: i32) -> (i32, i32) {
    %c0_i32 = arith.constant 0 : i32
    %c0_i32_0 = arith.constant 0 : i32
    return %arg0, %c0_i32 : i32, i32
  }
  func.func @transform_2(%arg0: i32) -> (i32, i32, i32) {
    %c0_i32 = arith.constant 0 : i32
    %c0_i32_0 = arith.constant 0 : i32
    %c0_i32_1 = arith.constant 0 : i32
    %c0_i32_2 = arith.constant 0 : i32
    return %c0_i32, %c0_i32_0, %c0_i32_1 : i32, i32, i32
  }
  func.func @transform_3(%arg0: i32) -> (i32, i32, i32) {
    %c0_i32 = arith.constant 0 : i32
    %c0_i32_0 = arith.constant 0 : i32
    %c0_i32_1 = arith.constant 0 : i32
    return %c0_i32, %arg0, %c0_i32_0 : i32, i32, i32
  }
}

</mosaic_0001>

<llo_original>
// kernel: elemental_linear.1
$region0: #{elemental_linear.1}
  #allocation0 [shape = 'u32[]', space=smem, size = 0x4, offset = 0x4, fixed_abs, tag = 'smem constant byte address 0x4 - core index']
  #allocation1 [shape = 'u32[72,128]{1,0:T(1,128)}', space=vmem, size = 0x9000, scoped, tag = 'internal scratch']
  %s0 = inlined_call_operand.vmem [shape: f32[16,64,128], index: 0, kind: input, shape index: {}]
  %s1 = inlined_call_operand.vmem [shape: f32[64,4], index: 1, kind: input, shape index: {}]
  %s2 = inlined_call_operand.vmem [shape: f32[4,128,512], index: 2, kind: input, shape index: {}]
  %s3 = inlined_call_operand.vmem [shape: f32[16,64,128], index: 3, kind: output, shape index: {}]
  %s4 = sld [smem:[#allocation0]]
  $region117: #{elemental_linear.1} parent=0
    _
  %s6 = ssub.s32 1, %s4
  %s7 = scalar_select 0, %s6, %s4
  $region1: #{elemental_linear.1} parent=0
    #allocation2 [shape = 'u8[524288]{0}', space=vmem, size = 0x80000, scoped, tag = 'input window, operand 0']
    #allocation3 [shape = 'u8[524288]{0}', space=vmem, size = 0x80000, scoped, tag = 'output window, operand 0']
    loop: start=0, step=1, limit=4
    $region2: #{elemental_linear.1} parent=1 // loop_pre_header
      _
    $region3: #{elemental_linear.1} parent=1 // loop_header
      %s9 = sphi 0, %s13
      %p10 = scmp.ge.s32.totalorder %s9, 4
      %s19 = sphi 0, %s21
      %s22 = sphi 0, %s19
      %s23 = sphi 0, %s22
      %s39 = sphi 0, %s23
      %s45 = sphi 0, %s47
      %s48 = sphi 0, %s45
      %s49 = sphi 0, %s48
      %s65 = sphi 0, %s49
      %s69 = sphi 0, %s69
      %s71 = sphi 0, %s69
      %s72 = sphi 0, %s71
      %s86 = sphi 0, %s72
      %s92 = sphi 0, %s94
      %s95 = sphi 0, %s92
      %s96 = sphi 0, %s95
      %s112 = sphi 0, %s96
    $region4: #{elemental_linear.1} parent=1 // loop_header_branch
      %12 = sbr.rel (%p10) target = $region8
    $region5: #{elemental_linear.1} parent=1 // loop_body
      %s14 = ssub.s32 %s9, 1
      %s15 = ssub.s32 %s9, 2
      %s16 = sadd.s32 %s9, 1
      %s17 = ssub.s32 %s9, %s16
      %p18 = scmp.eq.s32.totalorder %s17, 0
      %s20 = sadd.s32 %s19, 1
      %s21 = scalar_select %p18, %s19, %s20
      %p24 = pneg %p18
      %p25 = scmp.eq.s32.totalorder %s9, 1
      %p26 = por %p24, %p25
      %p27 = scmp.ne.s32.totalorder %s19, %s22
      %p28 = scmp.eq.s32.totalorder %s9, 0
      %p29 = por %p27, %p28
      %p30 = scmp.ne.s32.totalorder %s19, %s22
      %p31 = scmp.eq.s32.totalorder %s14, 1
      %p32 = por %p30, %p31
      %p33 = scmp.ne.s32.totalorder %s22, %s23
      %p34 = scmp.eq.s32.totalorder %s14, 0
      %p35 = por %p33, %p34
      %p36 = scmp.ne.s32.totalorder %s22, %s23
      %p37 = scmp.eq.s32.totalorder %s15, 1
      %p38 = por %p36, %p37
      %p40 = scmp.ne.s32.totalorder %s23, %s39
      %p41 = scmp.eq.s32.totalorder %s15, 0
      %p42 = por %p40, %p41
      %s43 = ssub.s32 %s9, %s16
      %p44 = scmp.eq.s32.totalorder %s43, 0
      %s46 = sadd.s32 %s45, 1
      %s47 = scalar_select %p44, %s45, %s46
      %p50 = pneg %p44
      %p51 = scmp.eq.s32.totalorder %s9, 1
      %p52 = por %p50, %p51
      %p53 = scmp.ne.s32.totalorder %s45, %s48
      %p54 = scmp.eq.s32.totalorder %s9, 0
      %p55 = por %p53, %p54
      %p56 = scmp.ne.s32.totalorder %s45, %s48
      %p57 = scmp.eq.s32.totalorder %s14, 1
      %p58 = por %p56, %p57
      %p59 = scmp.ne.s32.totalorder %s48, %s49
      %p60 = scmp.eq.s32.totalorder %s14, 0
      %p61 = por %p59, %p60
      %p62 = scmp.ne.s32.totalorder %s48, %s49
      %p63 = scmp.eq.s32.totalorder %s15, 1
      %p64 = por %p62, %p63
      %p66 = scmp.ne.s32.totalorder %s49, %s65
      %p67 = scmp.eq.s32.totalorder %s15, 0
      %p68 = por %p66, %p67
      %s70 = sadd.s32 %s69, 1
      %p73 = scmp.eq.s32.totalorder %s9, 1
      %p74 = scmp.ne.s32.totalorder %s69, %s71
      %p75 = scmp.eq.s32.totalorder %s9, 0
      %p76 = por %p74, %p75
      %p77 = scmp.ne.s32.totalorder %s69, %s71
      %p78 = scmp.eq.s32.totalorder %s14, 1
      %p79 = por %p77, %p78
      %p80 = scmp.ne.s32.totalorder %s71, %s72
      %p81 = scmp.eq.s32.totalorder %s14, 0
      %p82 = por %p80, %p81
      %p83 = scmp.ne.s32.totalorder %s71, %s72
      %p84 = scmp.eq.s32.totalorder %s15, 1
      %p85 = por %p83, %p84
      %p87 = scmp.ne.s32.totalorder %s72, %s86
      %p88 = scmp.eq.s32.totalorder %s15, 0
      %p89 = por %p87, %p88
      %s90 = ssub.s32 %s9, %s16
      %p91 = scmp.eq.s32.totalorder %s90, 0
      %s93 = sadd.s32 %s92, 1
      %s94 = scalar_select %p91, %s92, %s93
      %p97 = pneg %p91
      %p98 = scmp.eq.s32.totalorder %s9, 1
      %p99 = por %p97, %p98
      %p100 = scmp.ne.s32.totalorder %s92, %s95
      %p101 = scmp.eq.s32.totalorder %s9, 0
      %p102 = por %p100, %p101
      %p103 = scmp.ne.s32.totalorder %s92, %s95
      %p104 = scmp.eq.s32.totalorder %s14, 1
      %p105 = por %p103, %p104
      %p106 = scmp.ne.s32.totalorder %s95, %s96
      %p107 = scmp.eq.s32.totalorder %s14, 0
      %p108 = por %p106, %p107
      %p109 = scmp.ne.s32.totalorder %s95, %s96
      %p110 = scmp.eq.s32.totalorder %s15, 1
      %p111 = por %p109, %p110
      %p113 = scmp.ne.s32.totalorder %s96, %s112
      %p114 = scmp.eq.s32.totalorder %s15, 0
      %p115 = por %p113, %p114
      %p116 = scmp.le.s32.totalorder 1, %s9
      %p117 = scmp.lt.s32.totalorder %s9, 3
      %p118 = pnand %p116, %p117
      %p119 = pneg %p118
      // Predicated region
      $region9: #{elemental_linear.1} parent=5 // pred_check
        _
      $region10: #{elemental_linear.1} parent=5 // pred_check_branch
        %121 = sbr.rel (%p118) target = $region12
      $region11: #{elemental_linear.1} parent=5 // pred_region
        %s122 = ssub.s32 %s9, 1
        // Predicated region
        $region13: #{elemental_linear.1} parent=11 // pred_check
          %p123 = pneg %p82
        $region14: #{elemental_linear.1} parent=11 // pred_check_branch
          %125 = sbr.rel (%p123) target = $region16
        $region15: #{elemental_linear.1} parent=11 // pred_region
          _
        $region16: #{elemental_linear.1} parent=11 // pred_fallthru
          _
      $region12: #{elemental_linear.1} parent=5 // pred_fallthru
        _
      %p126 = scmp.lt.s32.totalorder %s9, 2
      // Predicated region
      $region17: #{elemental_linear.1} parent=5 // pred_check
        %p127 = pneg %p126
      $region18: #{elemental_linear.1} parent=5 // pred_check_branch
        %129 = sbr.rel (%p127) target = $region20
      $region19: #{elemental_linear.1} parent=5 // pred_region
        // Predicated region
        $region21: #{elemental_linear.1} parent=19 // pred_check
          %p130 = pneg %p29
        $region22: #{elemental_linear.1} parent=19 // pred_check_branch
          %132 = sbr.rel (%p130) target = $region24
        $region23: #{elemental_linear.1} parent=19 // pred_region
          %s133 = sand.u32 %s19, 1
          %s134 = sand.u32 %s19, 1
          %s135 = smul.addr %s134, 512
          %s136 = scalar_lea.vmem [#allocation2], %s135
          %s137 = smul.u32 4, %s9
          %s138 = smul.addr %s137, 8
          %s139 = scalar_lea.vmem %s0, %s138
          // Predicated region
          $region25: #{elemental_linear.1} parent=23 // pred_check
            _
          $region26: #{elemental_linear.1} parent=23 // pred_check_branch
            %141 = sbr.rel (0) target = $region28
          $region27: #{elemental_linear.1} parent=23 // pred_region
            // Predicated region
            $region29: #{elemental_linear.1} parent=27 // pred_check
              _
            $region30: #{elemental_linear.1} parent=27 // pred_check_branch
              %143 = sbr.rel (0) target = $region32
            $region31: #{elemental_linear.1} parent=27 // pred_region
              // Predicated region
              $region44: #{elemental_linear.1} parent=31 // pred_check
                _
              $region45: #{elemental_linear.1} parent=31 // pred_check_branch
                %285 = sbr.rel (0) target = $region47
              $region46: #{elemental_linear.1} parent=31 // pred_region
                loop: start=0, step=1, limit=1
                $region48: #{elemental_linear.1} parent=46 // loop_pre_header
                  _
                $region49: #{elemental_linear.1} parent=46 // loop_header
                  %s287 = sphi 0, %s291
                  %p288 = scmp.ge.s32.totalorder %s287, 1
                  %s292 = sphi %s139, %s139
                  %s293 = sphi %s136, %s136
                $region50: #{elemental_linear.1} parent=46 // loop_header_branch
                  %290 = sbr.rel (%p288) target = $region54
                $region51: #{elemental_linear.1} parent=46 // loop_body
                  %v294 = vld [vmem:[%s292] sm:$0xff]
                  %295 = vst [vmem:[%s293] sm:$0xff] %v294
                  %v296 = vld [vmem:[%s292 + $0x8] sm:$0xff]
                  %297 = vst [vmem:[%s293 + $0x8] sm:$0xff] %v296
                  %v298 = vld [vmem:[%s292 + $0x10] sm:$0xff]
                  %299 = vst [vmem:[%s293 + $0x10] sm:$0xff] %v298
                  %v300 = vld [vmem:[%s292 + $0x18] sm:$0xff]
                  %301 = vst [vmem:[%s293 + $0x18] sm:$0xff] %v300
                  %v302 = vld [vmem:[%s292 + $0x40] sm:$0xff]
                  %303 = vst [vmem:[%s293 + $0x20] sm:$0xff] %v302
                  %v304 = vld [vmem:[%s292 + $0x48] sm:$0xff]
                  %305 = vst [vmem:[%s293 + $0x28] sm:$0xff] %v304
                  %v306 = vld [vmem:[%s292 + $0x50] sm:$0xff]
                  %307 = vst [vmem:[%s293 + $0x30] sm:$0xff] %v306
                  %v308 = vld [vmem:[%s292 + $0x58] sm:$0xff]
                  %309 = vst [vmem:[%s293 + $0x38] sm:$0xff] %v308
                  %v310 = vld [vmem:[%s292 + $0x80] sm:$0xff]
                  %311 = vst [vmem:[%s293 + $0x40] sm:$0xff] %v310
                  %v312 = vld [vmem:[%s292 + $0x88] sm:$0xff]
                  %313 = vst [vmem:[%s293 + $0x48] sm:$0xff] %v312
                  %v314 = vld [vmem:[%s292 + $0x90] sm:$0xff]
                  %315 = vst [vmem:[%s293 + $0x50] sm:$0xff] %v314
                  %v316 = vld [vmem:[%s292 + $0x98] sm:$0xff]
                  %317 = vst [vmem:[%s293 + $0x58] sm:$0xff] %v316
                  %v318 = vld [vmem:[%s292 + $0xc0] sm:$0xff]
                  %319 = vst [vmem:[%s293 + $0x60] sm:$0xff] %v318
                  %v320 = vld [vmem:[%s292 + $0xc8] sm:$0xff]
                  %321 = vst [vmem:[%s293 + $0x68] sm:$0xff] %v320
                  %v322 = vld [vmem:[%s292 + $0xd0] sm:$0xff]
                  %323 = vst [vmem:[%s293 + $0x70] sm:$0xff] %v322
                  %v324 = vld [vmem:[%s292 + $0xd8] sm:$0xff]
                  %325 = vst [vmem:[%s293 + $0x78] sm:$0xff] %v324
                  %v326 = vld [vmem:[%s292 + $0x100] sm:$0xff]
                  %327 = vst [vmem:[%s293 + $0x80] sm:$0xff] %v326
                  %v328 = vld [vmem:[%s292 + $0x108] sm:$0xff]
                  %329 = vst [vmem:[%s293 + $0x88] sm:$0xff] %v328
                  %v330 = vld [vmem:[%s292 + $0x110] sm:$0xff]
                  %331 = vst [vmem:[%s293 + $0x90] sm:$0xff] %v330
                  %v332 = vld [vmem:[%s292 + $0x118] sm:$0xff]
                  %333 = vst [vmem:[%s293 + $0x98] sm:$0xff] %v332
                  %v334 = vld [vmem:[%s292 + $0x140] sm:$0xff]
                  %335 = vst [vmem:[%s293 + $0xa0] sm:$0xff] %v334
                  %v336 = vld [vmem:[%s292 + $0x148] sm:$0xff]
                  %337 = vst [vmem:[%s293 + $0xa8] sm:$0xff] %v336
                  %v338 = vld [vmem:[%s292 + $0x150] sm:$0xff]
                  %339 = vst [vmem:[%s293 + $0xb0] sm:$0xff] %v338
                  %v340 = vld [vmem:[%s292 + $0x158] sm:$0xff]
                  %341 = vst [vmem:[%s293 + $0xb8] sm:$0xff] %v340
                  %v342 = vld [vmem:[%s292 + $0x180] sm:$0xff]
                  %343 = vst [vmem:[%s293 + $0xc0] sm:$0xff] %v342
                  %v344 = vld [vmem:[%s292 + $0x188] sm:$0xff]
                  %345 = vst [vmem:[%s293 + $0xc8] sm:$0xff] %v344
                  %v346 = vld [vmem:[%s292 + $0x190] sm:$0xff]
                  %347 = vst [vmem:[%s293 + $0xd0] sm:$0xff] %v346
                  %v348 = vld [vmem:[%s292 + $0x198] sm:$0xff]
                  %349 = vst [vmem:[%s293 + $0xd8] sm:$0xff] %v348
                  %v350 = vld [vmem:[%s292 + $0x1c0] sm:$0xff]
                  %351 = vst [vmem:[%s293 + $0xe0] sm:$0xff] %v350
                  %v352 = vld [vmem:[%s292 + $0x1c8] sm:$0xff]
                  %353 = vst [vmem:[%s293 + $0xe8] sm:$0xff] %v352
                  %v354 = vld [vmem:[%s292 + $0x1d0] sm:$0xff]
                  %355 = vst [vmem:[%s293 + $0xf0] sm:$0xff] %v354
                  %v356 = vld [vmem:[%s292 + $0x1d8] sm:$0xff]
                  %357 = vst [vmem:[%s293 + $0xf8] sm:$0xff] %v356
                  %v358 = vld [vmem:[%s292 + $0x200] sm:$0xff]
                  %359 = vst [vmem:[%s293 + $0x100] sm:$0xff] %v358
                  %v360 = vld [vmem:[%s292 + $0x208] sm:$0xff]
                  %361 = vst [vmem:[%s293 + $0x108] sm:$0xff] %v360
                  %v362 = vld [vmem:[%s292 + $0x210] sm:$0xff]
                  %363 = vst [vmem:[%s293 + $0x110] sm:$0xff] %v362
                  %v364 = vld [vmem:[%s292 + $0x218] sm:$0xff]
                  %365 = vst [vmem:[%s293 + $0x118] sm:$0xff] %v364
                  %v366 = vld [vmem:[%s292 + $0x240] sm:$0xff]
                  %367 = vst [vmem:[%s293 + $0x120] sm:$0xff] %v366
                  %v368 = vld [vmem:[%s292 + $0x248] sm:$0xff]
                  %369 = vst [vmem:[%s293 + $0x128] sm:$0xff] %v368
                  %v370 = vld [vmem:[%s292 + $0x250] sm:$0xff]
                  %371 = vst [vmem:[%s293 + $0x130] sm:$0xff] %v370
                  %v372 = vld [vmem:[%s292 + $0x258] sm:$0xff]
                  %373 = vst [vmem:[%s293 + $0x138] sm:$0xff] %v372
                  %v374 = vld [vmem:[%s292 + $0x280] sm:$0xff]
                  %375 = vst [vmem:[%s293 + $0x140] sm:$0xff] %v374
                  %v376 = vld [vmem:[%s292 + $0x288] sm:$0xff]
                  %377 = vst [vmem:[%s293 + $0x148] sm:$0xff] %v376
                  %v378 = vld [vmem:[%s292 + $0x290] sm:$0xff]
                  %379 = vst [vmem:[%s293 + $0x150] sm:$0xff] %v378
                  %v380 = vld [vmem:[%s292 + $0x298] sm:$0xff]
                  %381 = vst [vmem:[%s293 + $0x158] sm:$0xff] %v380
                  %v382 = vld [vmem:[%s292 + $0x2c0] sm:$0xff]
                  %383 = vst [vmem:[%s293 + $0x160] sm:$0xff] %v382
                  %v384 = vld [vmem:[%s292 + $0x2c8] sm:$0xff]
                  %385 = vst [vmem:[%s293 + $0x168] sm:$0xff] %v384
                  %v386 = vld [vmem:[%s292 + $0x2d0] sm:$0xff]
                  %387 = vst [vmem:[%s293 + $0x170] sm:$0xff] %v386
                  %v388 = vld [vmem:[%s292 + $0x2d8] sm:$0xff]
                  %389 = vst [vmem:[%s293 + $0x178] sm:$0xff] %v388
                  %v390 = vld [vmem:[%s292 + $0x300] sm:$0xff]
                  %391 = vst [vmem:[%s293 + $0x180] sm:$0xff] %v390
                  %v392 = vld [vmem:[%s292 + $0x308] sm:$0xff]
                  %393 = vst [vmem:[%s293 + $0x188] sm:$0xff] %v392
                  %v394 = vld [vmem:[%s292 + $0x310] sm:$0xff]
                  %395 = vst [vmem:[%s293 + $0x190] sm:$0xff] %v394
                  %v396 = vld [vmem:[%s292 + $0x318] sm:$0xff]
                  %397 = vst [vmem:[%s293 + $0x198] sm:$0xff] %v396
                  %v398 = vld [vmem:[%s292 + $0x340] sm:$0xff]
                  %399 = vst [vmem:[%s293 + $0x1a0] sm:$0xff] %v398
                  %v400 = vld [vmem:[%s292 + $0x348] sm:$0xff]
                  %401 = vst [vmem:[%s293 + $0x1a8] sm:$0xff] %v400
                  %v402 = vld [vmem:[%s292 + $0x350] sm:$0xff]
                  %403 = vst [vmem:[%s293 + $0x1b0] sm:$0xff] %v402
                  %v404 = vld [vmem:[%s292 + $0x358] sm:$0xff]
                  %405 = vst [vmem:[%s293 + $0x1b8] sm:$0xff] %v404
                  %v406 = vld [vmem:[%s292 + $0x380] sm:$0xff]
                  %407 = vst [vmem:[%s293 + $0x1c0] sm:$0xff] %v406
                  %v408 = vld [vmem:[%s292 + $0x388] sm:$0xff]
                  %409 = vst [vmem:[%s293 + $0x1c8] sm:$0xff] %v408
                  %v410 = vld [vmem:[%s292 + $0x390] sm:$0xff]
                  %411 = vst [vmem:[%s293 + $0x1d0] sm:$0xff] %v410
                  %v412 = vld [vmem:[%s292 + $0x398] sm:$0xff]
                  %413 = vst [vmem:[%s293 + $0x1d8] sm:$0xff] %v412
                  %v414 = vld [vmem:[%s292 + $0x3c0] sm:$0xff]
                  %415 = vst [vmem:[%s293 + $0x1e0] sm:$0xff] %v414
                  %v416 = vld [vmem:[%s292 + $0x3c8] sm:$0xff]
                  %417 = vst [vmem:[%s293 + $0x1e8] sm:$0xff] %v416
                  %v418 = vld [vmem:[%s292 + $0x3d0] sm:$0xff]
                  %419 = vst [vmem:[%s293 + $0x1f0] sm:$0xff] %v418
                  %v420 = vld [vmem:[%s292 + $0x3d8] sm:$0xff]
                  %421 = vst [vmem:[%s293 + $0x1f8] sm:$0xff] %v420
                $region52: #{elemental_linear.1} parent=46 // loop_footer
                  %s291 = sadd.s32 1, %s287
                $region53: #{elemental_linear.1} parent=46 // loop_footer_branch
                  %286 = sbr.rel target = $region49
                $region54: #{elemental_linear.1} parent=46 // loop_exit
                  _
              $region47: #{elemental_linear.1} parent=31 // pred_fallthru
                _
              // Predicated region
              $region55: #{elemental_linear.1} parent=31 // pred_check
                _
              $region56: #{elemental_linear.1} parent=31 // pred_check_branch
                %423 = sbr.rel target = $region58
              $region57: #{elemental_linear.1} parent=31 // pred_region
                _
              $region58: #{elemental_linear.1} parent=31 // pred_fallthru
                _
            $region32: #{elemental_linear.1} parent=27 // pred_fallthru
              _
            // Predicated region
            $region33: #{elemental_linear.1} parent=27 // pred_check
              _
            $region34: #{elemental_linear.1} parent=27 // pred_check_branch
              %145 = sbr.rel target = $region36
            $region35: #{elemental_linear.1} parent=27 // pred_region
              %s147 = ssub.s32 256, 1
              loop: start=0, step=1, limit=1
              $region37: #{elemental_linear.1} parent=35 // loop_pre_header
                _
              $region38: #{elemental_linear.1} parent=35 // loop_header
                %s149 = sphi 0, %s153
                %p150 = scmp.ge.s32.totalorder %s149, 1
                %s154 = sphi %s139, %s139
                %s155 = sphi %s136, %s136
              $region39: #{elemental_linear.1} parent=35 // loop_header_branch
                %152 = sbr.rel (%p150) target = $region43
              $region40: #{elemental_linear.1} parent=35 // loop_body
                %v156 = vld [vmem:[%s154] sm:%s147]
                %157 = vst [vmem:[%s155] sm:%s147] %v156
                %v158 = vld [vmem:[%s154 + $0x8] sm:%s147]
                %159 = vst [vmem:[%s155 + $0x8] sm:%s147] %v158
                %v160 = vld [vmem:[%s154 + $0x10] sm:%s147]
                %161 = vst [vmem:[%s155 + $0x10] sm:%s147] %v160
                %v162 = vld [vmem:[%s154 + $0x18] sm:%s147]
                %163 = vst [vmem:[%s155 + $0x18] sm:%s147] %v162
                %v164 = vld [vmem:[%s154 + $0x40] sm:%s147]
                %165 = vst [vmem:[%s155 + $0x20] sm:%s147] %v164
                %v166 = vld [vmem:[%s154 + $0x48] sm:%s147]
                %167 = vst [vmem:[%s155 + $0x28] sm:%s147] %v166
                %v168 = vld [vmem:[%s154 + $0x50] sm:%s147]
                %169 = vst [vmem:[%s155 + $0x30] sm:%s147] %v168
                %v170 = vld [vmem:[%s154 + $0x58] sm:%s147]
                %171 = vst [vmem:[%s155 + $0x38] sm:%s147] %v170
                %v172 = vld [vmem:[%s154 + $0x80] sm:%s147]
                %173 = vst [vmem:[%s155 + $0x40] sm:%s147] %v172
                %v174 = vld [vmem:[%s154 + $0x88] sm:%s147]
                %175 = vst [vmem:[%s155 + $0x48] sm:%s147] %v174
                %v176 = vld [vmem:[%s154 + $0x90] sm:%s147]
                %177 = vst [vmem:[%s155 + $0x50] sm:%s147] %v176
                %v178 = vld [vmem:[%s154 + $0x98] sm:%s147]
                %179 = vst [vmem:[%s155 + $0x58] sm:%s147] %v178
                %v180 = vld [vmem:[%s154 + $0xc0] sm:%s147]
                %181 = vst [vmem:[%s155 + $0x60] sm:%s147] %v180
                %v182 = vld [vmem:[%s154 + $0xc8] sm:%s147]
                %183 = vst [vmem:[%s155 + $0x68] sm:%s147] %v182
                %v184 = vld [vmem:[%s154 + $0xd0] sm:%s147]
                %185 = vst [vmem:[%s155 + $0x70] sm:%s147] %v184
                %v186 = vld [vmem:[%s154 + $0xd8] sm:%s147]
                %187 = vst [vmem:[%s155 + $0x78] sm:%s147] %v186
                %v188 = vld [vmem:[%s154 + $0x100] sm:%s147]
                %189 = vst [vmem:[%s155 + $0x80] sm:%s147] %v188
                %v190 = vld [vmem:[%s154 + $0x108] sm:%s147]
                %191 = vst [vmem:[%s155 + $0x88] sm:%s147] %v190
                %v192 = vld [vmem:[%s154 + $0x110] sm:%s147]
                %193 = vst [vmem:[%s155 + $0x90] sm:%s147] %v192
                %v194 = vld [vmem:[%s154 + $0x118] sm:%s147]
                %195 = vst [vmem:[%s155 + $0x98] sm:%s147] %v194
                %v196 = vld [vmem:[%s154 + $0x140] sm:%s147]
                %197 = vst [vmem:[%s155 + $0xa0] sm:%s147] %v196
                %v198 = vld [vmem:[%s154 + $0x148] sm:%s147]
                %199 = vst [vmem:[%s155 + $0xa8] sm:%s147] %v198
                %v200 = vld [vmem:[%s154 + $0x150] sm:%s147]
                %201 = vst [vmem:[%s155 + $0xb0] sm:%s147] %v200
                %v202 = vld [vmem:[%s154 + $0x158] sm:%s147]
                %203 = vst [vmem:[%s155 + $0xb8] sm:%s147] %v202
                %v204 = vld [vmem:[%s154 + $0x180] sm:%s147]
                %205 = vst [vmem:[%s155 + $0xc0] sm:%s147] %v204
                %v206 = vld [vmem:[%s154 + $0x188] sm:%s147]
                %207 = vst [vmem:[%s155 + $0xc8] sm:%s147] %v206
                %v208 = vld [vmem:[%s154 + $0x190] sm:%s147]
                %209 = vst [vmem:[%s155 + $0xd0] sm:%s147] %v208
                %v210 = vld [vmem:[%s154 + $0x198] sm:%s147]
                %211 = vst [vmem:[%s155 + $0xd8] sm:%s147] %v210
                %v212 = vld [vmem:[%s154 + $0x1c0] sm:%s147]
                %213 = vst [vmem:[%s155 + $0xe0] sm:%s147] %v212
                %v214 = vld [vmem:[%s154 + $0x1c8] sm:%s147]
                %215 = vst [vmem:[%s155 + $0xe8] sm:%s147] %v214
                %v216 = vld [vmem:[%s154 + $0x1d0] sm:%s147]
                %217 = vst [vmem:[%s155 + $0xf0] sm:%s147] %v216
                %v218 = vld [vmem:[%s154 + $0x1d8] sm:%s147]
                %219 = vst [vmem:[%s155 + $0xf8] sm:%s147] %v218
                %v220 = vld [vmem:[%s154 + $0x200] sm:%s147]
                %221 = vst [vmem:[%s155 + $0x100] sm:%s147] %v220
                %v222 = vld [vmem:[%s154 + $0x208] sm:%s147]
                %223 = vst [vmem:[%s155 + $0x108] sm:%s147] %v222
                %v224 = vld [vmem:[%s154 + $0x210] sm:%s147]
                %225 = vst [vmem:[%s155 + $0x110] sm:%s147] %v224
                %v226 = vld [vmem:[%s154 + $0x218] sm:%s147]
                %227 = vst [vmem:[%s155 + $0x118] sm:%s147] %v226
                %v228 = vld [vmem:[%s154 + $0x240] sm:%s147]
                %229 = vst [vmem:[%s155 + $0x120] sm:%s147] %v228
                %v230 = vld [vmem:[%s154 + $0x248] sm:%s147]
                %231 = vst [vmem:[%s155 + $0x128] sm:%s147] %v230
                %v232 = vld [vmem:[%s154 + $0x250] sm:%s147]
                %233 = vst [vmem:[%s155 + $0x130] sm:%s147] %v232
                %v234 = vld [vmem:[%s154 + $0x258] sm:%s147]
                %235 = vst [vmem:[%s155 + $0x138] sm:%s147] %v234
                %v236 = vld [vmem:[%s154 + $0x280] sm:%s147]
                %237 = vst [vmem:[%s155 + $0x140] sm:%s147] %v236
                %v238 = vld [vmem:[%s154 + $0x288] sm:%s147]
                %239 = vst [vmem:[%s155 + $0x148] sm:%s147] %v238
                %v240 = vld [vmem:[%s154 + $0x290] sm:%s147]
                %241 = vst [vmem:[%s155 + $0x150] sm:%s147] %v240
                %v242 = vld [vmem:[%s154 + $0x298] sm:%s147]
                %243 = vst [vmem:[%s155 + $0x158] sm:%s147] %v242
                %v244 = vld [vmem:[%s154 + $0x2c0] sm:%s147]
                %245 = vst [vmem:[%s155 + $0x160] sm:%s147] %v244
                %v246 = vld [vmem:[%s154 + $0x2c8] sm:%s147]
                %247 = vst [vmem:[%s155 + $0x168] sm:%s147] %v246
                %v248 = vld [vmem:[%s154 + $0x2d0] sm:%s147]
                %249 = vst [vmem:[%s155 + $0x170] sm:%s147] %v248
                %v250 = vld [vmem:[%s154 + $0x2d8] sm:%s147]
                %251 = vst [vmem:[%s155 + $0x178] sm:%s147] %v250
                %v252 = vld [vmem:[%s154 + $0x300] sm:%s147]
                %253 = vst [vmem:[%s155 + $0x180] sm:%s147] %v252
                %v254 = vld [vmem:[%s154 + $0x308] sm:%s147]
                %255 = vst [vmem:[%s155 + $0x188] sm:%s147] %v254
                %v256 = vld [vmem:[%s154 + $0x310] sm:%s147]
                %257 = vst [vmem:[%s155 + $0x190] sm:%s147] %v256
                %v258 = vld [vmem:[%s154 + $0x318] sm:%s147]
                %259 = vst [vmem:[%s155 + $0x198] sm:%s147] %v258
                %v260 = vld [vmem:[%s154 + $0x340] sm:%s147]
                %261 = vst [vmem:[%s155 + $0x1a0] sm:%s147] %v260
                %v262 = vld [vmem:[%s154 + $0x348] sm:%s147]
                %263 = vst [vmem:[%s155 + $0x1a8] sm:%s147] %v262
                %v264 = vld [vmem:[%s154 + $0x350] sm:%s147]
                %265 = vst [vmem:[%s155 + $0x1b0] sm:%s147] %v264
                %v266 = vld [vmem:[%s154 + $0x358] sm:%s147]
                %267 = vst [vmem:[%s155 + $0x1b8] sm:%s147] %v266
                %v268 = vld [vmem:[%s154 + $0x380] sm:%s147]
                %269 = vst [vmem:[%s155 + $0x1c0] sm:%s147] %v268
                %v270 = vld [vmem:[%s154 + $0x388] sm:%s147]
                %271 = vst [vmem:[%s155 + $0x1c8] sm:%s147] %v270
                %v272 = vld [vmem:[%s154 + $0x390] sm:%s147]
                %273 = vst [vmem:[%s155 + $0x1d0] sm:%s147] %v272
                %v274 = vld [vmem:[%s154 + $0x398] sm:%s147]
                %275 = vst [vmem:[%s155 + $0x1d8] sm:%s147] %v274
                %v276 = vld [vmem:[%s154 + $0x3c0] sm:%s147]
                %277 = vst [vmem:[%s155 + $0x1e0] sm:%s147] %v276
                %v278 = vld [vmem:[%s154 + $0x3c8] sm:%s147]
                %279 = vst [vmem:[%s155 + $0x1e8] sm:%s147] %v278
                %v280 = vld [vmem:[%s154 + $0x3d0] sm:%s147]
                %281 = vst [vmem:[%s155 + $0x1f0] sm:%s147] %v280
                %v282 = vld [vmem:[%s154 + $0x3d8] sm:%s147]
                %283 = vst [vmem:[%s155 + $0x1f8] sm:%s147] %v282
              $region41: #{elemental_linear.1} parent=35 // loop_footer
                %s153 = sadd.s32 1, %s149
              $region42: #{elemental_linear.1} parent=35 // loop_footer_branch
                %148 = sbr.rel target = $region38
              $region43: #{elemental_linear.1} parent=35 // loop_exit
                _
            $region36: #{elemental_linear.1} parent=27 // pred_fallthru
              _
          $region28: #{elemental_linear.1} parent=23 // pred_fallthru
            _
          %424 = vnop
        $region24: #{elemental_linear.1} parent=19 // pred_fallthru
          _
        // Predicated region
        $region59: #{elemental_linear.1} parent=19 // pred_check
          %p425 = pneg %p55
        $region60: #{elemental_linear.1} parent=19 // pred_check_branch
          %427 = sbr.rel (%p425) target = $region62
        $region61: #{elemental_linear.1} parent=19 // pred_region
          %s428 = smul.u32 4, %s9
          %p429 = scmp.lt.s32.totalorder %s428, 7
          %s430 = scalar_select %p429, %s428, 7
          %s431 = smul.addr %s430, 8
          %s432 = scalar_lea.vmem %s1, %s431
          %s433 = smul.u32 4, %s9
        $region62: #{elemental_linear.1} parent=19 // pred_fallthru
          _
      $region20: #{elemental_linear.1} parent=5 // pred_fallthru
        _
      %p434 = scmp.le.s32.totalorder 1, %s9
      %p435 = scmp.lt.s32.totalorder %s9, 3
      %p436 = pnand %p434, %p435
      %p437 = pneg %p436
      // Predicated region
      $region63: #{elemental_linear.1} parent=5 // pred_check
        _
      $region64: #{elemental_linear.1} parent=5 // pred_check_branch
        %439 = sbr.rel (%p436) target = $region66
      $region65: #{elemental_linear.1} parent=5 // pred_region
        %s440 = ssub.s32 %s9, 1
        %s441 = sand.u32 %s22, 1
        %s442 = sand.u32 %s22, 1
        %s443 = smul.addr %s442, 512
        %s444 = scalar_lea.vmem [#allocation2], %s443
        // Predicated region
        $region67: #{elemental_linear.1} parent=65 // pred_check
          %p445 = pneg %p35
        $region68: #{elemental_linear.1} parent=65 // pred_check_branch
          %447 = sbr.rel (%p445) target = $region70
        $region69: #{elemental_linear.1} parent=65 // pred_region
          _
        $region70: #{elemental_linear.1} parent=65 // pred_fallthru
          _
        %s448 = sand.u32 %s22, 1
        %s449 = sand.u32 %s22, 1
        %s450 = smul.addr %s449, 512
        %s451 = scalar_lea.vmem [#allocation2], %s450
        %p452 = pneg %p35
        %p453 = pneg %p32
        %s454 = smul.u32 4, %s14
        %p455 = scmp.lt.s32.totalorder %s454, 7
        %s456 = scalar_select %p455, %s454, 7
        %s457 = smul.addr %s456, 8
        %s458 = scalar_lea.vmem %s1, %s457
        %p459 = pneg %p61
        %p460 = pneg %p58
        %p461 = pneg %p82
        %p462 = pneg %p79
        %p463 = pneg %p108
        %p464 = pneg %p105
        %s465 = sand.u32 %s95, 1
        %s466 = sand.u32 %s95, 1
        %s467 = smul.addr %s466, 512
        %s468 = scalar_lea.vmem [#allocation3], %s467
        %s469 = smul.u32 4, %s14
        %s470 = smul.u32 4, %s14
        %p471 = scmp.lt.s32.totalorder %s470, 7
        %s472 = scalar_select %p471, %s470, 7
        %s473 = smul.addr %s472, 8
        %s474 = scalar_lea.vmem %s1, %s473
        %s475 = smul.u32 4, %s14
        %s476 = smul.u32 4, %s14
        %v477 = vld [vmem:[%s474] sm:$0xff]
        %v478 = vld [vmem:[%s474 + $0x8] sm:$0xff]
        %v479 = vld [vmem:[%s474 + $0x10] sm:$0xff]
        %v480 = vld [vmem:[%s474 + $0x18] sm:$0xff]
        %v481 = vld [vmem:[%s444] sm:$0xff]
        %v482 = vld [vmem:[%s444 + $0x8] sm:$0xff]
        %v483 = vld [vmem:[%s444 + $0x10] sm:$0xff]
        %v484 = vld [vmem:[%s444 + $0x18] sm:$0xff]
        %v485 = vld [vmem:[%s2] sm:$0xff]
        %v486 = vld [vmem:[%s2 + $0x8] sm:$0xff]
        %v487 = vld [vmem:[%s2 + $0x10] sm:$0xff]
        %v488 = vld [vmem:[%s2 + $0x18] sm:$0xff]
        %v489 = vld [vmem:[%s2 + $0x20] sm:$0xff]
        %v490 = vld [vmem:[%s2 + $0x28] sm:$0xff]
        %v491 = vld [vmem:[%s2 + $0x30] sm:$0xff]
        %v492 = vld [vmem:[%s2 + $0x38] sm:$0xff]
        %v493 = vld [vmem:[%s2 + $0x40] sm:$0xff]
        %v494 = vld [vmem:[%s2 + $0x48] sm:$0xff]
        %v495 = vld [vmem:[%s2 + $0x50] sm:$0xff]
        %v496 = vld [vmem:[%s2 + $0x58] sm:$0xff]
        %v497 = vld [vmem:[%s2 + $0x60] sm:$0xff]
        %v498 = vld [vmem:[%s2 + $0x68] sm:$0xff]
        %v499 = vld [vmem:[%s2 + $0x70] sm:$0xff]
        %v500 = vld [vmem:[%s2 + $0x78] sm:$0xff]
        %v501 = vld [vmem:[%s2 + $0x80] sm:$0xff]
        %v502 = vld [vmem:[%s2 + $0x88] sm:$0xff]
        %v503 = vld [vmem:[%s2 + $0x90] sm:$0xff]
        %v504 = vld [vmem:[%s2 + $0x98] sm:$0xff]
        %v505 = vld [vmem:[%s2 + $0xa0] sm:$0xff]
        %v506 = vld [vmem:[%s2 + $0xa8] sm:$0xff]
        %v507 = vld [vmem:[%s2 + $0xb0] sm:$0xff]
        %v508 = vld [vmem:[%s2 + $0xb8] sm:$0xff]
        %v509 = vld [vmem:[%s2 + $0xc0] sm:$0xff]
        %v510 = vld [vmem:[%s2 + $0xc8] sm:$0xff]
        %v511 = vld [vmem:[%s2 + $0xd0] sm:$0xff]
        %v512 = vld [vmem:[%s2 + $0xd8] sm:$0xff]
        %v513 = vld [vmem:[%s2 + $0xe0] sm:$0xff]
        %v514 = vld [vmem:[%s2 + $0xe8] sm:$0xff]
        %v515 = vld [vmem:[%s2 + $0xf0] sm:$0xff]
        %v516 = vld [vmem:[%s2 + $0xf8] sm:$0xff]
        %v517 = vld [vmem:[%s2 + $0x100] sm:$0xff]
        %v518 = vld [vmem:[%s2 + $0x108] sm:$0xff]
        %v519 = vld [vmem:[%s2 + $0x110] sm:$0xff]
        %v520 = vld [vmem:[%s2 + $0x118] sm:$0xff]
        %v521 = vld [vmem:[%s2 + $0x120] sm:$0xff]
        %v522 = vld [vmem:[%s2 + $0x128] sm:$0xff]
        %v523 = vld [vmem:[%s2 + $0x130] sm:$0xff]
        %v524 = vld [vmem:[%s2 + $0x138] sm:$0xff]
        %v525 = vld [vmem:[%s2 + $0x140] sm:$0xff]
        %v526 = vld [vmem:[%s2 + $0x148] sm:$0xff]
        %v527 = vld [vmem:[%s2 + $0x150] sm:$0xff]
        %v528 = vld [vmem:[%s2 + $0x158] sm:$0xff]
        %v529 = vld [vmem:[%s2 + $0x160] sm:$0xff]
        %v530 = vld [vmem:[%s2 + $0x168] sm:$0xff]
        %v531 = vld [vmem:[%s2 + $0x170] sm:$0xff]
        %v532 = vld [vmem:[%s2 + $0x178] sm:$0xff]
        %v533 = vld [vmem:[%s2 + $0x180] sm:$0xff]
        %v534 = vld [vmem:[%s2 + $0x188] sm:$0xff]
        %v535 = vld [vmem:[%s2 + $0x190] sm:$0xff]
        %v536 = vld [vmem:[%s2 + $0x198] sm:$0xff]
        %v537 = vld [vmem:[%s2 + $0x1a0] sm:$0xff]
        %v538 = vld [vmem:[%s2 + $0x1a8] sm:$0xff]
        %v539 = vld [vmem:[%s2 + $0x1b0] sm:$0xff]
        %v540 = vld [vmem:[%s2 + $0x1b8] sm:$0xff]
        %v541 = vld [vmem:[%s2 + $0x1c0] sm:$0xff]
        %v542 = vld [vmem:[%s2 + $0x1c8] sm:$0xff]
        %v543 = vld [vmem:[%s2 + $0x1d0] sm:$0xff]
        %v544 = vld [vmem:[%s2 + $0x1d8] sm:$0xff]
        %v545 = vld [vmem:[%s2 + $0x1e0] sm:$0xff]
        %v546 = vld [vmem:[%s2 + $0x1e8] sm:$0xff]
        %v547 = vld [vmem:[%s2 + $0x1f0] sm:$0xff]
        %v548 = vld [vmem:[%s2 + $0x1f8] sm:$0xff]
        %549 = vmatpush.msra.mxu0 %v545
        %550 = vmatpush.msra.mxu0 %v541
        %551 = vmatpush.msra.mxu0 %v537
        %552 = vmatpush.msra.mxu0 %v533
        %553 = vmatpush.msra.mxu0 %v529
        %554 = vmatpush.msra.mxu0 %v525
        %555 = vmatpush.msra.mxu0 %v521
        %556 = vmatpush.msra.mxu0 %v517
        %557 = vmatpush.msra.mxu0 %v513
        %558 = vmatpush.msra.mxu0 %v509
        %559 = vmatpush.msra.mxu0 %v505
        %560 = vmatpush.msra.mxu0 %v501
        %561 = vmatpush.msra.mxu0 %v497
        %562 = vmatpush.msra.mxu0 %v493
        %563 = vmatpush.msra.mxu0 %v489
        %564 = vmatpush.msra.mxu0 %v485
        %565 = vmatmul.f32.gmra.mxu0 %v481
        %v566 = vpop.f32.mrf.mxu0
        %v567 = vadd.f32 0.0, %v566
        %568 = vmatmul.f32.gmra.mxu0 %v482
        %v569 = vpop.f32.mrf.mxu0
        %v570 = vadd.f32 0.0, %v569
        %571 = vmatmul.f32.gmra.mxu0 %v483
        %v572 = vpop.f32.mrf.mxu0
        %v573 = vadd.f32 0.0, %v572
        %574 = vmatmul.f32.gmra.mxu0 %v484
        %v575 = vpop.f32.mrf.mxu0
        %v576 = vadd.f32 0.0, %v575
        %577 = vdwg.mxu0
        %578 = vmatpush.msra.mxu0 %v546
        %579 = vmatpush.msra.mxu0 %v542
        %580 = vmatpush.msra.mxu0 %v538
        %581 = vmatpush.msra.mxu0 %v534
        %582 = vmatpush.msra.mxu0 %v530
        %583 = vmatpush.msra.mxu0 %v526
        %584 = vmatpush.msra.mxu0 %v522
        %585 = vmatpush.msra.mxu0 %v518
        %586 = vmatpush.msra.mxu0 %v514
        %587 = vmatpush.msra.mxu0 %v510
        %588 = vmatpush.msra.mxu0 %v506
        %589 = vmatpush.msra.mxu0 %v502
        %590 = vmatpush.msra.mxu0 %v498
        %591 = vmatpush.msra.mxu0 %v494
        %592 = vmatpush.msra.mxu0 %v490
        %593 = vmatpush.msra.mxu0 %v486
        %594 = vmatmul.f32.gmra.mxu0 %v481
        %v595 = vpop.f32.mrf.mxu0
        %v596 = vadd.f32 0.0, %v595
        %597 = vmatmul.f32.gmra.mxu0 %v482
        %v598 = vpop.f32.mrf.mxu0
        %v599 = vadd.f32 0.0, %v598
        %600 = vmatmul.f32.gmra.mxu0 %v483
        %v601 = vpop.f32.mrf.mxu0
        %v602 = vadd.f32 0.0, %v601
        %603 = vmatmul.f32.gmra.mxu0 %v484
        %v604 = vpop.f32.mrf.mxu0
        %v605 = vadd.f32 0.0, %v604
        %606 = vdwg.mxu0
        %607 = vmatpush.msra.mxu0 %v547
        %608 = vmatpush.msra.mxu0 %v543
        %609 = vmatpush.msra.mxu0 %v539
        %610 = vmatpush.msra.mxu0 %v535
        %611 = vmatpush.msra.mxu0 %v531
        %612 = vmatpush.msra.mxu0 %v527
        %613 = vmatpush.msra.mxu0 %v523
        %614 = vmatpush.msra.mxu0 %v519
        %615 = vmatpush.msra.mxu0 %v515
        %616 = vmatpush.msra.mxu0 %v511
        %617 = vmatpush.msra.mxu0 %v507
        %618 = vmatpush.msra.mxu0 %v503
        %619 = vmatpush.msra.mxu0 %v499
        %620 = vmatpush.msra.mxu0 %v495
        %621 = vmatpush.msra.mxu0 %v491
        %622 = vmatpush.msra.mxu0 %v487
        %623 = vmatmul.f32.gmra.mxu0 %v481
        %v624 = vpop.f32.mrf.mxu0
        %v625 = vadd.f32 0.0, %v624
        %626 = vmatmul.f32.gmra.mxu0 %v482
        %v627 = vpop.f32.mrf.mxu0
        %v628 = vadd.f32 0.0, %v627
        %629 = vmatmul.f32.gmra.mxu0 %v483
        %v630 = vpop.f32.mrf.mxu0
        %v631 = vadd.f32 0.0, %v630
        %632 = vmatmul.f32.gmra.mxu0 %v484
        %v633 = vpop.f32.mrf.mxu0
        %v634 = vadd.f32 0.0, %v633
        %635 = vdwg.mxu0
        %636 = vmatpush.msra.mxu0 %v548
        %637 = vmatpush.msra.mxu0 %v544
        %638 = vmatpush.msra.mxu0 %v540
        %639 = vmatpush.msra.mxu0 %v536
        %640 = vmatpush.msra.mxu0 %v532
        %641 = vmatpush.msra.mxu0 %v528
        %642 = vmatpush.msra.mxu0 %v524
        %643 = vmatpush.msra.mxu0 %v520
        %644 = vmatpush.msra.mxu0 %v516
        %645 = vmatpush.msra.mxu0 %v512
        %646 = vmatpush.msra.mxu0 %v508
        %647 = vmatpush.msra.mxu0 %v504
        %648 = vmatpush.msra.mxu0 %v500
        %649 = vmatpush.msra.mxu0 %v496
        %650 = vmatpush.msra.mxu0 %v492
        %651 = vmatpush.msra.mxu0 %v488
        %652 = vmatmul.f32.gmra.mxu0 %v481
        %v653 = vpop.f32.mrf.mxu0
        %v654 = vadd.f32 0.0, %v653
        %655 = vmatmul.f32.gmra.mxu0 %v482
        %v656 = vpop.f32.mrf.mxu0
        %v657 = vadd.f32 0.0, %v656
        %658 = vmatmul.f32.gmra.mxu0 %v483
        %v659 = vpop.f32.mrf.mxu0
        %v660 = vadd.f32 0.0, %v659
        %661 = vmatmul.f32.gmra.mxu0 %v484
        %v662 = vpop.f32.mrf.mxu0
        %v663 = vadd.f32 0.0, %v662
        %664 = vdwg.mxu0
        %666 = vset.pattern.permute.xlu0 0
        %667 = vperm.xlu0 %666, %v477
        %v668 = vpop.permute.xlu0 %667
        %671 = vset.pattern.permute.xlu0 0
        %672 = vperm.xlu0 %671, %v478
        %v673 = vpop.permute.xlu0 %672
        %676 = vset.pattern.permute.xlu0 0
        %677 = vperm.xlu0 %676, %v479
        %v678 = vpop.permute.xlu0 %677
        %681 = vset.pattern.permute.xlu0 0
        %682 = vperm.xlu0 %681, %v480
        %v683 = vpop.permute.xlu0 %682
        %v685 = vmul.f32 %v668, %v567
        %v686 = vmul.f32 %v673, %v570
        %v687 = vmul.f32 %v678, %v573
        %v688 = vmul.f32 %v683, %v576
        %689 = vset.pattern.permute.xlu0 1
        %690 = vperm.xlu0 %689, %v477
        %v691 = vpop.permute.xlu0 %690
        %693 = vset.pattern.permute.xlu0 1
        %694 = vperm.xlu0 %693, %v478
        %v695 = vpop.permute.xlu0 %694
        %697 = vset.pattern.permute.xlu0 1
        %698 = vperm.xlu0 %697, %v479
        %v699 = vpop.permute.xlu0 %698
        %701 = vset.pattern.permute.xlu0 1
        %702 = vperm.xlu0 %701, %v480
        %v703 = vpop.permute.xlu0 %702
        %v705 = vmul.f32 %v691, %v596
        %v706 = vmul.f32 %v695, %v599
        %v707 = vmul.f32 %v699, %v602
        %v708 = vmul.f32 %v703, %v605
        %v709 = vadd.f32 %v685, %v705
        %v710 = vadd.f32 %v686, %v706
        %v711 = vadd.f32 %v687, %v707
        %v712 = vadd.f32 %v688, %v708
        %713 = vset.pattern.permute.xlu0 2
        %714 = vperm.xlu0 %713, %v477
        %v715 = vpop.permute.xlu0 %714
        %717 = vset.pattern.permute.xlu0 2
        %718 = vperm.xlu0 %717, %v478
        %v719 = vpop.permute.xlu0 %718
        %721 = vset.pattern.permute.xlu0 2
        %722 = vperm.xlu0 %721, %v479
        %v723 = vpop.permute.xlu0 %722
        %725 = vset.pattern.permute.xlu0 2
        %726 = vperm.xlu0 %725, %v480
        %v727 = vpop.permute.xlu0 %726
        %v729 = vmul.f32 %v715, %v625
        %v730 = vmul.f32 %v719, %v628
        %v731 = vmul.f32 %v723, %v631
        %v732 = vmul.f32 %v727, %v634
        %v733 = vadd.f32 %v709, %v729
        %v734 = vadd.f32 %v710, %v730
        %v735 = vadd.f32 %v711, %v731
        %v736 = vadd.f32 %v712, %v732
        %737 = vset.pattern.permute.xlu0 3
        %738 = vperm.xlu0 %737, %v477
        %v739 = vpop.permute.xlu0 %738
        %741 = vset.pattern.permute.xlu0 3
        %742 = vperm.xlu0 %741, %v478
        %v743 = vpop.permute.xlu0 %742
        %745 = vset.pattern.permute.xlu0 3
        %746 = vperm.xlu0 %745, %v479
        %v747 = vpop.permute.xlu0 %746
        %749 = vset.pattern.permute.xlu0 3
        %750 = vperm.xlu0 %749, %v480
        %v751 = vpop.permute.xlu0 %750
        %v753 = vmul.f32 %v739, %v654
        %v754 = vmul.f32 %v743, %v657
        %v755 = vmul.f32 %v747, %v660
        %v756 = vmul.f32 %v751, %v663
        %v757 = vadd.f32 %v733, %v753
        %v758 = vadd.f32 %v734, %v754
        %v759 = vadd.f32 %v735, %v755
        %v760 = vadd.f32 %v736, %v756
        %761 = vst [vmem:[%s468] sm:$0xff] %v757
        %762 = vst [vmem:[%s468 + $0x8] sm:$0xff] %v758
        %763 = vst [vmem:[%s468 + $0x10] sm:$0xff] %v759
        %764 = vst [vmem:[%s468 + $0x18] sm:$0xff] %v760
        %s765 = scalar_lea.vmem %s444, 32 [#allocation2]
        %v766 = vld [vmem:[%s765] sm:$0xff]
        %v767 = vld [vmem:[%s765 + $0x8] sm:$0xff]
        %v768 = vld [vmem:[%s765 + $0x10] sm:$0xff]
        %v769 = vld [vmem:[%s765 + $0x18] sm:$0xff]
        %v770 = vld [vmem:[%s765 + $0x20] sm:$0xff]
        %v771 = vld [vmem:[%s765 + $0x28] sm:$0xff]
        %v772 = vld [vmem:[%s765 + $0x30] sm:$0xff]
        %v773 = vld [vmem:[%s765 + $0x38] sm:$0xff]
        %v774 = vld [vmem:[%s765 + $0x40] sm:$0xff]
        %v775 = vld [vmem:[%s765 + $0x48] sm:$0xff]
        %v776 = vld [vmem:[%s765 + $0x50] sm:$0xff]
        %v777 = vld [vmem:[%s765 + $0x58] sm:$0xff]
        %s778 = scalar_lea.vmem %s2, 512
        %v779 = vld [vmem:[%s778] sm:$0xff]
        %v780 = vld [vmem:[%s778 + $0x8] sm:$0xff]
        %v781 = vld [vmem:[%s778 + $0x10] sm:$0xff]
        %v782 = vld [vmem:[%s778 + $0x18] sm:$0xff]
        %v783 = vld [vmem:[%s778 + $0x20] sm:$0xff]
        %v784 = vld [vmem:[%s778 + $0x28] sm:$0xff]
        %v785 = vld [vmem:[%s778 + $0x30] sm:$0xff]
        %v786 = vld [vmem:[%s778 + $0x38] sm:$0xff]
        %v787 = vld [vmem:[%s778 + $0x40] sm:$0xff]
        %v788 = vld [vmem:[%s778 + $0x48] sm:$0xff]
        %v789 = vld [vmem:[%s778 + $0x50] sm:$0xff]
        %v790 = vld [vmem:[%s778 + $0x58] sm:$0xff]
        %v791 = vld [vmem:[%s778 + $0x60] sm:$0xff]
        %v792 = vld [vmem:[%s778 + $0x68] sm:$0xff]
        %v793 = vld [vmem:[%s778 + $0x70] sm:$0xff]
        %v794 = vld [vmem:[%s778 + $0x78] sm:$0xff]
        %v795 = vld [vmem:[%s778 + $0x80] sm:$0xff]
        %v796 = vld [vmem:[%s778 + $0x88] sm:$0xff]
        %v797 = vld [vmem:[%s778 + $0x90] sm:$0xff]
        %v798 = vld [vmem:[%s778 + $0x98] sm:$0xff]
        %v799 = vld [vmem:[%s778 + $0xa0] sm:$0xff]
        %v800 = vld [vmem:[%s778 + $0xa8] sm:$0xff]
        %v801 = vld [vmem:[%s778 + $0xb0] sm:$0xff]
        %v802 = vld [vmem:[%s778 + $0xb8] sm:$0xff]
        %v803 = vld [vmem:[%s778 + $0xc0] sm:$0xff]
        %v804 = vld [vmem:[%s778 + $0xc8] sm:$0xff]
        %v805 = vld [vmem:[%s778 + $0xd0] sm:$0xff]
        %v806 = vld [vmem:[%s778 + $0xd8] sm:$0xff]
        %v807 = vld [vmem:[%s778 + $0xe0] sm:$0xff]
        %v808 = vld [vmem:[%s778 + $0xe8] sm:$0xff]
        %v809 = vld [vmem:[%s778 + $0xf0] sm:$0xff]
        %v810 = vld [vmem:[%s778 + $0xf8] sm:$0xff]
        %v811 = vld [vmem:[%s778 + $0x100] sm:$0xff]
        %v812 = vld [vmem:[%s778 + $0x108] sm:$0xff]
        %v813 = vld [vmem:[%s778 + $0x110] sm:$0xff]
        %v814 = vld [vmem:[%s778 + $0x118] sm:$0xff]
        %v815 = vld [vmem:[%s778 + $0x120] sm:$0xff]
        %v816 = vld [vmem:[%s778 + $0x128] sm:$0xff]
        %v817 = vld [vmem:[%s778 + $0x130] sm:$0xff]
        %v818 = vld [vmem:[%s778 + $0x138] sm:$0xff]
        %v819 = vld [vmem:[%s778 + $0x140] sm:$0xff]
        %v820 = vld [vmem:[%s778 + $0x148] sm:$0xff]
        %v821 = vld [vmem:[%s778 + $0x150] sm:$0xff]
        %v822 = vld [vmem:[%s778 + $0x158] sm:$0xff]
        %v823 = vld [vmem:[%s778 + $0x160] sm:$0xff]
        %v824 = vld [vmem:[%s778 + $0x168] sm:$0xff]
        %v825 = vld [vmem:[%s778 + $0x170] sm:$0xff]
        %v826 = vld [vmem:[%s778 + $0x178] sm:$0xff]
        %v827 = vld [vmem:[%s778 + $0x180] sm:$0xff]
        %v828 = vld [vmem:[%s778 + $0x188] sm:$0xff]
        %v829 = vld [vmem:[%s778 + $0x190] sm:$0xff]
        %v830 = vld [vmem:[%s778 + $0x198] sm:$0xff]
        %v831 = vld [vmem:[%s778 + $0x1a0] sm:$0xff]
        %v832 = vld [vmem:[%s778 + $0x1a8] sm:$0xff]
        %v833 = vld [vmem:[%s778 + $0x1b0] sm:$0xff]
        %v834 = vld [vmem:[%s778 + $0x1b8] sm:$0xff]
        %v835 = vld [vmem:[%s778 + $0x1c0] sm:$0xff]
        %v836 = vld [vmem:[%s778 + $0x1c8] sm:$0xff]
        %v837 = vld [vmem:[%s778 + $0x1d0] sm:$0xff]
        %v838 = vld [vmem:[%s778 + $0x1d8] sm:$0xff]
        %v839 = vld [vmem:[%s778 + $0x1e0] sm:$0xff]
        %v840 = vld [vmem:[%s778 + $0x1e8] sm:$0xff]
        %v841 = vld [vmem:[%s778 + $0x1f0] sm:$0xff]
        %v842 = vld [vmem:[%s778 + $0x1f8] sm:$0xff]
        %843 = vmatpush.msra.mxu0 %v839
        %844 = vmatpush.msra.mxu0 %v835
        %845 = vmatpush.msra.mxu0 %v831
        %846 = vmatpush.msra.mxu0 %v827
        %847 = vmatpush.msra.mxu0 %v823
        %848 = vmatpush.msra.mxu0 %v819
        %849 = vmatpush.msra.mxu0 %v815
        %850 = vmatpush.msra.mxu0 %v811
        %851 = vmatpush.msra.mxu0 %v807
        %852 = vmatpush.msra.mxu0 %v803
        %853 = vmatpush.msra.mxu0 %v799
        %854 = vmatpush.msra.mxu0 %v795
        %855 = vmatpush.msra.mxu0 %v791
        %856 = vmatpush.msra.mxu0 %v787
        %857 = vmatpush.msra.mxu0 %v783
        %858 = vmatpush.msra.mxu0 %v779
        %859 = vmatmul.f32.gmra.mxu0 %v766
        %v860 = vpop.f32.mrf.mxu0
        %v861 = vadd.f32 0.0, %v860
        %862 = vmatmul.f32.gmra.mxu0 %v767
        %v863 = vpop.f32.mrf.mxu0
        %v864 = vadd.f32 0.0, %v863
        %865 = vmatmul.f32.gmra.mxu0 %v768
        %v866 = vpop.f32.mrf.mxu0
        %v867 = vadd.f32 0.0, %v866
        %868 = vmatmul.f32.gmra.mxu0 %v769
        %v869 = vpop.f32.mrf.mxu0
        %v870 = vadd.f32 0.0, %v869
        %871 = vmatmul.f32.gmra.mxu0 %v770
        %v872 = vpop.f32.mrf.mxu0
        %v873 = vadd.f32 0.0, %v872
        %874 = vmatmul.f32.gmra.mxu0 %v771
        %v875 = vpop.f32.mrf.mxu0
        %v876 = vadd.f32 0.0, %v875
        %877 = vmatmul.f32.gmra.mxu0 %v772
        %v878 = vpop.f32.mrf.mxu0
        %v879 = vadd.f32 0.0, %v878
        %880 = vmatmul.f32.gmra.mxu0 %v773
        %v881 = vpop.f32.mrf.mxu0
        %v882 = vadd.f32 0.0, %v881
        %883 = vmatmul.f32.gmra.mxu0 %v774
        %v884 = vpop.f32.mrf.mxu0
        %v885 = vadd.f32 0.0, %v884
        %886 = vmatmul.f32.gmra.mxu0 %v775
        %v887 = vpop.f32.mrf.mxu0
        %v888 = vadd.f32 0.0, %v887
        %889 = vmatmul.f32.gmra.mxu0 %v776
        %v890 = vpop.f32.mrf.mxu0
        %v891 = vadd.f32 0.0, %v890
        %892 = vmatmul.f32.gmra.mxu0 %v777
        %v893 = vpop.f32.mrf.mxu0
        %v894 = vadd.f32 0.0, %v893
        %895 = vdwg.mxu0
        %896 = vmatpush.msra.mxu0 %v840
        %897 = vmatpush.msra.mxu0 %v836
        %898 = vmatpush.msra.mxu0 %v832
        %899 = vmatpush.msra.mxu0 %v828
        %900 = vmatpush.msra.mxu0 %v824
        %901 = vmatpush.msra.mxu0 %v820
        %902 = vmatpush.msra.mxu0 %v816
        %903 = vmatpush.msra.mxu0 %v812
        %904 = vmatpush.msra.mxu0 %v808
        %905 = vmatpush.msra.mxu0 %v804
        %906 = vmatpush.msra.mxu0 %v800
        %907 = vmatpush.msra.mxu0 %v796
        %908 = vmatpush.msra.mxu0 %v792
        %909 = vmatpush.msra.mxu0 %v788
        %910 = vmatpush.msra.mxu0 %v784
        %911 = vmatpush.msra.mxu0 %v780
        %912 = vmatmul.f32.gmra.mxu0 %v766
        %v913 = vpop.f32.mrf.mxu0
        %v914 = vadd.f32 0.0, %v913
        %915 = vmatmul.f32.gmra.mxu0 %v767
        %v916 = vpop.f32.mrf.mxu0
        %v917 = vadd.f32 0.0, %v916
        %918 = vmatmul.f32.gmra.mxu0 %v768
        %v919 = vpop.f32.mrf.mxu0
        %v920 = vadd.f32 0.0, %v919
        %921 = vmatmul.f32.gmra.mxu0 %v769
        %v922 = vpop.f32.mrf.mxu0
        %v923 = vadd.f32 0.0, %v922
        %924 = vmatmul.f32.gmra.mxu0 %v770
        %v925 = vpop.f32.mrf.mxu0
        %v926 = vadd.f32 0.0, %v925
        %927 = vmatmul.f32.gmra.mxu0 %v771
        %v928 = vpop.f32.mrf.mxu0
        %v929 = vadd.f32 0.0, %v928
        %930 = vmatmul.f32.gmra.mxu0 %v772
        %v931 = vpop.f32.mrf.mxu0
        %v932 = vadd.f32 0.0, %v931
        %933 = vmatmul.f32.gmra.mxu0 %v773
        %v934 = vpop.f32.mrf.mxu0
        %v935 = vadd.f32 0.0, %v934
        %936 = vmatmul.f32.gmra.mxu0 %v774
        %v937 = vpop.f32.mrf.mxu0
        %v938 = vadd.f32 0.0, %v937
        %939 = vmatmul.f32.gmra.mxu0 %v775
        %v940 = vpop.f32.mrf.mxu0
        %v941 = vadd.f32 0.0, %v940
        %942 = vmatmul.f32.gmra.mxu0 %v776
        %v943 = vpop.f32.mrf.mxu0
        %v944 = vadd.f32 0.0, %v943
        %945 = vmatmul.f32.gmra.mxu0 %v777
        %v946 = vpop.f32.mrf.mxu0
        %v947 = vadd.f32 0.0, %v946
        %948 = vdwg.mxu0
        %949 = vmatpush.msra.mxu0 %v841
        %950 = vmatpush.msra.mxu0 %v837
        %951 = vmatpush.msra.mxu0 %v833
        %952 = vmatpush.msra.mxu0 %v829
        %953 = vmatpush.msra.mxu0 %v825
        %954 = vmatpush.msra.mxu0 %v821
        %955 = vmatpush.msra.mxu0 %v817
        %956 = vmatpush.msra.mxu0 %v813
        %957 = vmatpush.msra.mxu0 %v809
        %958 = vmatpush.msra.mxu0 %v805
        %959 = vmatpush.msra.mxu0 %v801
        %960 = vmatpush.msra.mxu0 %v797
        %961 = vmatpush.msra.mxu0 %v793
        %962 = vmatpush.msra.mxu0 %v789
        %963 = vmatpush.msra.mxu0 %v785
        %964 = vmatpush.msra.mxu0 %v781
        %965 = vmatmul.f32.gmra.mxu0 %v766
        %v966 = vpop.f32.mrf.mxu0
        %v967 = vadd.f32 0.0, %v966
        %968 = vmatmul.f32.gmra.mxu0 %v767
        %v969 = vpop.f32.mrf.mxu0
        %v970 = vadd.f32 0.0, %v969
        %971 = vmatmul.f32.gmra.mxu0 %v768
        %v972 = vpop.f32.mrf.mxu0
        %v973 = vadd.f32 0.0, %v972
        %974 = vmatmul.f32.gmra.mxu0 %v769
        %v975 = vpop.f32.mrf.mxu0
        %v976 = vadd.f32 0.0, %v975
        %977 = vmatmul.f32.gmra.mxu0 %v770
        %v978 = vpop.f32.mrf.mxu0
        %v979 = vadd.f32 0.0, %v978
        %980 = vmatmul.f32.gmra.mxu0 %v771
        %v981 = vpop.f32.mrf.mxu0
        %v982 = vadd.f32 0.0, %v981
        %983 = vmatmul.f32.gmra.mxu0 %v772
        %v984 = vpop.f32.mrf.mxu0
        %v985 = vadd.f32 0.0, %v984
        %986 = vmatmul.f32.gmra.mxu0 %v773
        %v987 = vpop.f32.mrf.mxu0
        %v988 = vadd.f32 0.0, %v987
        %989 = vmatmul.f32.gmra.mxu0 %v774
        %v990 = vpop.f32.mrf.mxu0
        %v991 = vadd.f32 0.0, %v990
        %992 = vmatmul.f32.gmra.mxu0 %v775
        %v993 = vpop.f32.mrf.mxu0
        %v994 = vadd.f32 0.0, %v993
        %995 = vmatmul.f32.gmra.mxu0 %v776
        %v996 = vpop.f32.mrf.mxu0
        %v997 = vadd.f32 0.0, %v996
        %998 = vmatmul.f32.gmra.mxu0 %v777
        %v999 = vpop.f32.mrf.mxu0
        %v1000 = vadd.f32 0.0, %v999
        %1001 = vdwg.mxu0
        %1002 = vmatpush.msra.mxu0 %v842
        %1003 = vmatpush.msra.mxu0 %v838
        %1004 = vmatpush.msra.mxu0 %v834
        %1005 = vmatpush.msra.mxu0 %v830
        %1006 = vmatpush.msra.mxu0 %v826
        %1007 = vmatpush.msra.mxu0 %v822
        %1008 = vmatpush.msra.mxu0 %v818
        %1009 = vmatpush.msra.mxu0 %v814
        %1010 = vmatpush.msra.mxu0 %v810
        %1011 = vmatpush.msra.mxu0 %v806
        %1012 = vmatpush.msra.mxu0 %v802
        %1013 = vmatpush.msra.mxu0 %v798
        %1014 = vmatpush.msra.mxu0 %v794
        %1015 = vmatpush.msra.mxu0 %v790
        %1016 = vmatpush.msra.mxu0 %v786
        %1017 = vmatpush.msra.mxu0 %v782
        %1018 = vmatmul.f32.gmra.mxu0 %v766
        %v1019 = vpop.f32.mrf.mxu0
        %v1020 = vadd.f32 0.0, %v1019
        %1021 = vmatmul.f32.gmra.mxu0 %v767
        %v1022 = vpop.f32.mrf.mxu0
        %v1023 = vadd.f32 0.0, %v1022
        %1024 = vmatmul.f32.gmra.mxu0 %v768
        %v1025 = vpop.f32.mrf.mxu0
        %v1026 = vadd.f32 0.0, %v1025
        %1027 = vmatmul.f32.gmra.mxu0 %v769
        %v1028 = vpop.f32.mrf.mxu0
        %v1029 = vadd.f32 0.0, %v1028
        %1030 = vmatmul.f32.gmra.mxu0 %v770
        %v1031 = vpop.f32.mrf.mxu0
        %v1032 = vadd.f32 0.0, %v1031
        %1033 = vmatmul.f32.gmra.mxu0 %v771
        %v1034 = vpop.f32.mrf.mxu0
        %v1035 = vadd.f32 0.0, %v1034
        %1036 = vmatmul.f32.gmra.mxu0 %v772
        %v1037 = vpop.f32.mrf.mxu0
        %v1038 = vadd.f32 0.0, %v1037
        %1039 = vmatmul.f32.gmra.mxu0 %v773
        %v1040 = vpop.f32.mrf.mxu0
        %v1041 = vadd.f32 0.0, %v1040
        %1042 = vmatmul.f32.gmra.mxu0 %v774
        %v1043 = vpop.f32.mrf.mxu0
        %v1044 = vadd.f32 0.0, %v1043
        %1045 = vmatmul.f32.gmra.mxu0 %v775
        %v1046 = vpop.f32.mrf.mxu0
        %v1047 = vadd.f32 0.0, %v1046
        %1048 = vmatmul.f32.gmra.mxu0 %v776
        %v1049 = vpop.f32.mrf.mxu0
        %v1050 = vadd.f32 0.0, %v1049
        %1051 = vmatmul.f32.gmra.mxu0 %v777
        %v1052 = vpop.f32.mrf.mxu0
        %v1053 = vadd.f32 0.0, %v1052
        %1054 = vdwg.mxu0
        %v1055 = vmul.f32 %v668, %v861
        %v1056 = vmul.f32 %v673, %v864
        %v1057 = vmul.f32 %v678, %v867
        %v1058 = vmul.f32 %v683, %v870
        %v1059 = vmul.f32 %v668, %v873
        %v1060 = vmul.f32 %v673, %v876
        %v1061 = vmul.f32 %v678, %v879
        %v1062 = vmul.f32 %v683, %v882
        %v1063 = vmul.f32 %v668, %v885
        %v1064 = vmul.f32 %v673, %v888
        %v1065 = vmul.f32 %v678, %v891
        %v1066 = vmul.f32 %v683, %v894
        %v1067 = vmul.f32 %v691, %v914
        %v1068 = vmul.f32 %v695, %v917
        %v1069 = vmul.f32 %v699, %v920
        %v1070 = vmul.f32 %v703, %v923
        %v1071 = vmul.f32 %v691, %v926
        %v1072 = vmul.f32 %v695, %v929
        %v1073 = vmul.f32 %v699, %v932
        %v1074 = vmul.f32 %v703, %v935
        %v1075 = vmul.f32 %v691, %v938
        %v1076 = vmul.f32 %v695, %v941
        %v1077 = vmul.f32 %v699, %v944
        %v1078 = vmul.f32 %v703, %v947
        %v1079 = vadd.f32 %v1055, %v1067
        %v1080 = vadd.f32 %v1056, %v1068
        %v1081 = vadd.f32 %v1057, %v1069
        %v1082 = vadd.f32 %v1058, %v1070
        %v1083 = vadd.f32 %v1059, %v1071
        %v1084 = vadd.f32 %v1060, %v1072
        %v1085 = vadd.f32 %v1061, %v1073
        %v1086 = vadd.f32 %v1062, %v1074
        %v1087 = vadd.f32 %v1063, %v1075
        %v1088 = vadd.f32 %v1064, %v1076
        %v1089 = vadd.f32 %v1065, %v1077
        %v1090 = vadd.f32 %v1066, %v1078
        %v1091 = vmul.f32 %v715, %v967
        %v1092 = vmul.f32 %v719, %v970
        %v1093 = vmul.f32 %v723, %v973
        %v1094 = vmul.f32 %v727, %v976
        %v1095 = vmul.f32 %v715, %v979
        %v1096 = vmul.f32 %v719, %v982
        %v1097 = vmul.f32 %v723, %v985
        %v1098 = vmul.f32 %v727, %v988
        %v1099 = vmul.f32 %v715, %v991
        %v1100 = vmul.f32 %v719, %v994
        %v1101 = vmul.f32 %v723, %v997
        %v1102 = vmul.f32 %v727, %v1000
        %v1103 = vadd.f32 %v1079, %v1091
        %v1104 = vadd.f32 %v1080, %v1092
        %v1105 = vadd.f32 %v1081, %v1093
        %v1106 = vadd.f32 %v1082, %v1094
        %v1107 = vadd.f32 %v1083, %v1095
        %v1108 = vadd.f32 %v1084, %v1096
        %v1109 = vadd.f32 %v1085, %v1097
        %v1110 = vadd.f32 %v1086, %v1098
        %v1111 = vadd.f32 %v1087, %v1099
        %v1112 = vadd.f32 %v1088, %v1100
        %v1113 = vadd.f32 %v1089, %v1101
        %v1114 = vadd.f32 %v1090, %v1102
        %v1115 = vmul.f32 %v739, %v1020
        %v1116 = vmul.f32 %v743, %v1023
        %v1117 = vmul.f32 %v747, %v1026
        %v1118 = vmul.f32 %v751, %v1029
        %v1119 = vmul.f32 %v739, %v1032
        %v1120 = vmul.f32 %v743, %v1035
        %v1121 = vmul.f32 %v747, %v1038
        %v1122 = vmul.f32 %v751, %v1041
        %v1123 = vmul.f32 %v739, %v1044
        %v1124 = vmul.f32 %v743, %v1047
        %v1125 = vmul.f32 %v747, %v1050
        %v1126 = vmul.f32 %v751, %v1053
        %v1127 = vadd.f32 %v1103, %v1115
        %v1128 = vadd.f32 %v1104, %v1116
        %v1129 = vadd.f32 %v1105, %v1117
        %v1130 = vadd.f32 %v1106, %v1118
        %v1131 = vadd.f32 %v1107, %v1119
        %v1132 = vadd.f32 %v1108, %v1120
        %v1133 = vadd.f32 %v1109, %v1121
        %v1134 = vadd.f32 %v1110, %v1122
        %v1135 = vadd.f32 %v1111, %v1123
        %v1136 = vadd.f32 %v1112, %v1124
        %v1137 = vadd.f32 %v1113, %v1125
        %v1138 = vadd.f32 %v1114, %v1126
        %s1139 = scalar_lea.vmem %s468, 32 [#allocation3]
        %1140 = vst [vmem:[%s1139] sm:$0xff] %v1127
        %1141 = vst [vmem:[%s1139 + $0x8] sm:$0xff] %v1128
        %1142 = vst [vmem:[%s1139 + $0x10] sm:$0xff] %v1129
        %1143 = vst [vmem:[%s1139 + $0x18] sm:$0xff] %v1130
        %1144 = vst [vmem:[%s1139 + $0x20] sm:$0xff] %v1131
        %1145 = vst [vmem:[%s1139 + $0x28] sm:$0xff] %v1132
        %1146 = vst [vmem:[%s1139 + $0x30] sm:$0xff] %v1133
        %1147 = vst [vmem:[%s1139 + $0x38] sm:$0xff] %v1134
        %1148 = vst [vmem:[%s1139 + $0x40] sm:$0xff] %v1135
        %1149 = vst [vmem:[%s1139 + $0x48] sm:$0xff] %v1136
        %1150 = vst [vmem:[%s1139 + $0x50] sm:$0xff] %v1137
        %1151 = vst [vmem:[%s1139 + $0x58] sm:$0xff] %v1138
        %s1152 = scalar_lea.vmem %s444, 128 [#allocation2]
        %v1153 = vld [vmem:[%s1152] sm:$0xff]
        %v1154 = vld [vmem:[%s1152 + $0x8] sm:$0xff]
        %v1155 = vld [vmem:[%s1152 + $0x10] sm:$0xff]
        %v1156 = vld [vmem:[%s1152 + $0x18] sm:$0xff]
        %v1157 = vld [vmem:[%s1152 + $0x20] sm:$0xff]
        %v1158 = vld [vmem:[%s1152 + $0x28] sm:$0xff]
        %v1159 = vld [vmem:[%s1152 + $0x30] sm:$0xff]
        %v1160 = vld [vmem:[%s1152 + $0x38] sm:$0xff]
        %v1161 = vld [vmem:[%s1152 + $0x40] sm:$0xff]
        %v1162 = vld [vmem:[%s1152 + $0x48] sm:$0xff]
        %v1163 = vld [vmem:[%s1152 + $0x50] sm:$0xff]
        %v1164 = vld [vmem:[%s1152 + $0x58] sm:$0xff]
        %v1165 = vld [vmem:[%s1152 + $0x60] sm:$0xff]
        %v1166 = vld [vmem:[%s1152 + $0x68] sm:$0xff]
        %v1167 = vld [vmem:[%s1152 + $0x70] sm:$0xff]
        %v1168 = vld [vmem:[%s1152 + $0x78] sm:$0xff]
        %v1169 = vld [vmem:[%s1152 + $0x80] sm:$0xff]
        %v1170 = vld [vmem:[%s1152 + $0x88] sm:$0xff]
        %v1171 = vld [vmem:[%s1152 + $0x90] sm:$0xff]
        %v1172 = vld [vmem:[%s1152 + $0x98] sm:$0xff]
        %s1173 = scalar_lea.vmem %s2, 1024
        %v1174 = vld [vmem:[%s1173] sm:$0xff]
        %v1175 = vld [vmem:[%s1173 + $0x8] sm:$0xff]
        %v1176 = vld [vmem:[%s1173 + $0x10] sm:$0xff]
        %v1177 = vld [vmem:[%s1173 + $0x18] sm:$0xff]
        %v1178 = vld [vmem:[%s1173 + $0x20] sm:$0xff]
        %v1179 = vld [vmem:[%s1173 + $0x28] sm:$0xff]
        %v1180 = vld [vmem:[%s1173 + $0x30] sm:$0xff]
        %v1181 = vld [vmem:[%s1173 + $0x38] sm:$0xff]
        %v1182 = vld [vmem:[%s1173 + $0x40] sm:$0xff]
        %v1183 = vld [vmem:[%s1173 + $0x48] sm:$0xff]
        %v1184 = vld [vmem:[%s1173 + $0x50] sm:$0xff]
        %v1185 = vld [vmem:[%s1173 + $0x58] sm:$0xff]
        %v1186 = vld [vmem:[%s1173 + $0x60] sm:$0xff]
        %v1187 = vld [vmem:[%s1173 + $0x68] sm:$0xff]
        %v1188 = vld [vmem:[%s1173 + $0x70] sm:$0xff]
        %v1189 = vld [vmem:[%s1173 + $0x78] sm:$0xff]
        %v1190 = vld [vmem:[%s1173 + $0x80] sm:$0xff]
        %v1191 = vld [vmem:[%s1173 + $0x88] sm:$0xff]
        %v1192 = vld [vmem:[%s1173 + $0x90] sm:$0xff]
        %v1193 = vld [vmem:[%s1173 + $0x98] sm:$0xff]
        %v1194 = vld [vmem:[%s1173 + $0xa0] sm:$0xff]
        %v1195 = vld [vmem:[%s1173 + $0xa8] sm:$0xff]
        %v1196 = vld [vmem:[%s1173 + $0xb0] sm:$0xff]
        %v1197 = vld [vmem:[%s1173 + $0xb8] sm:$0xff]
        %v1198 = vld [vmem:[%s1173 + $0xc0] sm:$0xff]
        %v1199 = vld [vmem:[%s1173 + $0xc8] sm:$0xff]
        %v1200 = vld [vmem:[%s1173 + $0xd0] sm:$0xff]
        %v1201 = vld [vmem:[%s1173 + $0xd8] sm:$0xff]
        %v1202 = vld [vmem:[%s1173 + $0xe0] sm:$0xff]
        %v1203 = vld [vmem:[%s1173 + $0xe8] sm:$0xff]
        %v1204 = vld [vmem:[%s1173 + $0xf0] sm:$0xff]
        %v1205 = vld [vmem:[%s1173 + $0xf8] sm:$0xff]
        %v1206 = vld [vmem:[%s1173 + $0x100] sm:$0xff]
        %v1207 = vld [vmem:[%s1173 + $0x108] sm:$0xff]
        %v1208 = vld [vmem:[%s1173 + $0x110] sm:$0xff]
        %v1209 = vld [vmem:[%s1173 + $0x118] sm:$0xff]
        %v1210 = vld [vmem:[%s1173 + $0x120] sm:$0xff]
        %v1211 = vld [vmem:[%s1173 + $0x128] sm:$0xff]
        %v1212 = vld [vmem:[%s1173 + $0x130] sm:$0xff]
        %v1213 = vld [vmem:[%s1173 + $0x138] sm:$0xff]
        %v1214 = vld [vmem:[%s1173 + $0x140] sm:$0xff]
        %v1215 = vld [vmem:[%s1173 + $0x148] sm:$0xff]
        %v1216 = vld [vmem:[%s1173 + $0x150] sm:$0xff]
        %v1217 = vld [vmem:[%s1173 + $0x158] sm:$0xff]
        %v1218 = vld [vmem:[%s1173 + $0x160] sm:$0xff]
        %v1219 = vld [vmem:[%s1173 + $0x168] sm:$0xff]
        %v1220 = vld [vmem:[%s1173 + $0x170] sm:$0xff]
        %v1221 = vld [vmem:[%s1173 + $0x178] sm:$0xff]
        %v1222 = vld [vmem:[%s1173 + $0x180] sm:$0xff]
        %v1223 = vld [vmem:[%s1173 + $0x188] sm:$0xff]
        %v1224 = vld [vmem:[%s1173 + $0x190] sm:$0xff]
        %v1225 = vld [vmem:[%s1173 + $0x198] sm:$0xff]
        %v1226 = vld [vmem:[%s1173 + $0x1a0] sm:$0xff]
        %v1227 = vld [vmem:[%s1173 + $0x1a8] sm:$0xff]
        %v1228 = vld [vmem:[%s1173 + $0x1b0] sm:$0xff]
        %v1229 = vld [vmem:[%s1173 + $0x1b8] sm:$0xff]
        %v1230 = vld [vmem:[%s1173 + $0x1c0] sm:$0xff]
        %v1231 = vld [vmem:[%s1173 + $0x1c8] sm:$0xff]
        %v1232 = vld [vmem:[%s1173 + $0x1d0] sm:$0xff]
        %v1233 = vld [vmem:[%s1173 + $0x1d8] sm:$0xff]
        %v1234 = vld [vmem:[%s1173 + $0x1e0] sm:$0xff]
        %v1235 = vld [vmem:[%s1173 + $0x1e8] sm:$0xff]
        %v1236 = vld [vmem:[%s1173 + $0x1f0] sm:$0xff]
        %v1237 = vld [vmem:[%s1173 + $0x1f8] sm:$0xff]
        %1238 = vmatpush.msra.mxu0 %v1234
        %1239 = vmatpush.msra.mxu0 %v1230
        %1240 = vmatpush.msra.mxu0 %v1226
        %1241 = vmatpush.msra.mxu0 %v1222
        %1242 = vmatpush.msra.mxu0 %v1218
        %1243 = vmatpush.msra.mxu0 %v1214
        %1244 = vmatpush.msra.mxu0 %v1210
        %1245 = vmatpush.msra.mxu0 %v1206
        %1246 = vmatpush.msra.mxu0 %v1202
        %1247 = vmatpush.msra.mxu0 %v1198
        %1248 = vmatpush.msra.mxu0 %v1194
        %1249 = vmatpush.msra.mxu0 %v1190
        %1250 = vmatpush.msra.mxu0 %v1186
        %1251 = vmatpush.msra.mxu0 %v1182
        %1252 = vmatpush.msra.mxu0 %v1178
        %1253 = vmatpush.msra.mxu0 %v1174
        %1254 = vmatmul.f32.gmra.mxu0 %v1153
        %v1255 = vpop.f32.mrf.mxu0
        %v1256 = vadd.f32 0.0, %v1255
        %1257 = vmatmul.f32.gmra.mxu0 %v1154
        %v1258 = vpop.f32.mrf.mxu0
        %v1259 = vadd.f32 0.0, %v1258
        %1260 = vmatmul.f32.gmra.mxu0 %v1155
        %v1261 = vpop.f32.mrf.mxu0
        %v1262 = vadd.f32 0.0, %v1261
        %1263 = vmatmul.f32.gmra.mxu0 %v1156
        %v1264 = vpop.f32.mrf.mxu0
        %v1265 = vadd.f32 0.0, %v1264
        %1266 = vmatmul.f32.gmra.mxu0 %v1157
        %v1267 = vpop.f32.mrf.mxu0
        %v1268 = vadd.f32 0.0, %v1267
        %1269 = vmatmul.f32.gmra.mxu0 %v1158
        %v1270 = vpop.f32.mrf.mxu0
        %v1271 = vadd.f32 0.0, %v1270
        %1272 = vmatmul.f32.gmra.mxu0 %v1159
        %v1273 = vpop.f32.mrf.mxu0
        %v1274 = vadd.f32 0.0, %v1273
        %1275 = vmatmul.f32.gmra.mxu0 %v1160
        %v1276 = vpop.f32.mrf.mxu0
        %v1277 = vadd.f32 0.0, %v1276
        %1278 = vmatmul.f32.gmra.mxu0 %v1161
        %v1279 = vpop.f32.mrf.mxu0
        %v1280 = vadd.f32 0.0, %v1279
        %1281 = vmatmul.f32.gmra.mxu0 %v1162
        %v1282 = vpop.f32.mrf.mxu0
        %v1283 = vadd.f32 0.0, %v1282
        %1284 = vmatmul.f32.gmra.mxu0 %v1163
        %v1285 = vpop.f32.mrf.mxu0
        %v1286 = vadd.f32 0.0, %v1285
        %1287 = vmatmul.f32.gmra.mxu0 %v1164
        %v1288 = vpop.f32.mrf.mxu0
        %v1289 = vadd.f32 0.0, %v1288
        %1290 = vmatmul.f32.gmra.mxu0 %v1165
        %v1291 = vpop.f32.mrf.mxu0
        %v1292 = vadd.f32 0.0, %v1291
        %1293 = vmatmul.f32.gmra.mxu0 %v1166
        %v1294 = vpop.f32.mrf.mxu0
        %v1295 = vadd.f32 0.0, %v1294
        %1296 = vmatmul.f32.gmra.mxu0 %v1167
        %v1297 = vpop.f32.mrf.mxu0
        %v1298 = vadd.f32 0.0, %v1297
        %1299 = vmatmul.f32.gmra.mxu0 %v1168
        %v1300 = vpop.f32.mrf.mxu0
        %v1301 = vadd.f32 0.0, %v1300
        %1302 = vmatmul.f32.gmra.mxu0 %v1169
        %v1303 = vpop.f32.mrf.mxu0
        %v1304 = vadd.f32 0.0, %v1303
        %1305 = vmatmul.f32.gmra.mxu0 %v1170
        %v1306 = vpop.f32.mrf.mxu0
        %v1307 = vadd.f32 0.0, %v1306
        %1308 = vmatmul.f32.gmra.mxu0 %v1171
        %v1309 = vpop.f32.mrf.mxu0
        %v1310 = vadd.f32 0.0, %v1309
        %1311 = vmatmul.f32.gmra.mxu0 %v1172
        %v1312 = vpop.f32.mrf.mxu0
        %v1313 = vadd.f32 0.0, %v1312
        %1314 = vdwg.mxu0
        %1315 = vmatpush.msra.mxu0 %v1235
        %1316 = vmatpush.msra.mxu0 %v1231
        %1317 = vmatpush.msra.mxu0 %v1227
        %1318 = vmatpush.msra.mxu0 %v1223
        %1319 = vmatpush.msra.mxu0 %v1219
        %1320 = vmatpush.msra.mxu0 %v1215
        %1321 = vmatpush.msra.mxu0 %v1211
        %1322 = vmatpush.msra.mxu0 %v1207
        %1323 = vmatpush.msra.mxu0 %v1203
        %1324 = vmatpush.msra.mxu0 %v1199
        %1325 = vmatpush.msra.mxu0 %v1195
        %1326 = vmatpush.msra.mxu0 %v1191
        %1327 = vmatpush.msra.mxu0 %v1187
        %1328 = vmatpush.msra.mxu0 %v1183
        %1329 = vmatpush.msra.mxu0 %v1179
        %1330 = vmatpush.msra.mxu0 %v1175
        %1331 = vmatmul.f32.gmra.mxu0 %v1153
        %v1332 = vpop.f32.mrf.mxu0
        %v1333 = vadd.f32 0.0, %v1332
        %1334 = vmatmul.f32.gmra.mxu0 %v1154
        %v1335 = vpop.f32.mrf.mxu0
        %v1336 = vadd.f32 0.0, %v1335
        %1337 = vmatmul.f32.gmra.mxu0 %v1155
        %v1338 = vpop.f32.mrf.mxu0
        %v1339 = vadd.f32 0.0, %v1338
        %1340 = vmatmul.f32.gmra.mxu0 %v1156
        %v1341 = vpop.f32.mrf.mxu0
        %v1342 = vadd.f32 0.0, %v1341
        %1343 = vmatmul.f32.gmra.mxu0 %v1157
        %v1344 = vpop.f32.mrf.mxu0
        %v1345 = vadd.f32 0.0, %v1344
        %1346 = vmatmul.f32.gmra.mxu0 %v1158
        %v1347 = vpop.f32.mrf.mxu0
        %v1348 = vadd.f32 0.0, %v1347
        %1349 = vmatmul.f32.gmra.mxu0 %v1159
        %v1350 = vpop.f32.mrf.mxu0
        %v1351 = vadd.f32 0.0, %v1350
        %1352 = vmatmul.f32.gmra.mxu0 %v1160
        %v1353 = vpop.f32.mrf.mxu0
        %v1354 = vadd.f32 0.0, %v1353
        %1355 = vmatmul.f32.gmra.mxu0 %v1161
        %v1356 = vpop.f32.mrf.mxu0
        %v1357 = vadd.f32 0.0, %v1356
        %1358 = vmatmul.f32.gmra.mxu0 %v1162
        %v1359 = vpop.f32.mrf.mxu0
        %v1360 = vadd.f32 0.0, %v1359
        %1361 = vmatmul.f32.gmra.mxu0 %v1163
        %v1362 = vpop.f32.mrf.mxu0
        %v1363 = vadd.f32 0.0, %v1362
        %1364 = vmatmul.f32.gmra.mxu0 %v1164
        %v1365 = vpop.f32.mrf.mxu0
        %v1366 = vadd.f32 0.0, %v1365
        %1367 = vmatmul.f32.gmra.mxu0 %v1165
        %v1368 = vpop.f32.mrf.mxu0
        %v1369 = vadd.f32 0.0, %v1368
        %1370 = vmatmul.f32.gmra.mxu0 %v1166
        %v1371 = vpop.f32.mrf.mxu0
        %v1372 = vadd.f32 0.0, %v1371
        %1373 = vmatmul.f32.gmra.mxu0 %v1167
        %v1374 = vpop.f32.mrf.mxu0
        %v1375 = vadd.f32 0.0, %v1374
        %1376 = vmatmul.f32.gmra.mxu0 %v1168
        %v1377 = vpop.f32.mrf.mxu0
        %v1378 = vadd.f32 0.0, %v1377
        %1379 = vmatmul.f32.gmra.mxu0 %v1169
        %v1380 = vpop.f32.mrf.mxu0
        %v1381 = vadd.f32 0.0, %v1380
        %1382 = vmatmul.f32.gmra.mxu0 %v1170
        %v1383 = vpop.f32.mrf.mxu0
        %v1384 = vadd.f32 0.0, %v1383
        %1385 = vmatmul.f32.gmra.mxu0 %v1171
        %v1386 = vpop.f32.mrf.mxu0
        %v1387 = vadd.f32 0.0, %v1386
        %1388 = vmatmul.f32.gmra.mxu0 %v1172
        %v1389 = vpop.f32.mrf.mxu0
        %v1390 = vadd.f32 0.0, %v1389
        %1391 = vdwg.mxu0
        %1392 = vmatpush.msra.mxu0 %v1236
        %1393 = vmatpush.msra.mxu0 %v1232
        %1394 = vmatpush.msra.mxu0 %v1228
        %1395 = vmatpush.msra.mxu0 %v1224
        %1396 = vmatpush.msra.mxu0 %v1220
        %1397 = vmatpush.msra.mxu0 %v1216
        %1398 = vmatpush.msra.mxu0 %v1212
        %1399 = vmatpush.msra.mxu0 %v1208
        %1400 = vmatpush.msra.mxu0 %v1204
        %1401 = vmatpush.msra.mxu0 %v1200
        %1402 = vmatpush.msra.mxu0 %v1196
        %1403 = vmatpush.msra.mxu0 %v1192
        %1404 = vmatpush.msra.mxu0 %v1188
        %1405 = vmatpush.msra.mxu0 %v1184
        %1406 = vmatpush.msra.mxu0 %v1180
        %1407 = vmatpush.msra.mxu0 %v1176
        %1408 = vmatmul.f32.gmra.mxu0 %v1153
        %v1409 = vpop.f32.mrf.mxu0
        %v1410 = vadd.f32 0.0, %v1409
        %1411 = vmatmul.f32.gmra.mxu0 %v1154
        %v1412 = vpop.f32.mrf.mxu0
        %v1413 = vadd.f32 0.0, %v1412
        %1414 = vmatmul.f32.gmra.mxu0 %v1155
        %v1415 = vpop.f32.mrf.mxu0
        %v1416 = vadd.f32 0.0, %v1415
        %1417 = vmatmul.f32.gmra.mxu0 %v1156
        %v1418 = vpop.f32.mrf.mxu0
        %v1419 = vadd.f32 0.0, %v1418
        %1420 = vmatmul.f32.gmra.mxu0 %v1157
        %v1421 = vpop.f32.mrf.mxu0
        %v1422 = vadd.f32 0.0, %v1421
        %1423 = vmatmul.f32.gmra.mxu0 %v1158
        %v1424 = vpop.f32.mrf.mxu0
        %v1425 = vadd.f32 0.0, %v1424
        %1426 = vmatmul.f32.gmra.mxu0 %v1159
        %v1427 = vpop.f32.mrf.mxu0
        %v1428 = vadd.f32 0.0, %v1427
        %1429 = vmatmul.f32.gmra.mxu0 %v1160
        %v1430 = vpop.f32.mrf.mxu0
        %v1431 = vadd.f32 0.0, %v1430
        %1432 = vmatmul.f32.gmra.mxu0 %v1161
        %v1433 = vpop.f32.mrf.mxu0
        %v1434 = vadd.f32 0.0, %v1433
        %1435 = vmatmul.f32.gmra.mxu0 %v1162
        %v1436 = vpop.f32.mrf.mxu0
        %v1437 = vadd.f32 0.0, %v1436
        %1438 = vmatmul.f32.gmra.mxu0 %v1163
        %v1439 = vpop.f32.mrf.mxu0
        %v1440 = vadd.f32 0.0, %v1439
        %1441 = vmatmul.f32.gmra.mxu0 %v1164
        %v1442 = vpop.f32.mrf.mxu0
        %v1443 = vadd.f32 0.0, %v1442
        %1444 = vmatmul.f32.gmra.mxu0 %v1165
        %v1445 = vpop.f32.mrf.mxu0
        %v1446 = vadd.f32 0.0, %v1445
        %1447 = vmatmul.f32.gmra.mxu0 %v1166
        %v1448 = vpop.f32.mrf.mxu0
        %v1449 = vadd.f32 0.0, %v1448
        %1450 = vmatmul.f32.gmra.mxu0 %v1167
        %v1451 = vpop.f32.mrf.mxu0
        %v1452 = vadd.f32 0.0, %v1451
        %1453 = vmatmul.f32.gmra.mxu0 %v1168
        %v1454 = vpop.f32.mrf.mxu0
        %v1455 = vadd.f32 0.0, %v1454
        %1456 = vmatmul.f32.gmra.mxu0 %v1169
        %v1457 = vpop.f32.mrf.mxu0
        %v1458 = vadd.f32 0.0, %v1457
        %1459 = vmatmul.f32.gmra.mxu0 %v1170
        %v1460 = vpop.f32.mrf.mxu0
        %v1461 = vadd.f32 0.0, %v1460
        %1462 = vmatmul.f32.gmra.mxu0 %v1171
        %v1463 = vpop.f32.mrf.mxu0
        %v1464 = vadd.f32 0.0, %v1463
        %1465 = vmatmul.f32.gmra.mxu0 %v1172
        %v1466 = vpop.f32.mrf.mxu0
        %v1467 = vadd.f32 0.0, %v1466
        %1468 = vdwg.mxu0
        %1469 = vmatpush.msra.mxu0 %v1237
        %1470 = vmatpush.msra.mxu0 %v1233
        %1471 = vmatpush.msra.mxu0 %v1229
        %1472 = vmatpush.msra.mxu0 %v1225
        %1473 = vmatpush.msra.mxu0 %v1221
        %1474 = vmatpush.msra.mxu0 %v1217
        %1475 = vmatpush.msra.mxu0 %v1213
        %1476 = vmatpush.msra.mxu0 %v1209
        %1477 = vmatpush.msra.mxu0 %v1205
        %1478 = vmatpush.msra.mxu0 %v1201
        %1479 = vmatpush.msra.mxu0 %v1197
        %1480 = vmatpush.msra.mxu0 %v1193
        %1481 = vmatpush.msra.mxu0 %v1189
        %1482 = vmatpush.msra.mxu0 %v1185
        %1483 = vmatpush.msra.mxu0 %v1181
        %1484 = vmatpush.msra.mxu0 %v1177
        %1485 = vmatmul.f32.gmra.mxu0 %v1153
        %v1486 = vpop.f32.mrf.mxu0
        %v1487 = vadd.f32 0.0, %v1486
        %1488 = vmatmul.f32.gmra.mxu0 %v1154
        %v1489 = vpop.f32.mrf.mxu0
        %v1490 = vadd.f32 0.0, %v1489
        %1491 = vmatmul.f32.gmra.mxu0 %v1155
        %v1492 = vpop.f32.mrf.mxu0
        %v1493 = vadd.f32 0.0, %v1492
        %1494 = vmatmul.f32.gmra.mxu0 %v1156
        %v1495 = vpop.f32.mrf.mxu0
        %v1496 = vadd.f32 0.0, %v1495
        %1497 = vmatmul.f32.gmra.mxu0 %v1157
        %v1498 = vpop.f32.mrf.mxu0
        %v1499 = vadd.f32 0.0, %v1498
        %1500 = vmatmul.f32.gmra.mxu0 %v1158
        %v1501 = vpop.f32.mrf.mxu0
        %v1502 = vadd.f32 0.0, %v1501
        %1503 = vmatmul.f32.gmra.mxu0 %v1159
        %v1504 = vpop.f32.mrf.mxu0
        %v1505 = vadd.f32 0.0, %v1504
        %1506 = vmatmul.f32.gmra.mxu0 %v1160
        %v1507 = vpop.f32.mrf.mxu0
        %v1508 = vadd.f32 0.0, %v1507
        %1509 = vmatmul.f32.gmra.mxu0 %v1161
        %v1510 = vpop.f32.mrf.mxu0
        %v1511 = vadd.f32 0.0, %v1510
        %1512 = vmatmul.f32.gmra.mxu0 %v1162
        %v1513 = vpop.f32.mrf.mxu0
        %v1514 = vadd.f32 0.0, %v1513
        %1515 = vmatmul.f32.gmra.mxu0 %v1163
        %v1516 = vpop.f32.mrf.mxu0
        %v1517 = vadd.f32 0.0, %v1516
        %1518 = vmatmul.f32.gmra.mxu0 %v1164
        %v1519 = vpop.f32.mrf.mxu0
        %v1520 = vadd.f32 0.0, %v1519
        %1521 = vmatmul.f32.gmra.mxu0 %v1165
        %v1522 = vpop.f32.mrf.mxu0
        %v1523 = vadd.f32 0.0, %v1522
        %1524 = vmatmul.f32.gmra.mxu0 %v1166
        %v1525 = vpop.f32.mrf.mxu0
        %v1526 = vadd.f32 0.0, %v1525
        %1527 = vmatmul.f32.gmra.mxu0 %v1167
        %v1528 = vpop.f32.mrf.mxu0
        %v1529 = vadd.f32 0.0, %v1528
        %1530 = vmatmul.f32.gmra.mxu0 %v1168
        %v1531 = vpop.f32.mrf.mxu0
        %v1532 = vadd.f32 0.0, %v1531
        %1533 = vmatmul.f32.gmra.mxu0 %v1169
        %v1534 = vpop.f32.mrf.mxu0
        %v1535 = vadd.f32 0.0, %v1534
        %1536 = vmatmul.f32.gmra.mxu0 %v1170
        %v1537 = vpop.f32.mrf.mxu0
        %v1538 = vadd.f32 0.0, %v1537
        %1539 = vmatmul.f32.gmra.mxu0 %v1171
        %v1540 = vpop.f32.mrf.mxu0
        %v1541 = vadd.f32 0.0, %v1540
        %1542 = vmatmul.f32.gmra.mxu0 %v1172
        %v1543 = vpop.f32.mrf.mxu0
        %v1544 = vadd.f32 0.0, %v1543
        %1545 = vdwg.mxu0
        %v1546 = vmul.f32 %v668, %v1256
        %v1547 = vmul.f32 %v673, %v1259
        %v1548 = vmul.f32 %v678, %v1262
        %v1549 = vmul.f32 %v683, %v1265
        %v1550 = vmul.f32 %v668, %v1268
        %v1551 = vmul.f32 %v673, %v1271
        %v1552 = vmul.f32 %v678, %v1274
        %v1553 = vmul.f32 %v683, %v1277
        %v1554 = vmul.f32 %v668, %v1280
        %v1555 = vmul.f32 %v673, %v1283
        %v1556 = vmul.f32 %v678, %v1286
        %v1557 = vmul.f32 %v683, %v1289
        %v1558 = vmul.f32 %v668, %v1292
        %v1559 = vmul.f32 %v673, %v1295
        %v1560 = vmul.f32 %v678, %v1298
        %v1561 = vmul.f32 %v683, %v1301
        %v1562 = vmul.f32 %v668, %v1304
        %v1563 = vmul.f32 %v673, %v1307
        %v1564 = vmul.f32 %v678, %v1310
        %v1565 = vmul.f32 %v683, %v1313
        %v1566 = vmul.f32 %v691, %v1333
        %v1567 = vmul.f32 %v695, %v1336
        %v1568 = vmul.f32 %v699, %v1339
        %v1569 = vmul.f32 %v703, %v1342
        %v1570 = vmul.f32 %v691, %v1345
        %v1571 = vmul.f32 %v695, %v1348
        %v1572 = vmul.f32 %v699, %v1351
        %v1573 = vmul.f32 %v703, %v1354
        %v1574 = vmul.f32 %v691, %v1357
        %v1575 = vmul.f32 %v695, %v1360
        %v1576 = vmul.f32 %v699, %v1363
        %v1577 = vmul.f32 %v703, %v1366
        %v1578 = vmul.f32 %v691, %v1369
        %v1579 = vmul.f32 %v695, %v1372
        %v1580 = vmul.f32 %v699, %v1375
        %v1581 = vmul.f32 %v703, %v1378
        %v1582 = vmul.f32 %v691, %v1381
        %v1583 = vmul.f32 %v695, %v1384
        %v1584 = vmul.f32 %v699, %v1387
        %v1585 = vmul.f32 %v703, %v1390
        %v1586 = vadd.f32 %v1546, %v1566
        %v1587 = vadd.f32 %v1547, %v1567
        %v1588 = vadd.f32 %v1548, %v1568
        %v1589 = vadd.f32 %v1549, %v1569
        %v1590 = vadd.f32 %v1550, %v1570
        %v1591 = vadd.f32 %v1551, %v1571
        %v1592 = vadd.f32 %v1552, %v1572
        %v1593 = vadd.f32 %v1553, %v1573
        %v1594 = vadd.f32 %v1554, %v1574
        %v1595 = vadd.f32 %v1555, %v1575
        %v1596 = vadd.f32 %v1556, %v1576
        %v1597 = vadd.f32 %v1557, %v1577
        %v1598 = vadd.f32 %v1558, %v1578
        %v1599 = vadd.f32 %v1559, %v1579
        %v1600 = vadd.f32 %v1560, %v1580
        %v1601 = vadd.f32 %v1561, %v1581
        %v1602 = vadd.f32 %v1562, %v1582
        %v1603 = vadd.f32 %v1563, %v1583
        %v1604 = vadd.f32 %v1564, %v1584
        %v1605 = vadd.f32 %v1565, %v1585
        %v1606 = vmul.f32 %v715, %v1410
        %v1607 = vmul.f32 %v719, %v1413
        %v1608 = vmul.f32 %v723, %v1416
        %v1609 = vmul.f32 %v727, %v1419
        %v1610 = vmul.f32 %v715, %v1422
        %v1611 = vmul.f32 %v719, %v1425
        %v1612 = vmul.f32 %v723, %v1428
        %v1613 = vmul.f32 %v727, %v1431
        %v1614 = vmul.f32 %v715, %v1434
        %v1615 = vmul.f32 %v719, %v1437
        %v1616 = vmul.f32 %v723, %v1440
        %v1617 = vmul.f32 %v727, %v1443
        %v1618 = vmul.f32 %v715, %v1446
        %v1619 = vmul.f32 %v719, %v1449
        %v1620 = vmul.f32 %v723, %v1452
        %v1621 = vmul.f32 %v727, %v1455
        %v1622 = vmul.f32 %v715, %v1458
        %v1623 = vmul.f32 %v719, %v1461
        %v1624 = vmul.f32 %v723, %v1464
        %v1625 = vmul.f32 %v727, %v1467
        %v1626 = vadd.f32 %v1586, %v1606
        %v1627 = vadd.f32 %v1587, %v1607
        %v1628 = vadd.f32 %v1588, %v1608
        %v1629 = vadd.f32 %v1589, %v1609
        %v1630 = vadd.f32 %v1590, %v1610
        %v1631 = vadd.f32 %v1591, %v1611
        %v1632 = vadd.f32 %v1592, %v1612
        %v1633 = vadd.f32 %v1593, %v1613
        %v1634 = vadd.f32 %v1594, %v1614
        %v1635 = vadd.f32 %v1595, %v1615
        %v1636 = vadd.f32 %v1596, %v1616
        %v1637 = vadd.f32 %v1597, %v1617
        %v1638 = vadd.f32 %v1598, %v1618
        %v1639 = vadd.f32 %v1599, %v1619
        %v1640 = vadd.f32 %v1600, %v1620
        %v1641 = vadd.f32 %v1601, %v1621
        %v1642 = vadd.f32 %v1602, %v1622
        %v1643 = vadd.f32 %v1603, %v1623
        %v1644 = vadd.f32 %v1604, %v1624
        %v1645 = vadd.f32 %v1605, %v1625
        %v1646 = vmul.f32 %v739, %v1487
        %v1647 = vmul.f32 %v743, %v1490
        %v1648 = vmul.f32 %v747, %v1493
        %v1649 = vmul.f32 %v751, %v1496
        %v1650 = vmul.f32 %v739, %v1499
        %v1651 = vmul.f32 %v743, %v1502
        %v1652 = vmul.f32 %v747, %v1505
        %v1653 = vmul.f32 %v751, %v1508
        %v1654 = vmul.f32 %v739, %v1511
        %v1655 = vmul.f32 %v743, %v1514
        %v1656 = vmul.f32 %v747, %v1517
        %v1657 = vmul.f32 %v751, %v1520
        %v1658 = vmul.f32 %v739, %v1523
        %v1659 = vmul.f32 %v743, %v1526
        %v1660 = vmul.f32 %v747, %v1529
        %v1661 = vmul.f32 %v751, %v1532
        %v1662 = vmul.f32 %v739, %v1535
        %v1663 = vmul.f32 %v743, %v1538
        %v1664 = vmul.f32 %v747, %v1541
        %v1665 = vmul.f32 %v751, %v1544
        %v1666 = vadd.f32 %v1626, %v1646
        %v1667 = vadd.f32 %v1627, %v1647
        %v1668 = vadd.f32 %v1628, %v1648
        %v1669 = vadd.f32 %v1629, %v1649
        %v1670 = vadd.f32 %v1630, %v1650
        %v1671 = vadd.f32 %v1631, %v1651
        %v1672 = vadd.f32 %v1632, %v1652
        %v1673 = vadd.f32 %v1633, %v1653
        %v1674 = vadd.f32 %v1634, %v1654
        %v1675 = vadd.f32 %v1635, %v1655
        %v1676 = vadd.f32 %v1636, %v1656
        %v1677 = vadd.f32 %v1637, %v1657
        %v1678 = vadd.f32 %v1638, %v1658
        %v1679 = vadd.f32 %v1639, %v1659
        %v1680 = vadd.f32 %v1640, %v1660
        %v1681 = vadd.f32 %v1641, %v1661
        %v1682 = vadd.f32 %v1642, %v1662
        %v1683 = vadd.f32 %v1643, %v1663
        %v1684 = vadd.f32 %v1644, %v1664
        %v1685 = vadd.f32 %v1645, %v1665
        %s1686 = scalar_lea.vmem %s468, 128 [#allocation3]
        %1687 = vst [vmem:[%s1686] sm:$0xff] %v1666
        %1688 = vst [vmem:[%s1686 + $0x8] sm:$0xff] %v1667
        %1689 = vst [vmem:[%s1686 + $0x10] sm:$0xff] %v1668
        %1690 = vst [vmem:[%s1686 + $0x18] sm:$0xff] %v1669
        %1691 = vst [vmem:[%s1686 + $0x20] sm:$0xff] %v1670
        %1692 = vst [vmem:[%s1686 + $0x28] sm:$0xff] %v1671
        %1693 = vst [vmem:[%s1686 + $0x30] sm:$0xff] %v1672
        %1694 = vst [vmem:[%s1686 + $0x38] sm:$0xff] %v1673
        %1695 = vst [vmem:[%s1686 + $0x40] sm:$0xff] %v1674
        %1696 = vst [vmem:[%s1686 + $0x48] sm:$0xff] %v1675
        %1697 = vst [vmem:[%s1686 + $0x50] sm:$0xff] %v1676
        %1698 = vst [vmem:[%s1686 + $0x58] sm:$0xff] %v1677
        %1699 = vst [vmem:[%s1686 + $0x60] sm:$0xff] %v1678
        %1700 = vst [vmem:[%s1686 + $0x68] sm:$0xff] %v1679
        %1701 = vst [vmem:[%s1686 + $0x70] sm:$0xff] %v1680
        %1702 = vst [vmem:[%s1686 + $0x78] sm:$0xff] %v1681
        %1703 = vst [vmem:[%s1686 + $0x80] sm:$0xff] %v1682
        %1704 = vst [vmem:[%s1686 + $0x88] sm:$0xff] %v1683
        %1705 = vst [vmem:[%s1686 + $0x90] sm:$0xff] %v1684
        %1706 = vst [vmem:[%s1686 + $0x98] sm:$0xff] %v1685
        %s1707 = scalar_lea.vmem %s444, 288 [#allocation2]
        %v1708 = vld [vmem:[%s1707] sm:$0xff]
        %v1709 = vld [vmem:[%s1707 + $0x8] sm:$0xff]
        %v1710 = vld [vmem:[%s1707 + $0x10] sm:$0xff]
        %v1711 = vld [vmem:[%s1707 + $0x18] sm:$0xff]
        %v1712 = vld [vmem:[%s1707 + $0x20] sm:$0xff]
        %v1713 = vld [vmem:[%s1707 + $0x28] sm:$0xff]
        %v1714 = vld [vmem:[%s1707 + $0x30] sm:$0xff]
        %v1715 = vld [vmem:[%s1707 + $0x38] sm:$0xff]
        %v1716 = vld [vmem:[%s1707 + $0x40] sm:$0xff]
        %v1717 = vld [vmem:[%s1707 + $0x48] sm:$0xff]
        %v1718 = vld [vmem:[%s1707 + $0x50] sm:$0xff]
        %v1719 = vld [vmem:[%s1707 + $0x58] sm:$0xff]
        %v1720 = vld [vmem:[%s1707 + $0x60] sm:$0xff]
        %v1721 = vld [vmem:[%s1707 + $0x68] sm:$0xff]
        %v1722 = vld [vmem:[%s1707 + $0x70] sm:$0xff]
        %v1723 = vld [vmem:[%s1707 + $0x78] sm:$0xff]
        %v1724 = vld [vmem:[%s1707 + $0x80] sm:$0xff]
        %v1725 = vld [vmem:[%s1707 + $0x88] sm:$0xff]
        %v1726 = vld [vmem:[%s1707 + $0x90] sm:$0xff]
        %v1727 = vld [vmem:[%s1707 + $0x98] sm:$0xff]
        %v1728 = vld [vmem:[%s1707 + $0xa0] sm:$0xff]
        %v1729 = vld [vmem:[%s1707 + $0xa8] sm:$0xff]
        %v1730 = vld [vmem:[%s1707 + $0xb0] sm:$0xff]
        %v1731 = vld [vmem:[%s1707 + $0xb8] sm:$0xff]
        %v1732 = vld [vmem:[%s1707 + $0xc0] sm:$0xff]
        %v1733 = vld [vmem:[%s1707 + $0xc8] sm:$0xff]
        %v1734 = vld [vmem:[%s1707 + $0xd0] sm:$0xff]
        %v1735 = vld [vmem:[%s1707 + $0xd8] sm:$0xff]
        %s1736 = scalar_lea.vmem %s2, 1536
        %v1737 = vld [vmem:[%s1736] sm:$0xff]
        %v1738 = vld [vmem:[%s1736 + $0x8] sm:$0xff]
        %v1739 = vld [vmem:[%s1736 + $0x10] sm:$0xff]
        %v1740 = vld [vmem:[%s1736 + $0x18] sm:$0xff]
        %v1741 = vld [vmem:[%s1736 + $0x20] sm:$0xff]
        %v1742 = vld [vmem:[%s1736 + $0x28] sm:$0xff]
        %v1743 = vld [vmem:[%s1736 + $0x30] sm:$0xff]
        %v1744 = vld [vmem:[%s1736 + $0x38] sm:$0xff]
        %v1745 = vld [vmem:[%s1736 + $0x40] sm:$0xff]
        %v1746 = vld [vmem:[%s1736 + $0x48] sm:$0xff]
        %v1747 = vld [vmem:[%s1736 + $0x50] sm:$0xff]
        %v1748 = vld [vmem:[%s1736 + $0x58] sm:$0xff]
        %v1749 = vld [vmem:[%s1736 + $0x60] sm:$0xff]
        %v1750 = vld [vmem:[%s1736 + $0x68] sm:$0xff]
        %v1751 = vld [vmem:[%s1736 + $0x70] sm:$0xff]
        %v1752 = vld [vmem:[%s1736 + $0x78] sm:$0xff]
        %v1753 = vld [vmem:[%s1736 + $0x80] sm:$0xff]
        %v1754 = vld [vmem:[%s1736 + $0x88] sm:$0xff]
        %v1755 = vld [vmem:[%s1736 + $0x90] sm:$0xff]
        %v1756 = vld [vmem:[%s1736 + $0x98] sm:$0xff]
        %v1757 = vld [vmem:[%s1736 + $0xa0] sm:$0xff]
        %v1758 = vld [vmem:[%s1736 + $0xa8] sm:$0xff]
        %v1759 = vld [vmem:[%s1736 + $0xb0] sm:$0xff]
        %v1760 = vld [vmem:[%s1736 + $0xb8] sm:$0xff]
        %v1761 = vld [vmem:[%s1736 + $0xc0] sm:$0xff]
        %v1762 = vld [vmem:[%s1736 + $0xc8] sm:$0xff]
        %v1763 = vld [vmem:[%s1736 + $0xd0] sm:$0xff]
        %v1764 = vld [vmem:[%s1736 + $0xd8] sm:$0xff]
        %v1765 = vld [vmem:[%s1736 + $0xe0] sm:$0xff]
        %v1766 = vld [vmem:[%s1736 + $0xe8] sm:$0xff]
        %v1767 = vld [vmem:[%s1736 + $0xf0] sm:$0xff]
        %v1768 = vld [vmem:[%s1736 + $0xf8] sm:$0xff]
        %v1769 = vld [vmem:[%s1736 + $0x100] sm:$0xff]
        %v1770 = vld [vmem:[%s1736 + $0x108] sm:$0xff]
        %v1771 = vld [vmem:[%s1736 + $0x110] sm:$0xff]
        %v1772 = vld [vmem:[%s1736 + $0x118] sm:$0xff]
        %v1773 = vld [vmem:[%s1736 + $0x120] sm:$0xff]
        %v1774 = vld [vmem:[%s1736 + $0x128] sm:$0xff]
        %v1775 = vld [vmem:[%s1736 + $0x130] sm:$0xff]
        %v1776 = vld [vmem:[%s1736 + $0x138] sm:$0xff]
        %v1777 = vld [vmem:[%s1736 + $0x140] sm:$0xff]
        %v1778 = vld [vmem:[%s1736 + $0x148] sm:$0xff]
        %v1779 = vld [vmem:[%s1736 + $0x150] sm:$0xff]
        %v1780 = vld [vmem:[%s1736 + $0x158] sm:$0xff]
        %v1781 = vld [vmem:[%s1736 + $0x160] sm:$0xff]
        %v1782 = vld [vmem:[%s1736 + $0x168] sm:$0xff]
        %v1783 = vld [vmem:[%s1736 + $0x170] sm:$0xff]
        %v1784 = vld [vmem:[%s1736 + $0x178] sm:$0xff]
        %v1785 = vld [vmem:[%s1736 + $0x180] sm:$0xff]
        %v1786 = vld [vmem:[%s1736 + $0x188] sm:$0xff]
        %v1787 = vld [vmem:[%s1736 + $0x190] sm:$0xff]
        %v1788 = vld [vmem:[%s1736 + $0x198] sm:$0xff]
        %v1789 = vld [vmem:[%s1736 + $0x1a0] sm:$0xff]
        %v1790 = vld [vmem:[%s1736 + $0x1a8] sm:$0xff]
        %v1791 = vld [vmem:[%s1736 + $0x1b0] sm:$0xff]
        %v1792 = vld [vmem:[%s1736 + $0x1b8] sm:$0xff]
        %v1793 = vld [vmem:[%s1736 + $0x1c0] sm:$0xff]
        %v1794 = vld [vmem:[%s1736 + $0x1c8] sm:$0xff]
        %v1795 = vld [vmem:[%s1736 + $0x1d0] sm:$0xff]
        %v1796 = vld [vmem:[%s1736 + $0x1d8] sm:$0xff]
        %v1797 = vld [vmem:[%s1736 + $0x1e0] sm:$0xff]
        %v1798 = vld [vmem:[%s1736 + $0x1e8] sm:$0xff]
        %v1799 = vld [vmem:[%s1736 + $0x1f0] sm:$0xff]
        %v1800 = vld [vmem:[%s1736 + $0x1f8] sm:$0xff]
        %1801 = vmatpush.msra.mxu0 %v1797
        %1802 = vmatpush.msra.mxu0 %v1793
        %1803 = vmatpush.msra.mxu0 %v1789
        %1804 = vmatpush.msra.mxu0 %v1785
        %1805 = vmatpush.msra.mxu0 %v1781
        %1806 = vmatpush.msra.mxu0 %v1777
        %1807 = vmatpush.msra.mxu0 %v1773
        %1808 = vmatpush.msra.mxu0 %v1769
        %1809 = vmatpush.msra.mxu0 %v1765
        %1810 = vmatpush.msra.mxu0 %v1761
        %1811 = vmatpush.msra.mxu0 %v1757
        %1812 = vmatpush.msra.mxu0 %v1753
        %1813 = vmatpush.msra.mxu0 %v1749
        %1814 = vmatpush.msra.mxu0 %v1745
        %1815 = vmatpush.msra.mxu0 %v1741
        %1816 = vmatpush.msra.mxu0 %v1737
        %1817 = vmatmul.f32.gmra.mxu0 %v1708
        %v1818 = vpop.f32.mrf.mxu0
        %v1819 = vadd.f32 0.0, %v1818
        %1820 = vmatmul.f32.gmra.mxu0 %v1709
        %v1821 = vpop.f32.mrf.mxu0
        %v1822 = vadd.f32 0.0, %v1821
        %1823 = vmatmul.f32.gmra.mxu0 %v1710
        %v1824 = vpop.f32.mrf.mxu0
        %v1825 = vadd.f32 0.0, %v1824
        %1826 = vmatmul.f32.gmra.mxu0 %v1711
        %v1827 = vpop.f32.mrf.mxu0
        %v1828 = vadd.f32 0.0, %v1827
        %1829 = vmatmul.f32.gmra.mxu0 %v1712
        %v1830 = vpop.f32.mrf.mxu0
        %v1831 = vadd.f32 0.0, %v1830
        %1832 = vmatmul.f32.gmra.mxu0 %v1713
        %v1833 = vpop.f32.mrf.mxu0
        %v1834 = vadd.f32 0.0, %v1833
        %1835 = vmatmul.f32.gmra.mxu0 %v1714
        %v1836 = vpop.f32.mrf.mxu0
        %v1837 = vadd.f32 0.0, %v1836
        %1838 = vmatmul.f32.gmra.mxu0 %v1715
        %v1839 = vpop.f32.mrf.mxu0
        %v1840 = vadd.f32 0.0, %v1839
        %1841 = vmatmul.f32.gmra.mxu0 %v1716
        %v1842 = vpop.f32.mrf.mxu0
        %v1843 = vadd.f32 0.0, %v1842
        %1844 = vmatmul.f32.gmra.mxu0 %v1717
        %v1845 = vpop.f32.mrf.mxu0
        %v1846 = vadd.f32 0.0, %v1845
        %1847 = vmatmul.f32.gmra.mxu0 %v1718
        %v1848 = vpop.f32.mrf.mxu0
        %v1849 = vadd.f32 0.0, %v1848
        %1850 = vmatmul.f32.gmra.mxu0 %v1719
        %v1851 = vpop.f32.mrf.mxu0
        %v1852 = vadd.f32 0.0, %v1851
        %1853 = vmatmul.f32.gmra.mxu0 %v1720
        %v1854 = vpop.f32.mrf.mxu0
        %v1855 = vadd.f32 0.0, %v1854
        %1856 = vmatmul.f32.gmra.mxu0 %v1721
        %v1857 = vpop.f32.mrf.mxu0
        %v1858 = vadd.f32 0.0, %v1857
        %1859 = vmatmul.f32.gmra.mxu0 %v1722
        %v1860 = vpop.f32.mrf.mxu0
        %v1861 = vadd.f32 0.0, %v1860
        %1862 = vmatmul.f32.gmra.mxu0 %v1723
        %v1863 = vpop.f32.mrf.mxu0
        %v1864 = vadd.f32 0.0, %v1863
        %1865 = vmatmul.f32.gmra.mxu0 %v1724
        %v1866 = vpop.f32.mrf.mxu0
        %v1867 = vadd.f32 0.0, %v1866
        %1868 = vmatmul.f32.gmra.mxu0 %v1725
        %v1869 = vpop.f32.mrf.mxu0
        %v1870 = vadd.f32 0.0, %v1869
        %1871 = vmatmul.f32.gmra.mxu0 %v1726
        %v1872 = vpop.f32.mrf.mxu0
        %v1873 = vadd.f32 0.0, %v1872
        %1874 = vmatmul.f32.gmra.mxu0 %v1727
        %v1875 = vpop.f32.mrf.mxu0
        %v1876 = vadd.f32 0.0, %v1875
        %1877 = vmatmul.f32.gmra.mxu0 %v1728
        %v1878 = vpop.f32.mrf.mxu0
        %v1879 = vadd.f32 0.0, %v1878
        %1880 = vmatmul.f32.gmra.mxu0 %v1729
        %v1881 = vpop.f32.mrf.mxu0
        %v1882 = vadd.f32 0.0, %v1881
        %1883 = vmatmul.f32.gmra.mxu0 %v1730
        %v1884 = vpop.f32.mrf.mxu0
        %v1885 = vadd.f32 0.0, %v1884
        %1886 = vmatmul.f32.gmra.mxu0 %v1731
        %v1887 = vpop.f32.mrf.mxu0
        %v1888 = vadd.f32 0.0, %v1887
        %1889 = vmatmul.f32.gmra.mxu0 %v1732
        %v1890 = vpop.f32.mrf.mxu0
        %v1891 = vadd.f32 0.0, %v1890
        %1892 = vmatmul.f32.gmra.mxu0 %v1733
        %v1893 = vpop.f32.mrf.mxu0
        %v1894 = vadd.f32 0.0, %v1893
        %1895 = vmatmul.f32.gmra.mxu0 %v1734
        %v1896 = vpop.f32.mrf.mxu0
        %v1897 = vadd.f32 0.0, %v1896
        %1898 = vmatmul.f32.gmra.mxu0 %v1735
        %v1899 = vpop.f32.mrf.mxu0
        %v1900 = vadd.f32 0.0, %v1899
        %1901 = vdwg.mxu0
        %1902 = vmatpush.msra.mxu0 %v1798
        %1903 = vmatpush.msra.mxu0 %v1794
        %1904 = vmatpush.msra.mxu0 %v1790
        %1905 = vmatpush.msra.mxu0 %v1786
        %1906 = vmatpush.msra.mxu0 %v1782
        %1907 = vmatpush.msra.mxu0 %v1778
        %1908 = vmatpush.msra.mxu0 %v1774
        %1909 = vmatpush.msra.mxu0 %v1770
        %1910 = vmatpush.msra.mxu0 %v1766
        %1911 = vmatpush.msra.mxu0 %v1762
        %1912 = vmatpush.msra.mxu0 %v1758
        %1913 = vmatpush.msra.mxu0 %v1754
        %1914 = vmatpush.msra.mxu0 %v1750
        %1915 = vmatpush.msra.mxu0 %v1746
        %1916 = vmatpush.msra.mxu0 %v1742
        %1917 = vmatpush.msra.mxu0 %v1738
        %1918 = vmatmul.f32.gmra.mxu0 %v1708
        %v1919 = vpop.f32.mrf.mxu0
        %v1920 = vadd.f32 0.0, %v1919
        %1921 = vmatmul.f32.gmra.mxu0 %v1709
        %v1922 = vpop.f32.mrf.mxu0
        %v1923 = vadd.f32 0.0, %v1922
        %1924 = vmatmul.f32.gmra.mxu0 %v1710
        %v1925 = vpop.f32.mrf.mxu0
        %v1926 = vadd.f32 0.0, %v1925
        %1927 = vmatmul.f32.gmra.mxu0 %v1711
        %v1928 = vpop.f32.mrf.mxu0
        %v1929 = vadd.f32 0.0, %v1928
        %1930 = vmatmul.f32.gmra.mxu0 %v1712
        %v1931 = vpop.f32.mrf.mxu0
        %v1932 = vadd.f32 0.0, %v1931
        %1933 = vmatmul.f32.gmra.mxu0 %v1713
        %v1934 = vpop.f32.mrf.mxu0
        %v1935 = vadd.f32 0.0, %v1934
        %1936 = vmatmul.f32.gmra.mxu0 %v1714
        %v1937 = vpop.f32.mrf.mxu0
        %v1938 = vadd.f32 0.0, %v1937
        %1939 = vmatmul.f32.gmra.mxu0 %v1715
        %v1940 = vpop.f32.mrf.mxu0
        %v1941 = vadd.f32 0.0, %v1940
        %1942 = vmatmul.f32.gmra.mxu0 %v1716
        %v1943 = vpop.f32.mrf.mxu0
        %v1944 = vadd.f32 0.0, %v1943
        %1945 = vmatmul.f32.gmra.mxu0 %v1717
        %v1946 = vpop.f32.mrf.mxu0
        %v1947 = vadd.f32 0.0, %v1946
        %1948 = vmatmul.f32.gmra.mxu0 %v1718
        %v1949 = vpop.f32.mrf.mxu0
        %v1950 = vadd.f32 0.0, %v1949
        %1951 = vmatmul.f32.gmra.mxu0 %v1719
        %v1952 = vpop.f32.mrf.mxu0
        %v1953 = vadd.f32 0.0, %v1952
        %1954 = vmatmul.f32.gmra.mxu0 %v1720
        %v1955 = vpop.f32.mrf.mxu0
        %v1956 = vadd.f32 0.0, %v1955
        %1957 = vmatmul.f32.gmra.mxu0 %v1721
        %v1958 = vpop.f32.mrf.mxu0
        %v1959 = vadd.f32 0.0, %v1958
        %1960 = vmatmul.f32.gmra.mxu0 %v1722
        %v1961 = vpop.f32.mrf.mxu0
        %v1962 = vadd.f32 0.0, %v1961
        %1963 = vmatmul.f32.gmra.mxu0 %v1723
        %v1964 = vpop.f32.mrf.mxu0
        %v1965 = vadd.f32 0.0, %v1964
        %1966 = vmatmul.f32.gmra.mxu0 %v1724
        %v1967 = vpop.f32.mrf.mxu0
        %v1968 = vadd.f32 0.0, %v1967
        %1969 = vmatmul.f32.gmra.mxu0 %v1725
        %v1970 = vpop.f32.mrf.mxu0
        %v1971 = vadd.f32 0.0, %v1970
        %1972 = vmatmul.f32.gmra.mxu0 %v1726
        %v1973 = vpop.f32.mrf.mxu0
        %v1974 = vadd.f32 0.0, %v1973
        %1975 = vmatmul.f32.gmra.mxu0 %v1727
        %v1976 = vpop.f32.mrf.mxu0
        %v1977 = vadd.f32 0.0, %v1976
        %1978 = vmatmul.f32.gmra.mxu0 %v1728
        %v1979 = vpop.f32.mrf.mxu0
        %v1980 = vadd.f32 0.0, %v1979
        %1981 = vmatmul.f32.gmra.mxu0 %v1729
        %v1982 = vpop.f32.mrf.mxu0
        %v1983 = vadd.f32 0.0, %v1982
        %1984 = vmatmul.f32.gmra.mxu0 %v1730
        %v1985 = vpop.f32.mrf.mxu0
        %v1986 = vadd.f32 0.0, %v1985
        %1987 = vmatmul.f32.gmra.mxu0 %v1731
        %v1988 = vpop.f32.mrf.mxu0
        %v1989 = vadd.f32 0.0, %v1988
        %1990 = vmatmul.f32.gmra.mxu0 %v1732
        %v1991 = vpop.f32.mrf.mxu0
        %v1992 = vadd.f32 0.0, %v1991
        %1993 = vmatmul.f32.gmra.mxu0 %v1733
        %v1994 = vpop.f32.mrf.mxu0
        %v1995 = vadd.f32 0.0, %v1994
        %1996 = vmatmul.f32.gmra.mxu0 %v1734
        %v1997 = vpop.f32.mrf.mxu0
        %v1998 = vadd.f32 0.0, %v1997
        %1999 = vmatmul.f32.gmra.mxu0 %v1735
        %v2000 = vpop.f32.mrf.mxu0
        %v2001 = vadd.f32 0.0, %v2000
        %2002 = vdwg.mxu0
        %2003 = vmatpush.msra.mxu0 %v1799
        %2004 = vmatpush.msra.mxu0 %v1795
        %2005 = vmatpush.msra.mxu0 %v1791
        %2006 = vmatpush.msra.mxu0 %v1787
        %2007 = vmatpush.msra.mxu0 %v1783
        %2008 = vmatpush.msra.mxu0 %v1779
        %2009 = vmatpush.msra.mxu0 %v1775
        %2010 = vmatpush.msra.mxu0 %v1771
        %2011 = vmatpush.msra.mxu0 %v1767
        %2012 = vmatpush.msra.mxu0 %v1763
        %2013 = vmatpush.msra.mxu0 %v1759
        %2014 = vmatpush.msra.mxu0 %v1755
        %2015 = vmatpush.msra.mxu0 %v1751
        %2016 = vmatpush.msra.mxu0 %v1747
        %2017 = vmatpush.msra.mxu0 %v1743
        %2018 = vmatpush.msra.mxu0 %v1739
        %2019 = vmatmul.f32.gmra.mxu0 %v1708
        %v2020 = vpop.f32.mrf.mxu0
        %v2021 = vadd.f32 0.0, %v2020
        %2022 = vmatmul.f32.gmra.mxu0 %v1709
        %v2023 = vpop.f32.mrf.mxu0
        %v2024 = vadd.f32 0.0, %v2023
        %2025 = vmatmul.f32.gmra.mxu0 %v1710
        %v2026 = vpop.f32.mrf.mxu0
        %v2027 = vadd.f32 0.0, %v2026
        %2028 = vmatmul.f32.gmra.mxu0 %v1711
        %v2029 = vpop.f32.mrf.mxu0
        %v2030 = vadd.f32 0.0, %v2029
        %2031 = vmatmul.f32.gmra.mxu0 %v1712
        %v2032 = vpop.f32.mrf.mxu0
        %v2033 = vadd.f32 0.0, %v2032
        %2034 = vmatmul.f32.gmra.mxu0 %v1713
        %v2035 = vpop.f32.mrf.mxu0
        %v2036 = vadd.f32 0.0, %v2035
        %2037 = vmatmul.f32.gmra.mxu0 %v1714
        %v2038 = vpop.f32.mrf.mxu0
        %v2039 = vadd.f32 0.0, %v2038
        %2040 = vmatmul.f32.gmra.mxu0 %v1715
        %v2041 = vpop.f32.mrf.mxu0
        %v2042 = vadd.f32 0.0, %v2041
        %2043 = vmatmul.f32.gmra.mxu0 %v1716
        %v2044 = vpop.f32.mrf.mxu0
        %v2045 = vadd.f32 0.0, %v2044
        %2046 = vmatmul.f32.gmra.mxu0 %v1717
        %v2047 = vpop.f32.mrf.mxu0
        %v2048 = vadd.f32 0.0, %v2047
        %2049 = vmatmul.f32.gmra.mxu0 %v1718
        %v2050 = vpop.f32.mrf.mxu0
        %v2051 = vadd.f32 0.0, %v2050
        %2052 = vmatmul.f32.gmra.mxu0 %v1719
        %v2053 = vpop.f32.mrf.mxu0
        %v2054 = vadd.f32 0.0, %v2053
        %2055 = vmatmul.f32.gmra.mxu0 %v1720
        %v2056 = vpop.f32.mrf.mxu0
        %v2057 = vadd.f32 0.0, %v2056
        %2058 = vmatmul.f32.gmra.mxu0 %v1721
        %v2059 = vpop.f32.mrf.mxu0
        %v2060 = vadd.f32 0.0, %v2059
        %2061 = vmatmul.f32.gmra.mxu0 %v1722
        %v2062 = vpop.f32.mrf.mxu0
        %v2063 = vadd.f32 0.0, %v2062
        %2064 = vmatmul.f32.gmra.mxu0 %v1723
        %v2065 = vpop.f32.mrf.mxu0
        %v2066 = vadd.f32 0.0, %v2065
        %2067 = vmatmul.f32.gmra.mxu0 %v1724
        %v2068 = vpop.f32.mrf.mxu0
        %v2069 = vadd.f32 0.0, %v2068
        %2070 = vmatmul.f32.gmra.mxu0 %v1725
        %v2071 = vpop.f32.mrf.mxu0
        %v2072 = vadd.f32 0.0, %v2071
        %2073 = vmatmul.f32.gmra.mxu0 %v1726
        %v2074 = vpop.f32.mrf.mxu0
        %v2075 = vadd.f32 0.0, %v2074
        %2076 = vmatmul.f32.gmra.mxu0 %v1727
        %v2077 = vpop.f32.mrf.mxu0
        %v2078 = vadd.f32 0.0, %v2077
        %2079 = vmatmul.f32.gmra.mxu0 %v1728
        %v2080 = vpop.f32.mrf.mxu0
        %v2081 = vadd.f32 0.0, %v2080
        %2082 = vmatmul.f32.gmra.mxu0 %v1729
        %v2083 = vpop.f32.mrf.mxu0
        %v2084 = vadd.f32 0.0, %v2083
        %2085 = vmatmul.f32.gmra.mxu0 %v1730
        %v2086 = vpop.f32.mrf.mxu0
        %v2087 = vadd.f32 0.0, %v2086
        %2088 = vmatmul.f32.gmra.mxu0 %v1731
        %v2089 = vpop.f32.mrf.mxu0
        %v2090 = vadd.f32 0.0, %v2089
        %2091 = vmatmul.f32.gmra.mxu0 %v1732
        %v2092 = vpop.f32.mrf.mxu0
        %v2093 = vadd.f32 0.0, %v2092
        %2094 = vmatmul.f32.gmra.mxu0 %v1733
        %v2095 = vpop.f32.mrf.mxu0
        %v2096 = vadd.f32 0.0, %v2095
        %2097 = vmatmul.f32.gmra.mxu0 %v1734
        %v2098 = vpop.f32.mrf.mxu0
        %v2099 = vadd.f32 0.0, %v2098
        %2100 = vmatmul.f32.gmra.mxu0 %v1735
        %v2101 = vpop.f32.mrf.mxu0
        %v2102 = vadd.f32 0.0, %v2101
        %2103 = vdwg.mxu0
        %2104 = vmatpush.msra.mxu0 %v1800
        %2105 = vmatpush.msra.mxu0 %v1796
        %2106 = vmatpush.msra.mxu0 %v1792
        %2107 = vmatpush.msra.mxu0 %v1788
        %2108 = vmatpush.msra.mxu0 %v1784
        %2109 = vmatpush.msra.mxu0 %v1780
        %2110 = vmatpush.msra.mxu0 %v1776
        %2111 = vmatpush.msra.mxu0 %v1772
        %2112 = vmatpush.msra.mxu0 %v1768
        %2113 = vmatpush.msra.mxu0 %v1764
        %2114 = vmatpush.msra.mxu0 %v1760
        %2115 = vmatpush.msra.mxu0 %v1756
        %2116 = vmatpush.msra.mxu0 %v1752
        %2117 = vmatpush.msra.mxu0 %v1748
        %2118 = vmatpush.msra.mxu0 %v1744
        %2119 = vmatpush.msra.mxu0 %v1740
        %2120 = vmatmul.f32.gmra.mxu0 %v1708
        %v2121 = vpop.f32.mrf.mxu0
        %v2122 = vadd.f32 0.0, %v2121
        %2123 = vmatmul.f32.gmra.mxu0 %v1709
        %v2124 = vpop.f32.mrf.mxu0
        %v2125 = vadd.f32 0.0, %v2124
        %2126 = vmatmul.f32.gmra.mxu0 %v1710
        %v2127 = vpop.f32.mrf.mxu0
        %v2128 = vadd.f32 0.0, %v2127
        %2129 = vmatmul.f32.gmra.mxu0 %v1711
        %v2130 = vpop.f32.mrf.mxu0
        %v2131 = vadd.f32 0.0, %v2130
        %2132 = vmatmul.f32.gmra.mxu0 %v1712
        %v2133 = vpop.f32.mrf.mxu0
        %v2134 = vadd.f32 0.0, %v2133
        %2135 = vmatmul.f32.gmra.mxu0 %v1713
        %v2136 = vpop.f32.mrf.mxu0
        %v2137 = vadd.f32 0.0, %v2136
        %2138 = vmatmul.f32.gmra.mxu0 %v1714
        %v2139 = vpop.f32.mrf.mxu0
        %v2140 = vadd.f32 0.0, %v2139
        %2141 = vmatmul.f32.gmra.mxu0 %v1715
        %v2142 = vpop.f32.mrf.mxu0
        %v2143 = vadd.f32 0.0, %v2142
        %2144 = vmatmul.f32.gmra.mxu0 %v1716
        %v2145 = vpop.f32.mrf.mxu0
        %v2146 = vadd.f32 0.0, %v2145
        %2147 = vmatmul.f32.gmra.mxu0 %v1717
        %v2148 = vpop.f32.mrf.mxu0
        %v2149 = vadd.f32 0.0, %v2148
        %2150 = vmatmul.f32.gmra.mxu0 %v1718
        %v2151 = vpop.f32.mrf.mxu0
        %v2152 = vadd.f32 0.0, %v2151
        %2153 = vmatmul.f32.gmra.mxu0 %v1719
        %v2154 = vpop.f32.mrf.mxu0
        %v2155 = vadd.f32 0.0, %v2154
        %2156 = vmatmul.f32.gmra.mxu0 %v1720
        %v2157 = vpop.f32.mrf.mxu0
        %v2158 = vadd.f32 0.0, %v2157
        %2159 = vmatmul.f32.gmra.mxu0 %v1721
        %v2160 = vpop.f32.mrf.mxu0
        %v2161 = vadd.f32 0.0, %v2160
        %2162 = vmatmul.f32.gmra.mxu0 %v1722
        %v2163 = vpop.f32.mrf.mxu0
        %v2164 = vadd.f32 0.0, %v2163
        %2165 = vmatmul.f32.gmra.mxu0 %v1723
        %v2166 = vpop.f32.mrf.mxu0
        %v2167 = vadd.f32 0.0, %v2166
        %2168 = vmatmul.f32.gmra.mxu0 %v1724
        %v2169 = vpop.f32.mrf.mxu0
        %v2170 = vadd.f32 0.0, %v2169
        %2171 = vmatmul.f32.gmra.mxu0 %v1725
        %v2172 = vpop.f32.mrf.mxu0
        %v2173 = vadd.f32 0.0, %v2172
        %2174 = vmatmul.f32.gmra.mxu0 %v1726
        %v2175 = vpop.f32.mrf.mxu0
        %v2176 = vadd.f32 0.0, %v2175
        %2177 = vmatmul.f32.gmra.mxu0 %v1727
        %v2178 = vpop.f32.mrf.mxu0
        %v2179 = vadd.f32 0.0, %v2178
        %2180 = vmatmul.f32.gmra.mxu0 %v1728
        %v2181 = vpop.f32.mrf.mxu0
        %v2182 = vadd.f32 0.0, %v2181
        %2183 = vmatmul.f32.gmra.mxu0 %v1729
        %v2184 = vpop.f32.mrf.mxu0
        %v2185 = vadd.f32 0.0, %v2184
        %2186 = vmatmul.f32.gmra.mxu0 %v1730
        %v2187 = vpop.f32.mrf.mxu0
        %v2188 = vadd.f32 0.0, %v2187
        %2189 = vmatmul.f32.gmra.mxu0 %v1731
        %v2190 = vpop.f32.mrf.mxu0
        %v2191 = vadd.f32 0.0, %v2190
        %2192 = vmatmul.f32.gmra.mxu0 %v1732
        %v2193 = vpop.f32.mrf.mxu0
        %v2194 = vadd.f32 0.0, %v2193
        %2195 = vmatmul.f32.gmra.mxu0 %v1733
        %v2196 = vpop.f32.mrf.mxu0
        %v2197 = vadd.f32 0.0, %v2196
        %2198 = vmatmul.f32.gmra.mxu0 %v1734
        %v2199 = vpop.f32.mrf.mxu0
        %v2200 = vadd.f32 0.0, %v2199
        %2201 = vmatmul.f32.gmra.mxu0 %v1735
        %v2202 = vpop.f32.mrf.mxu0
        %v2203 = vadd.f32 0.0, %v2202
        %2204 = vdwg.mxu0
        %v2205 = vmul.f32 %v668, %v1819
        %v2206 = vmul.f32 %v673, %v1822
        %v2207 = vmul.f32 %v678, %v1825
        %v2208 = vmul.f32 %v683, %v1828
        %v2209 = vmul.f32 %v668, %v1831
        %v2210 = vmul.f32 %v673, %v1834
        %v2211 = vmul.f32 %v678, %v1837
        %v2212 = vmul.f32 %v683, %v1840
        %v2213 = vmul.f32 %v668, %v1843
        %v2214 = vmul.f32 %v673, %v1846
        %v2215 = vmul.f32 %v678, %v1849
        %v2216 = vmul.f32 %v683, %v1852
        %v2217 = vmul.f32 %v668, %v1855
        %v2218 = vmul.f32 %v673, %v1858
        %v2219 = vmul.f32 %v678, %v1861
        %v2220 = vmul.f32 %v683, %v1864
        %v2221 = vmul.f32 %v668, %v1867
        %v2222 = vmul.f32 %v673, %v1870
        %v2223 = vmul.f32 %v678, %v1873
        %v2224 = vmul.f32 %v683, %v1876
        %v2225 = vmul.f32 %v668, %v1879
        %v2226 = vmul.f32 %v673, %v1882
        %v2227 = vmul.f32 %v678, %v1885
        %v2228 = vmul.f32 %v683, %v1888
        %v2229 = vmul.f32 %v668, %v1891
        %v2230 = vmul.f32 %v673, %v1894
        %v2231 = vmul.f32 %v678, %v1897
        %v2232 = vmul.f32 %v683, %v1900
        %v2233 = vmul.f32 %v691, %v1920
        %v2234 = vmul.f32 %v695, %v1923
        %v2235 = vmul.f32 %v699, %v1926
        %v2236 = vmul.f32 %v703, %v1929
        %v2237 = vmul.f32 %v691, %v1932
        %v2238 = vmul.f32 %v695, %v1935
        %v2239 = vmul.f32 %v699, %v1938
        %v2240 = vmul.f32 %v703, %v1941
        %v2241 = vmul.f32 %v691, %v1944
        %v2242 = vmul.f32 %v695, %v1947
        %v2243 = vmul.f32 %v699, %v1950
        %v2244 = vmul.f32 %v703, %v1953
        %v2245 = vmul.f32 %v691, %v1956
        %v2246 = vmul.f32 %v695, %v1959
        %v2247 = vmul.f32 %v699, %v1962
        %v2248 = vmul.f32 %v703, %v1965
        %v2249 = vmul.f32 %v691, %v1968
        %v2250 = vmul.f32 %v695, %v1971
        %v2251 = vmul.f32 %v699, %v1974
        %v2252 = vmul.f32 %v703, %v1977
        %v2253 = vmul.f32 %v691, %v1980
        %v2254 = vmul.f32 %v695, %v1983
        %v2255 = vmul.f32 %v699, %v1986
        %v2256 = vmul.f32 %v703, %v1989
        %v2257 = vmul.f32 %v691, %v1992
        %v2258 = vmul.f32 %v695, %v1995
        %v2259 = vmul.f32 %v699, %v1998
        %v2260 = vmul.f32 %v703, %v2001
        %v2261 = vadd.f32 %v2205, %v2233
        %v2262 = vadd.f32 %v2206, %v2234
        %v2263 = vadd.f32 %v2207, %v2235
        %v2264 = vadd.f32 %v2208, %v2236
        %v2265 = vadd.f32 %v2209, %v2237
        %v2266 = vadd.f32 %v2210, %v2238
        %v2267 = vadd.f32 %v2211, %v2239
        %v2268 = vadd.f32 %v2212, %v2240
        %v2269 = vadd.f32 %v2213, %v2241
        %v2270 = vadd.f32 %v2214, %v2242
        %v2271 = vadd.f32 %v2215, %v2243
        %v2272 = vadd.f32 %v2216, %v2244
        %v2273 = vadd.f32 %v2217, %v2245
        %v2274 = vadd.f32 %v2218, %v2246
        %v2275 = vadd.f32 %v2219, %v2247
        %v2276 = vadd.f32 %v2220, %v2248
        %v2277 = vadd.f32 %v2221, %v2249
        %v2278 = vadd.f32 %v2222, %v2250
        %v2279 = vadd.f32 %v2223, %v2251
        %v2280 = vadd.f32 %v2224, %v2252
        %v2281 = vadd.f32 %v2225, %v2253
        %v2282 = vadd.f32 %v2226, %v2254
        %v2283 = vadd.f32 %v2227, %v2255
        %v2284 = vadd.f32 %v2228, %v2256
        %v2285 = vadd.f32 %v2229, %v2257
        %v2286 = vadd.f32 %v2230, %v2258
        %v2287 = vadd.f32 %v2231, %v2259
        %v2288 = vadd.f32 %v2232, %v2260
        %v2289 = vmul.f32 %v715, %v2021
        %v2290 = vmul.f32 %v719, %v2024
        %v2291 = vmul.f32 %v723, %v2027
        %v2292 = vmul.f32 %v727, %v2030
        %v2293 = vmul.f32 %v715, %v2033
        %v2294 = vmul.f32 %v719, %v2036
        %v2295 = vmul.f32 %v723, %v2039
        %v2296 = vmul.f32 %v727, %v2042
        %v2297 = vmul.f32 %v715, %v2045
        %v2298 = vmul.f32 %v719, %v2048
        %v2299 = vmul.f32 %v723, %v2051
        %v2300 = vmul.f32 %v727, %v2054
        %v2301 = vmul.f32 %v715, %v2057
        %v2302 = vmul.f32 %v719, %v2060
        %v2303 = vmul.f32 %v723, %v2063
        %v2304 = vmul.f32 %v727, %v2066
        %v2305 = vmul.f32 %v715, %v2069
        %v2306 = vmul.f32 %v719, %v2072
        %v2307 = vmul.f32 %v723, %v2075
        %v2308 = vmul.f32 %v727, %v2078
        %v2309 = vmul.f32 %v715, %v2081
        %v2310 = vmul.f32 %v719, %v2084
        %v2311 = vmul.f32 %v723, %v2087
        %v2312 = vmul.f32 %v727, %v2090
        %v2313 = vmul.f32 %v715, %v2093
        %v2314 = vmul.f32 %v719, %v2096
        %v2315 = vmul.f32 %v723, %v2099
        %v2316 = vmul.f32 %v727, %v2102
        %v2317 = vadd.f32 %v2261, %v2289
        %v2318 = vadd.f32 %v2262, %v2290
        %v2319 = vadd.f32 %v2263, %v2291
        %v2320 = vadd.f32 %v2264, %v2292
        %v2321 = vadd.f32 %v2265, %v2293
        %v2322 = vadd.f32 %v2266, %v2294
        %v2323 = vadd.f32 %v2267, %v2295
        %v2324 = vadd.f32 %v2268, %v2296
        %v2325 = vadd.f32 %v2269, %v2297
        %v2326 = vadd.f32 %v2270, %v2298
        %v2327 = vadd.f32 %v2271, %v2299
        %v2328 = vadd.f32 %v2272, %v2300
        %v2329 = vadd.f32 %v2273, %v2301
        %v2330 = vadd.f32 %v2274, %v2302
        %v2331 = vadd.f32 %v2275, %v2303
        %v2332 = vadd.f32 %v2276, %v2304
        %v2333 = vadd.f32 %v2277, %v2305
        %v2334 = vadd.f32 %v2278, %v2306
        %v2335 = vadd.f32 %v2279, %v2307
        %v2336 = vadd.f32 %v2280, %v2308
        %v2337 = vadd.f32 %v2281, %v2309
        %v2338 = vadd.f32 %v2282, %v2310
        %v2339 = vadd.f32 %v2283, %v2311
        %v2340 = vadd.f32 %v2284, %v2312
        %v2341 = vadd.f32 %v2285, %v2313
        %v2342 = vadd.f32 %v2286, %v2314
        %v2343 = vadd.f32 %v2287, %v2315
        %v2344 = vadd.f32 %v2288, %v2316
        %v2345 = vmul.f32 %v739, %v2122
        %v2346 = vmul.f32 %v743, %v2125
        %v2347 = vmul.f32 %v747, %v2128
        %v2348 = vmul.f32 %v751, %v2131
        %v2349 = vmul.f32 %v739, %v2134
        %v2350 = vmul.f32 %v743, %v2137
        %v2351 = vmul.f32 %v747, %v2140
        %v2352 = vmul.f32 %v751, %v2143
        %v2353 = vmul.f32 %v739, %v2146
        %v2354 = vmul.f32 %v743, %v2149
        %v2355 = vmul.f32 %v747, %v2152
        %v2356 = vmul.f32 %v751, %v2155
        %v2357 = vmul.f32 %v739, %v2158
        %v2358 = vmul.f32 %v743, %v2161
        %v2359 = vmul.f32 %v747, %v2164
        %v2360 = vmul.f32 %v751, %v2167
        %v2361 = vmul.f32 %v739, %v2170
        %v2362 = vmul.f32 %v743, %v2173
        %v2363 = vmul.f32 %v747, %v2176
        %v2364 = vmul.f32 %v751, %v2179
        %v2365 = vmul.f32 %v739, %v2182
        %v2366 = vmul.f32 %v743, %v2185
        %v2367 = vmul.f32 %v747, %v2188
        %v2368 = vmul.f32 %v751, %v2191
        %v2369 = vmul.f32 %v739, %v2194
        %v2370 = vmul.f32 %v743, %v2197
        %v2371 = vmul.f32 %v747, %v2200
        %v2372 = vmul.f32 %v751, %v2203
        %v2373 = vadd.f32 %v2317, %v2345
        %v2374 = vadd.f32 %v2318, %v2346
        %v2375 = vadd.f32 %v2319, %v2347
        %v2376 = vadd.f32 %v2320, %v2348
        %v2377 = vadd.f32 %v2321, %v2349
        %v2378 = vadd.f32 %v2322, %v2350
        %v2379 = vadd.f32 %v2323, %v2351
        %v2380 = vadd.f32 %v2324, %v2352
        %v2381 = vadd.f32 %v2325, %v2353
        %v2382 = vadd.f32 %v2326, %v2354
        %v2383 = vadd.f32 %v2327, %v2355
        %v2384 = vadd.f32 %v2328, %v2356
        %v2385 = vadd.f32 %v2329, %v2357
        %v2386 = vadd.f32 %v2330, %v2358
        %v2387 = vadd.f32 %v2331, %v2359
        %v2388 = vadd.f32 %v2332, %v2360
        %v2389 = vadd.f32 %v2333, %v2361
        %v2390 = vadd.f32 %v2334, %v2362
        %v2391 = vadd.f32 %v2335, %v2363
        %v2392 = vadd.f32 %v2336, %v2364
        %v2393 = vadd.f32 %v2337, %v2365
        %v2394 = vadd.f32 %v2338, %v2366
        %v2395 = vadd.f32 %v2339, %v2367
        %v2396 = vadd.f32 %v2340, %v2368
        %v2397 = vadd.f32 %v2341, %v2369
        %v2398 = vadd.f32 %v2342, %v2370
        %v2399 = vadd.f32 %v2343, %v2371
        %v2400 = vadd.f32 %v2344, %v2372
        %s2401 = scalar_lea.vmem %s468, 288 [#allocation3]
        %2402 = vst [vmem:[%s2401] sm:$0xff] %v2373
        %2403 = vst [vmem:[%s2401 + $0x8] sm:$0xff] %v2374
        %2404 = vst [vmem:[%s2401 + $0x10] sm:$0xff] %v2375
        %2405 = vst [vmem:[%s2401 + $0x18] sm:$0xff] %v2376
        %2406 = vst [vmem:[%s2401 + $0x20] sm:$0xff] %v2377
        %2407 = vst [vmem:[%s2401 + $0x28] sm:$0xff] %v2378
        %2408 = vst [vmem:[%s2401 + $0x30] sm:$0xff] %v2379
        %2409 = vst [vmem:[%s2401 + $0x38] sm:$0xff] %v2380
        %2410 = vst [vmem:[%s2401 + $0x40] sm:$0xff] %v2381
        %2411 = vst [vmem:[%s2401 + $0x48] sm:$0xff] %v2382
        %2412 = vst [vmem:[%s2401 + $0x50] sm:$0xff] %v2383
        %2413 = vst [vmem:[%s2401 + $0x58] sm:$0xff] %v2384
        %2414 = vst [vmem:[%s2401 + $0x60] sm:$0xff] %v2385
        %2415 = vst [vmem:[%s2401 + $0x68] sm:$0xff] %v2386
        %2416 = vst [vmem:[%s2401 + $0x70] sm:$0xff] %v2387
        %2417 = vst [vmem:[%s2401 + $0x78] sm:$0xff] %v2388
        %2418 = vst [vmem:[%s2401 + $0x80] sm:$0xff] %v2389
        %2419 = vst [vmem:[%s2401 + $0x88] sm:$0xff] %v2390
        %2420 = vst [vmem:[%s2401 + $0x90] sm:$0xff] %v2391
        %2421 = vst [vmem:[%s2401 + $0x98] sm:$0xff] %v2392
        %2422 = vst [vmem:[%s2401 + $0xa0] sm:$0xff] %v2393
        %2423 = vst [vmem:[%s2401 + $0xa8] sm:$0xff] %v2394
        %2424 = vst [vmem:[%s2401 + $0xb0] sm:$0xff] %v2395
        %2425 = vst [vmem:[%s2401 + $0xb8] sm:$0xff] %v2396
        %2426 = vst [vmem:[%s2401 + $0xc0] sm:$0xff] %v2397
        %2427 = vst [vmem:[%s2401 + $0xc8] sm:$0xff] %v2398
        %2428 = vst [vmem:[%s2401 + $0xd0] sm:$0xff] %v2399
        %2429 = vst [vmem:[%s2401 + $0xd8] sm:$0xff] %v2400
        %s2430 = sand.u32 %s95, 1
        %s2431 = sand.u32 %s95, 1
        %s2432 = smul.addr %s2431, 512
        %s2433 = scalar_lea.vmem [#allocation3], %s2432
        // Predicated region
        $region71: #{elemental_linear.1} parent=65 // pred_check
          %p2434 = pneg %p105
        $region72: #{elemental_linear.1} parent=65 // pred_check_branch
          %2436 = sbr.rel (%p2434) target = $region74
        $region73: #{elemental_linear.1} parent=65 // pred_region
          %s2437 = smul.u32 4, %s14
          %s2438 = smul.addr %s2437, 8
          %s2439 = scalar_lea.vmem %s3, %s2438
          // Predicated region
          $region75: #{elemental_linear.1} parent=73 // pred_check
            _
          $region76: #{elemental_linear.1} parent=73 // pred_check_branch
            %2441 = sbr.rel (0) target = $region78
          $region77: #{elemental_linear.1} parent=73 // pred_region
            // Predicated region
            $region79: #{elemental_linear.1} parent=77 // pred_check
              _
            $region80: #{elemental_linear.1} parent=77 // pred_check_branch
              %2443 = sbr.rel (0) target = $region82
            $region81: #{elemental_linear.1} parent=77 // pred_region
              // Predicated region
              $region94: #{elemental_linear.1} parent=81 // pred_check
                _
              $region95: #{elemental_linear.1} parent=81 // pred_check_branch
                %2585 = sbr.rel (0) target = $region97
              $region96: #{elemental_linear.1} parent=81 // pred_region
                loop: start=0, step=1, limit=1
                $region98: #{elemental_linear.1} parent=96 // loop_pre_header
                  _
                $region99: #{elemental_linear.1} parent=96 // loop_header
                  %s2587 = sphi 0, %s2591
                  %p2588 = scmp.ge.s32.totalorder %s2587, 1
                  %s2592 = sphi %s2433, %s2433
                  %s2593 = sphi %s2439, %s2439
                $region100: #{elemental_linear.1} parent=96 // loop_header_branch
                  %2590 = sbr.rel (%p2588) target = $region104
                $region101: #{elemental_linear.1} parent=96 // loop_body
                  %v2594 = vld [vmem:[%s2592] sm:$0xff]
                  %2595 = vst [vmem:[%s2593] sm:$0xff] %v2594
                  %v2596 = vld [vmem:[%s2592 + $0x8] sm:$0xff]
                  %2597 = vst [vmem:[%s2593 + $0x8] sm:$0xff] %v2596
                  %v2598 = vld [vmem:[%s2592 + $0x10] sm:$0xff]
                  %2599 = vst [vmem:[%s2593 + $0x10] sm:$0xff] %v2598
                  %v2600 = vld [vmem:[%s2592 + $0x18] sm:$0xff]
                  %2601 = vst [vmem:[%s2593 + $0x18] sm:$0xff] %v2600
                  %v2602 = vld [vmem:[%s2592 + $0x20] sm:$0xff]
                  %2603 = vst [vmem:[%s2593 + $0x40] sm:$0xff] %v2602
                  %v2604 = vld [vmem:[%s2592 + $0x28] sm:$0xff]
                  %2605 = vst [vmem:[%s2593 + $0x48] sm:$0xff] %v2604
                  %v2606 = vld [vmem:[%s2592 + $0x30] sm:$0xff]
                  %2607 = vst [vmem:[%s2593 + $0x50] sm:$0xff] %v2606
                  %v2608 = vld [vmem:[%s2592 + $0x38] sm:$0xff]
                  %2609 = vst [vmem:[%s2593 + $0x58] sm:$0xff] %v2608
                  %v2610 = vld [vmem:[%s2592 + $0x40] sm:$0xff]
                  %2611 = vst [vmem:[%s2593 + $0x80] sm:$0xff] %v2610
                  %v2612 = vld [vmem:[%s2592 + $0x48] sm:$0xff]
                  %2613 = vst [vmem:[%s2593 + $0x88] sm:$0xff] %v2612
                  %v2614 = vld [vmem:[%s2592 + $0x50] sm:$0xff]
                  %2615 = vst [vmem:[%s2593 + $0x90] sm:$0xff] %v2614
                  %v2616 = vld [vmem:[%s2592 + $0x58] sm:$0xff]
                  %2617 = vst [vmem:[%s2593 + $0x98] sm:$0xff] %v2616
                  %v2618 = vld [vmem:[%s2592 + $0x60] sm:$0xff]
                  %2619 = vst [vmem:[%s2593 + $0xc0] sm:$0xff] %v2618
                  %v2620 = vld [vmem:[%s2592 + $0x68] sm:$0xff]
                  %2621 = vst [vmem:[%s2593 + $0xc8] sm:$0xff] %v2620
                  %v2622 = vld [vmem:[%s2592 + $0x70] sm:$0xff]
                  %2623 = vst [vmem:[%s2593 + $0xd0] sm:$0xff] %v2622
                  %v2624 = vld [vmem:[%s2592 + $0x78] sm:$0xff]
                  %2625 = vst [vmem:[%s2593 + $0xd8] sm:$0xff] %v2624
                  %v2626 = vld [vmem:[%s2592 + $0x80] sm:$0xff]
                  %2627 = vst [vmem:[%s2593 + $0x100] sm:$0xff] %v2626
                  %v2628 = vld [vmem:[%s2592 + $0x88] sm:$0xff]
                  %2629 = vst [vmem:[%s2593 + $0x108] sm:$0xff] %v2628
                  %v2630 = vld [vmem:[%s2592 + $0x90] sm:$0xff]
                  %2631 = vst [vmem:[%s2593 + $0x110] sm:$0xff] %v2630
                  %v2632 = vld [vmem:[%s2592 + $0x98] sm:$0xff]
                  %2633 = vst [vmem:[%s2593 + $0x118] sm:$0xff] %v2632
                  %v2634 = vld [vmem:[%s2592 + $0xa0] sm:$0xff]
                  %2635 = vst [vmem:[%s2593 + $0x140] sm:$0xff] %v2634
                  %v2636 = vld [vmem:[%s2592 + $0xa8] sm:$0xff]
                  %2637 = vst [vmem:[%s2593 + $0x148] sm:$0xff] %v2636
                  %v2638 = vld [vmem:[%s2592 + $0xb0] sm:$0xff]
                  %2639 = vst [vmem:[%s2593 + $0x150] sm:$0xff] %v2638
                  %v2640 = vld [vmem:[%s2592 + $0xb8] sm:$0xff]
                  %2641 = vst [vmem:[%s2593 + $0x158] sm:$0xff] %v2640
                  %v2642 = vld [vmem:[%s2592 + $0xc0] sm:$0xff]
                  %2643 = vst [vmem:[%s2593 + $0x180] sm:$0xff] %v2642
                  %v2644 = vld [vmem:[%s2592 + $0xc8] sm:$0xff]
                  %2645 = vst [vmem:[%s2593 + $0x188] sm:$0xff] %v2644
                  %v2646 = vld [vmem:[%s2592 + $0xd0] sm:$0xff]
                  %2647 = vst [vmem:[%s2593 + $0x190] sm:$0xff] %v2646
                  %v2648 = vld [vmem:[%s2592 + $0xd8] sm:$0xff]
                  %2649 = vst [vmem:[%s2593 + $0x198] sm:$0xff] %v2648
                  %v2650 = vld [vmem:[%s2592 + $0xe0] sm:$0xff]
                  %2651 = vst [vmem:[%s2593 + $0x1c0] sm:$0xff] %v2650
                  %v2652 = vld [vmem:[%s2592 + $0xe8] sm:$0xff]
                  %2653 = vst [vmem:[%s2593 + $0x1c8] sm:$0xff] %v2652
                  %v2654 = vld [vmem:[%s2592 + $0xf0] sm:$0xff]
                  %2655 = vst [vmem:[%s2593 + $0x1d0] sm:$0xff] %v2654
                  %v2656 = vld [vmem:[%s2592 + $0xf8] sm:$0xff]
                  %2657 = vst [vmem:[%s2593 + $0x1d8] sm:$0xff] %v2656
                  %v2658 = vld [vmem:[%s2592 + $0x100] sm:$0xff]
                  %2659 = vst [vmem:[%s2593 + $0x200] sm:$0xff] %v2658
                  %v2660 = vld [vmem:[%s2592 + $0x108] sm:$0xff]
                  %2661 = vst [vmem:[%s2593 + $0x208] sm:$0xff] %v2660
                  %v2662 = vld [vmem:[%s2592 + $0x110] sm:$0xff]
                  %2663 = vst [vmem:[%s2593 + $0x210] sm:$0xff] %v2662
                  %v2664 = vld [vmem:[%s2592 + $0x118] sm:$0xff]
                  %2665 = vst [vmem:[%s2593 + $0x218] sm:$0xff] %v2664
                  %v2666 = vld [vmem:[%s2592 + $0x120] sm:$0xff]
                  %2667 = vst [vmem:[%s2593 + $0x240] sm:$0xff] %v2666
                  %v2668 = vld [vmem:[%s2592 + $0x128] sm:$0xff]
                  %2669 = vst [vmem:[%s2593 + $0x248] sm:$0xff] %v2668
                  %v2670 = vld [vmem:[%s2592 + $0x130] sm:$0xff]
                  %2671 = vst [vmem:[%s2593 + $0x250] sm:$0xff] %v2670
                  %v2672 = vld [vmem:[%s2592 + $0x138] sm:$0xff]
                  %2673 = vst [vmem:[%s2593 + $0x258] sm:$0xff] %v2672
                  %v2674 = vld [vmem:[%s2592 + $0x140] sm:$0xff]
                  %2675 = vst [vmem:[%s2593 + $0x280] sm:$0xff] %v2674
                  %v2676 = vld [vmem:[%s2592 + $0x148] sm:$0xff]
                  %2677 = vst [vmem:[%s2593 + $0x288] sm:$0xff] %v2676
                  %v2678 = vld [vmem:[%s2592 + $0x150] sm:$0xff]
                  %2679 = vst [vmem:[%s2593 + $0x290] sm:$0xff] %v2678
                  %v2680 = vld [vmem:[%s2592 + $0x158] sm:$0xff]
                  %2681 = vst [vmem:[%s2593 + $0x298] sm:$0xff] %v2680
                  %v2682 = vld [vmem:[%s2592 + $0x160] sm:$0xff]
                  %2683 = vst [vmem:[%s2593 + $0x2c0] sm:$0xff] %v2682
                  %v2684 = vld [vmem:[%s2592 + $0x168] sm:$0xff]
                  %2685 = vst [vmem:[%s2593 + $0x2c8] sm:$0xff] %v2684
                  %v2686 = vld [vmem:[%s2592 + $0x170] sm:$0xff]
                  %2687 = vst [vmem:[%s2593 + $0x2d0] sm:$0xff] %v2686
                  %v2688 = vld [vmem:[%s2592 + $0x178] sm:$0xff]
                  %2689 = vst [vmem:[%s2593 + $0x2d8] sm:$0xff] %v2688
                  %v2690 = vld [vmem:[%s2592 + $0x180] sm:$0xff]
                  %2691 = vst [vmem:[%s2593 + $0x300] sm:$0xff] %v2690
                  %v2692 = vld [vmem:[%s2592 + $0x188] sm:$0xff]
                  %2693 = vst [vmem:[%s2593 + $0x308] sm:$0xff] %v2692
                  %v2694 = vld [vmem:[%s2592 + $0x190] sm:$0xff]
                  %2695 = vst [vmem:[%s2593 + $0x310] sm:$0xff] %v2694
                  %v2696 = vld [vmem:[%s2592 + $0x198] sm:$0xff]
                  %2697 = vst [vmem:[%s2593 + $0x318] sm:$0xff] %v2696
                  %v2698 = vld [vmem:[%s2592 + $0x1a0] sm:$0xff]
                  %2699 = vst [vmem:[%s2593 + $0x340] sm:$0xff] %v2698
                  %v2700 = vld [vmem:[%s2592 + $0x1a8] sm:$0xff]
                  %2701 = vst [vmem:[%s2593 + $0x348] sm:$0xff] %v2700
                  %v2702 = vld [vmem:[%s2592 + $0x1b0] sm:$0xff]
                  %2703 = vst [vmem:[%s2593 + $0x350] sm:$0xff] %v2702
                  %v2704 = vld [vmem:[%s2592 + $0x1b8] sm:$0xff]
                  %2705 = vst [vmem:[%s2593 + $0x358] sm:$0xff] %v2704
                  %v2706 = vld [vmem:[%s2592 + $0x1c0] sm:$0xff]
                  %2707 = vst [vmem:[%s2593 + $0x380] sm:$0xff] %v2706
                  %v2708 = vld [vmem:[%s2592 + $0x1c8] sm:$0xff]
                  %2709 = vst [vmem:[%s2593 + $0x388] sm:$0xff] %v2708
                  %v2710 = vld [vmem:[%s2592 + $0x1d0] sm:$0xff]
                  %2711 = vst [vmem:[%s2593 + $0x390] sm:$0xff] %v2710
                  %v2712 = vld [vmem:[%s2592 + $0x1d8] sm:$0xff]
                  %2713 = vst [vmem:[%s2593 + $0x398] sm:$0xff] %v2712
                  %v2714 = vld [vmem:[%s2592 + $0x1e0] sm:$0xff]
                  %2715 = vst [vmem:[%s2593 + $0x3c0] sm:$0xff] %v2714
                  %v2716 = vld [vmem:[%s2592 + $0x1e8] sm:$0xff]
                  %2717 = vst [vmem:[%s2593 + $0x3c8] sm:$0xff] %v2716
                  %v2718 = vld [vmem:[%s2592 + $0x1f0] sm:$0xff]
                  %2719 = vst [vmem:[%s2593 + $0x3d0] sm:$0xff] %v2718
                  %v2720 = vld [vmem:[%s2592 + $0x1f8] sm:$0xff]
                  %2721 = vst [vmem:[%s2593 + $0x3d8] sm:$0xff] %v2720
                $region102: #{elemental_linear.1} parent=96 // loop_footer
                  %s2591 = sadd.s32 1, %s2587
                $region103: #{elemental_linear.1} parent=96 // loop_footer_branch
                  %2586 = sbr.rel target = $region99
                $region104: #{elemental_linear.1} parent=96 // loop_exit
                  _
              $region97: #{elemental_linear.1} parent=81 // pred_fallthru
                _
              // Predicated region
              $region105: #{elemental_linear.1} parent=81 // pred_check
                _
              $region106: #{elemental_linear.1} parent=81 // pred_check_branch
                %2723 = sbr.rel target = $region108
              $region107: #{elemental_linear.1} parent=81 // pred_region
                _
              $region108: #{elemental_linear.1} parent=81 // pred_fallthru
                _
            $region82: #{elemental_linear.1} parent=77 // pred_fallthru
              _
            // Predicated region
            $region83: #{elemental_linear.1} parent=77 // pred_check
              _
            $region84: #{elemental_linear.1} parent=77 // pred_check_branch
              %2445 = sbr.rel target = $region86
            $region85: #{elemental_linear.1} parent=77 // pred_region
              %s2447 = ssub.s32 256, 1
              loop: start=0, step=1, limit=1
              $region87: #{elemental_linear.1} parent=85 // loop_pre_header
                _
              $region88: #{elemental_linear.1} parent=85 // loop_header
                %s2449 = sphi 0, %s2453
                %p2450 = scmp.ge.s32.totalorder %s2449, 1
                %s2454 = sphi %s2433, %s2433
                %s2455 = sphi %s2439, %s2439
              $region89: #{elemental_linear.1} parent=85 // loop_header_branch
                %2452 = sbr.rel (%p2450) target = $region93
              $region90: #{elemental_linear.1} parent=85 // loop_body
                %v2456 = vld [vmem:[%s2454] sm:%s2447]
                %2457 = vst [vmem:[%s2455] sm:%s2447] %v2456
                %v2458 = vld [vmem:[%s2454 + $0x8] sm:%s2447]
                %2459 = vst [vmem:[%s2455 + $0x8] sm:%s2447] %v2458
                %v2460 = vld [vmem:[%s2454 + $0x10] sm:%s2447]
                %2461 = vst [vmem:[%s2455 + $0x10] sm:%s2447] %v2460
                %v2462 = vld [vmem:[%s2454 + $0x18] sm:%s2447]
                %2463 = vst [vmem:[%s2455 + $0x18] sm:%s2447] %v2462
                %v2464 = vld [vmem:[%s2454 + $0x20] sm:%s2447]
                %2465 = vst [vmem:[%s2455 + $0x40] sm:%s2447] %v2464
                %v2466 = vld [vmem:[%s2454 + $0x28] sm:%s2447]
                %2467 = vst [vmem:[%s2455 + $0x48] sm:%s2447] %v2466
                %v2468 = vld [vmem:[%s2454 + $0x30] sm:%s2447]
                %2469 = vst [vmem:[%s2455 + $0x50] sm:%s2447] %v2468
                %v2470 = vld [vmem:[%s2454 + $0x38] sm:%s2447]
                %2471 = vst [vmem:[%s2455 + $0x58] sm:%s2447] %v2470
                %v2472 = vld [vmem:[%s2454 + $0x40] sm:%s2447]
                %2473 = vst [vmem:[%s2455 + $0x80] sm:%s2447] %v2472
                %v2474 = vld [vmem:[%s2454 + $0x48] sm:%s2447]
                %2475 = vst [vmem:[%s2455 + $0x88] sm:%s2447] %v2474
                %v2476 = vld [vmem:[%s2454 + $0x50] sm:%s2447]
                %2477 = vst [vmem:[%s2455 + $0x90] sm:%s2447] %v2476
                %v2478 = vld [vmem:[%s2454 + $0x58] sm:%s2447]
                %2479 = vst [vmem:[%s2455 + $0x98] sm:%s2447] %v2478
                %v2480 = vld [vmem:[%s2454 + $0x60] sm:%s2447]
                %2481 = vst [vmem:[%s2455 + $0xc0] sm:%s2447] %v2480
                %v2482 = vld [vmem:[%s2454 + $0x68] sm:%s2447]
                %2483 = vst [vmem:[%s2455 + $0xc8] sm:%s2447] %v2482
                %v2484 = vld [vmem:[%s2454 + $0x70] sm:%s2447]
                %2485 = vst [vmem:[%s2455 + $0xd0] sm:%s2447] %v2484
                %v2486 = vld [vmem:[%s2454 + $0x78] sm:%s2447]
                %2487 = vst [vmem:[%s2455 + $0xd8] sm:%s2447] %v2486
                %v2488 = vld [vmem:[%s2454 + $0x80] sm:%s2447]
                %2489 = vst [vmem:[%s2455 + $0x100] sm:%s2447] %v2488
                %v2490 = vld [vmem:[%s2454 + $0x88] sm:%s2447]
                %2491 = vst [vmem:[%s2455 + $0x108] sm:%s2447] %v2490
                %v2492 = vld [vmem:[%s2454 + $0x90] sm:%s2447]
                %2493 = vst [vmem:[%s2455 + $0x110] sm:%s2447] %v2492
                %v2494 = vld [vmem:[%s2454 + $0x98] sm:%s2447]
                %2495 = vst [vmem:[%s2455 + $0x118] sm:%s2447] %v2494
                %v2496 = vld [vmem:[%s2454 + $0xa0] sm:%s2447]
                %2497 = vst [vmem:[%s2455 + $0x140] sm:%s2447] %v2496
                %v2498 = vld [vmem:[%s2454 + $0xa8] sm:%s2447]
                %2499 = vst [vmem:[%s2455 + $0x148] sm:%s2447] %v2498
                %v2500 = vld [vmem:[%s2454 + $0xb0] sm:%s2447]
                %2501 = vst [vmem:[%s2455 + $0x150] sm:%s2447] %v2500
                %v2502 = vld [vmem:[%s2454 + $0xb8] sm:%s2447]
                %2503 = vst [vmem:[%s2455 + $0x158] sm:%s2447] %v2502
                %v2504 = vld [vmem:[%s2454 + $0xc0] sm:%s2447]
                %2505 = vst [vmem:[%s2455 + $0x180] sm:%s2447] %v2504
                %v2506 = vld [vmem:[%s2454 + $0xc8] sm:%s2447]
                %2507 = vst [vmem:[%s2455 + $0x188] sm:%s2447] %v2506
                %v2508 = vld [vmem:[%s2454 + $0xd0] sm:%s2447]
                %2509 = vst [vmem:[%s2455 + $0x190] sm:%s2447] %v2508
                %v2510 = vld [vmem:[%s2454 + $0xd8] sm:%s2447]
                %2511 = vst [vmem:[%s2455 + $0x198] sm:%s2447] %v2510
                %v2512 = vld [vmem:[%s2454 + $0xe0] sm:%s2447]
                %2513 = vst [vmem:[%s2455 + $0x1c0] sm:%s2447] %v2512
                %v2514 = vld [vmem:[%s2454 + $0xe8] sm:%s2447]
                %2515 = vst [vmem:[%s2455 + $0x1c8] sm:%s2447] %v2514
                %v2516 = vld [vmem:[%s2454 + $0xf0] sm:%s2447]
                %2517 = vst [vmem:[%s2455 + $0x1d0] sm:%s2447] %v2516
                %v2518 = vld [vmem:[%s2454 + $0xf8] sm:%s2447]
                %2519 = vst [vmem:[%s2455 + $0x1d8] sm:%s2447] %v2518
                %v2520 = vld [vmem:[%s2454 + $0x100] sm:%s2447]
                %2521 = vst [vmem:[%s2455 + $0x200] sm:%s2447] %v2520
                %v2522 = vld [vmem:[%s2454 + $0x108] sm:%s2447]
                %2523 = vst [vmem:[%s2455 + $0x208] sm:%s2447] %v2522
                %v2524 = vld [vmem:[%s2454 + $0x110] sm:%s2447]
                %2525 = vst [vmem:[%s2455 + $0x210] sm:%s2447] %v2524
                %v2526 = vld [vmem:[%s2454 + $0x118] sm:%s2447]
                %2527 = vst [vmem:[%s2455 + $0x218] sm:%s2447] %v2526
                %v2528 = vld [vmem:[%s2454 + $0x120] sm:%s2447]
                %2529 = vst [vmem:[%s2455 + $0x240] sm:%s2447] %v2528
                %v2530 = vld [vmem:[%s2454 + $0x128] sm:%s2447]
                %2531 = vst [vmem:[%s2455 + $0x248] sm:%s2447] %v2530
                %v2532 = vld [vmem:[%s2454 + $0x130] sm:%s2447]
                %2533 = vst [vmem:[%s2455 + $0x250] sm:%s2447] %v2532
                %v2534 = vld [vmem:[%s2454 + $0x138] sm:%s2447]
                %2535 = vst [vmem:[%s2455 + $0x258] sm:%s2447] %v2534
                %v2536 = vld [vmem:[%s2454 + $0x140] sm:%s2447]
                %2537 = vst [vmem:[%s2455 + $0x280] sm:%s2447] %v2536
                %v2538 = vld [vmem:[%s2454 + $0x148] sm:%s2447]
                %2539 = vst [vmem:[%s2455 + $0x288] sm:%s2447] %v2538
                %v2540 = vld [vmem:[%s2454 + $0x150] sm:%s2447]
                %2541 = vst [vmem:[%s2455 + $0x290] sm:%s2447] %v2540
                %v2542 = vld [vmem:[%s2454 + $0x158] sm:%s2447]
                %2543 = vst [vmem:[%s2455 + $0x298] sm:%s2447] %v2542
                %v2544 = vld [vmem:[%s2454 + $0x160] sm:%s2447]
                %2545 = vst [vmem:[%s2455 + $0x2c0] sm:%s2447] %v2544
                %v2546 = vld [vmem:[%s2454 + $0x168] sm:%s2447]
                %2547 = vst [vmem:[%s2455 + $0x2c8] sm:%s2447] %v2546
                %v2548 = vld [vmem:[%s2454 + $0x170] sm:%s2447]
                %2549 = vst [vmem:[%s2455 + $0x2d0] sm:%s2447] %v2548
                %v2550 = vld [vmem:[%s2454 + $0x178] sm:%s2447]
                %2551 = vst [vmem:[%s2455 + $0x2d8] sm:%s2447] %v2550
                %v2552 = vld [vmem:[%s2454 + $0x180] sm:%s2447]
                %2553 = vst [vmem:[%s2455 + $0x300] sm:%s2447] %v2552
                %v2554 = vld [vmem:[%s2454 + $0x188] sm:%s2447]
                %2555 = vst [vmem:[%s2455 + $0x308] sm:%s2447] %v2554
                %v2556 = vld [vmem:[%s2454 + $0x190] sm:%s2447]
                %2557 = vst [vmem:[%s2455 + $0x310] sm:%s2447] %v2556
                %v2558 = vld [vmem:[%s2454 + $0x198] sm:%s2447]
                %2559 = vst [vmem:[%s2455 + $0x318] sm:%s2447] %v2558
                %v2560 = vld [vmem:[%s2454 + $0x1a0] sm:%s2447]
                %2561 = vst [vmem:[%s2455 + $0x340] sm:%s2447] %v2560
                %v2562 = vld [vmem:[%s2454 + $0x1a8] sm:%s2447]
                %2563 = vst [vmem:[%s2455 + $0x348] sm:%s2447] %v2562
                %v2564 = vld [vmem:[%s2454 + $0x1b0] sm:%s2447]
                %2565 = vst [vmem:[%s2455 + $0x350] sm:%s2447] %v2564
                %v2566 = vld [vmem:[%s2454 + $0x1b8] sm:%s2447]
                %2567 = vst [vmem:[%s2455 + $0x358] sm:%s2447] %v2566
                %v2568 = vld [vmem:[%s2454 + $0x1c0] sm:%s2447]
                %2569 = vst [vmem:[%s2455 + $0x380] sm:%s2447] %v2568
                %v2570 = vld [vmem:[%s2454 + $0x1c8] sm:%s2447]
                %2571 = vst [vmem:[%s2455 + $0x388] sm:%s2447] %v2570
                %v2572 = vld [vmem:[%s2454 + $0x1d0] sm:%s2447]
                %2573 = vst [vmem:[%s2455 + $0x390] sm:%s2447] %v2572
                %v2574 = vld [vmem:[%s2454 + $0x1d8] sm:%s2447]
                %2575 = vst [vmem:[%s2455 + $0x398] sm:%s2447] %v2574
                %v2576 = vld [vmem:[%s2454 + $0x1e0] sm:%s2447]
                %2577 = vst [vmem:[%s2455 + $0x3c0] sm:%s2447] %v2576
                %v2578 = vld [vmem:[%s2454 + $0x1e8] sm:%s2447]
                %2579 = vst [vmem:[%s2455 + $0x3c8] sm:%s2447] %v2578
                %v2580 = vld [vmem:[%s2454 + $0x1f0] sm:%s2447]
                %2581 = vst [vmem:[%s2455 + $0x3d0] sm:%s2447] %v2580
                %v2582 = vld [vmem:[%s2454 + $0x1f8] sm:%s2447]
                %2583 = vst [vmem:[%s2455 + $0x3d8] sm:%s2447] %v2582
              $region91: #{elemental_linear.1} parent=85 // loop_footer
                %s2453 = sadd.s32 1, %s2449
              $region92: #{elemental_linear.1} parent=85 // loop_footer_branch
                %2448 = sbr.rel target = $region88
              $region93: #{elemental_linear.1} parent=85 // loop_exit
                _
            $region86: #{elemental_linear.1} parent=77 // pred_fallthru
              _
          $region78: #{elemental_linear.1} parent=73 // pred_fallthru
            _
          %2724 = vnop
        $region74: #{elemental_linear.1} parent=65 // pred_fallthru
          _
      $region66: #{elemental_linear.1} parent=5 // pred_fallthru
        _
      %p2725 = scmp.le.s32.totalorder 2, %s9
      // Predicated region
      $region109: #{elemental_linear.1} parent=5 // pred_check
        %p2726 = pneg %p2725
      $region110: #{elemental_linear.1} parent=5 // pred_check_branch
        %2728 = sbr.rel (%p2726) target = $region112
      $region111: #{elemental_linear.1} parent=5 // pred_region
        %s2729 = ssub.s32 %s9, 2
        // Predicated region
        $region113: #{elemental_linear.1} parent=111 // pred_check
          %p2730 = pneg %p111
        $region114: #{elemental_linear.1} parent=111 // pred_check_branch
          %2732 = sbr.rel (%p2730) target = $region116
        $region115: #{elemental_linear.1} parent=111 // pred_region
          %s2733 = sand.u32 %s96, 1
          %s2734 = sand.u32 %s96, 1
          %s2735 = smul.addr %s2734, 512
          %s2736 = scalar_lea.vmem [#allocation3], %s2735
        $region116: #{elemental_linear.1} parent=111 // pred_fallthru
          _
      $region112: #{elemental_linear.1} parent=5 // pred_fallthru
        _
    $region6: #{elemental_linear.1} parent=1 // loop_footer
      %s13 = sadd.s32 1, %s9
    $region7: #{elemental_linear.1} parent=1 // loop_footer_branch
      %8 = sbr.rel target = $region3
    $region8: #{elemental_linear.1} parent=1 // loop_exit
      _

</llo_original>
